<compile_context>
chip_gen: v7x
topology: tpu7x:2x2x1
jax: 0.10.0
libtpu: 0.0.40
codegen_flags: <defaults>
</compile_context>

<pallas_src>
import functools

import jax
import jax.numpy as jnp
from jax import lax
from jax.experimental import pallas as pl
from jax.experimental.pallas import tpu as pltpu

_LP = 8  # left zero-pad columns in the conv2 scratch -> aligned interior store


def _bottleneck_kernel(x_ref, w1_ref, s1_ref, b1_ref,
                       w2_ref, s2_ref, b2_ref,
                       w3_ref, s3_ref, b3_ref,
                       o_ref, pad_ref, *, apply_final_relu):
    """Fused Bottleneck block for a tile of B images (grid axis 0 = batch tiles).

    x_ref : (B, H, W, Cin)          NHWC input tile (channels lane-padded)
    w1_ref: (Cin, Cw)               1x1 conv1 weight (bf16, matmul layout)
    w2_ref: (9, Cw, Cw)             3x3 conv2 weight, one (Cin,Cout) slab per tap (bf16)
    w3_ref: (Cw, Cout)              1x1 conv3 weight (bf16)
    s*_ref/b*_ref: (1, C)           folded BN scale / bias (f32)
    o_ref : (B, H, W, Cout)         output tile (Cout == Cin for the residual add)
    pad_ref: (B, H+2, W+16, Cw)     bf16 scratch; interior lives at rows 1..H,
                                    cols _LP.._LP+W-1 (sublane-aligned store);
                                    zero border at rows 0/H+1 and cols _LP-1/_LP+W.
    """
    B, H, W, Cin = x_ref.shape
    Cw = w1_ref.shape[1]
    Cout = w3_ref.shape[1]
    M = B * H * W

    # ---- conv1 (1x1) + bn1 + relu: one (M,Cin)x(Cin,Cw) bf16 MXU matmul ------
    xm = x_ref[...].reshape(M, Cin)
    y1 = jnp.dot(xm.astype(jnp.bfloat16), w1_ref[...],
                 preferred_element_type=jnp.float32)
    y1 = jnp.maximum(y1 * s1_ref[...] + b1_ref[...], 0.0)

    # ---- conv2 (3x3, stride=1, pad=1) + bn2 + relu ---------------------------
    # Re-zero only the thin border every step (rows 0 / H+1 and the two single
    # columns actually read); the interior is fully overwritten below with an
    # aligned, unmasked bf16 store.
    zero_row = jnp.zeros((B, 1, pad_ref.shape[2], Cw), pad_ref.dtype)
    pad_ref[:, 0:1, :, :] = zero_row
    pad_ref[:, H + 1:H + 2, :, :] = zero_row
    zero_col = jnp.zeros((B, H + 2, 1, Cw), pad_ref.dtype)
    pad_ref[:, :, _LP - 1:_LP, :] = zero_col
    pad_ref[:, :, _LP + W:_LP + W + 1, :] = zero_col
    pad_ref[:, 1:H + 1, _LP:_LP + W, :] = (
        y1.astype(pad_ref.dtype).reshape(B, H, W, Cw))

    # 9 accumulating K=Cw matmuls over shifted views (no materialized im2col).
    y2 = None
    for ky in range(3):
        for kx in range(3):
            lhs = pad_ref[:, ky:ky + H,
                          _LP - 1 + kx:_LP - 1 + kx + W, :].reshape(M, Cw)
            part = jnp.dot(lhs, w2_ref[3 * ky + kx],
                           preferred_element_type=jnp.float32)
            y2 = part if y2 is None else y2 + part
    y2 = jnp.maximum(y2 * s2_ref[...] + b2_ref[...], 0.0)

    # ---- conv3 (1x1) + bn3 + residual (+ relu) -------------------------------
    y3 = jnp.dot(y2.astype(jnp.bfloat16), w3_ref[...],
                 preferred_element_type=jnp.float32)
    y3 = y3 * s3_ref[...] + b3_ref[...]
    # Identity branch (downsample=None): re-read x_ref instead of keeping a
    # long-lived f32 copy live across the three convs.
    out = y3 + x_ref[...].reshape(M, Cout).astype(jnp.float32)
    if apply_final_relu:                      # fake_relu forward == relu forward
        out = jnp.maximum(out, 0.0)
    o_ref[...] = out.reshape(B, H, W, Cout).astype(o_ref.dtype)


def _round_up(v, m):
    return (v + m - 1) // m * m


def _vmem_numbers():
    """Generation-aware (per-core VMEM capacity, scoped limit to request)."""
    cap = None
    try:
        info = pltpu.get_tpu_info()
        cap = int(getattr(info, "vmem_capacity_bytes", 0)) or None
    except Exception:
        cap = None
    if cap is None:
        cap = 64 * 2 ** 20            # conservative default: v7x per-TensorCore
    # Leave headroom for Mosaic internal scratch / spill; cap large parts ~110MiB.
    limit = max(32 * 2 ** 20, min(cap - 12 * 2 ** 20, 110 * 2 ** 20))
    return cap, limit


def bottleneck_forward_nhwc(x, params, *, fake_relu=False, no_relu=False, lane=128):
    """Fused Bottleneck on an NHWC input (preferred entry point)."""
    w1, s1, b1, w2, s2, b2, w3, s3, b3 = params
    N, H, W, Cin = x.shape
    Cw = w1.shape[1]
    Cout = w3.shape[1]
    # Residual path assumes the identity branch (no downsample / stride 1).
    assert Cout == Cin, "downsample=None & stride=1 require inplanes == planes*4"

    # ---- lane-dense channel padding (zeros keep the math exact) --------------
    Cinp, Cwp, Coutp = (_round_up(c, lane) for c in (Cin, Cw, Cout))
    xp = jnp.pad(x, ((0, 0), (0, 0), (0, 0), (0, Cinp - Cin)))
    w1p = jnp.pad(w1, ((0, Cinp - Cin), (0, Cwp - Cw))).astype(jnp.bfloat16)
    w2p = jnp.pad(w2, ((0, 0), (0, 0), (0, Cwp - Cw), (0, Cwp - Cw)))
    w2f = w2p.reshape(9, Cwp, Cwp).astype(jnp.bfloat16)   # one (Cin,Cout) slab per tap
    w3p = jnp.pad(w3, ((0, Cwp - Cw), (0, Coutp - Cout))).astype(jnp.bfloat16)
    pc = lambda a, c: jnp.pad(a, ((0, 0), (0, c - a.shape[1])))
    s1p, b1p = pc(s1, Cwp), pc(b1, Cwp)
    s2p, b2p = pc(s2, Cwp), pc(b2, Cwp)
    s3p, b3p = pc(s3, Coutp), pc(b3, Coutp)

    # ---- batch tile: fold images into the matmul M dimension -----------------
    vmem_cap, vmem_limit = _vmem_numbers()
    itemsize = jnp.dtype(x.dtype).itemsize
    per_img = (2 * H * W * Cinp * itemsize              # double-buffered input block
               + 2 * H * W * Coutp * itemsize           # double-buffered output block
               + (H + 2) * (W + 16) * Cwp * 2           # bf16 padded-y1 scratch
               + 3 * H * W * max(Cwp, Coutp) * 4)       # f32 live intermediates
    weight_bytes = 2 * ((Cinp * Cwp + 9 * Cwp * Cwp + Cwp * Coutp) * 2
                        + (4 * Cwp + 2 * Coutp) * 4)    # double-buffered weight blocks
    budget = max(per_img, vmem_limit - weight_bytes - 8 * 2 ** 20)
    img_cap = max(1, budget // per_img)

    # >=4 grid steps when N allows: >=2 steps per TensorCore on 2-core parts,
    # and enough steps for the BlockSpec pipeline to overlap DMA with compute
    # on single-core parts.  (Padded batch rows, if any, compute garbage that
    # is sliced off below.)
    min_steps = min(N, 4) if N > 0 else 1
    b_tile = int(max(1, min(img_cap, -(-N // min_steps))))
    Np = _round_up(N, b_tile)
    if Np != N:
        xp = jnp.pad(xp, ((0, Np - N), (0, 0), (0, 0), (0, 0)))

    apply_final_relu = fake_relu or (not no_relu)
    kernel = functools.partial(_bottleneck_kernel,
                               apply_final_relu=apply_final_relu)
    cspec = lambda c: pl.BlockSpec((1, c), lambda n: (0, 0))
    out = pl.pallas_call(
        kernel,
        out_shape=jax.ShapeDtypeStruct((Np, H, W, Coutp), x.dtype),
        grid=(Np // b_tile,),
        in_specs=[
            pl.BlockSpec((b_tile, H, W, Cinp), lambda n: (n, 0, 0, 0)),
            pl.BlockSpec((Cinp, Cwp), lambda n: (0, 0)),
            cspec(Cwp), cspec(Cwp),
            pl.BlockSpec((9, Cwp, Cwp), lambda n: (0, 0, 0)),
            cspec(Cwp), cspec(Cwp),
            pl.BlockSpec((Cwp, Coutp), lambda n: (0, 0)),
            cspec(Coutp), cspec(Coutp),
        ],
        out_specs=pl.BlockSpec((b_tile, H, W, Coutp), lambda n: (n, 0, 0, 0)),
        scratch_shapes=[pltpu.VMEM((b_tile, H + 2, W + 16, Cwp), jnp.bfloat16)],
        compiler_params=pltpu.CompilerParams(
            dimension_semantics=("parallel",),
            vmem_limit_bytes=int(vmem_limit)),
    )(xp, w1p, s1p, b1p, w2f, s2p, b2p, w3p, s3p, b3p)
    return out[:N, :, :, :Cout]


def bottleneck_forward(x_nchw, params, *, fake_relu=False, no_relu=False):
    """PyTorch-parity entry point: NCHW in / NCHW out (like the nn.Module)."""
    x = jnp.transpose(x_nchw, (0, 2, 3, 1))            # NCHW -> NHWC
    out = bottleneck_forward_nhwc(x, params, fake_relu=fake_relu, no_relu=no_relu)
    return jnp.transpose(out, (0, 3, 1, 2))            # NHWC -> NCHW


def make_params(key, inplanes, planes, base_width=64, groups=1):
    """Deterministic synthetic parameters with the shapes implied by __init__."""
    expansion = 4
    width = int(planes * (base_width / 64.0)) * groups
    cout = planes * expansion
    eps = 1e-5
    ks = jax.random.split(key, 12)

    def fold_bn(kg, kb, km, kv, c):
        gamma = 1.0 + 0.1 * jax.random.normal(kg, (c,), jnp.float32)
        beta = 0.1 * jax.random.normal(kb, (c,), jnp.float32)
        mean = 0.1 * jax.random.normal(km, (c,), jnp.float32)
        var = jnp.abs(jax.random.normal(kv, (c,), jnp.float32)) + 0.5
        scale = gamma / jnp.sqrt(var + eps)
        bias = beta - mean * scale
        return scale.reshape(1, c), bias.reshape(1, c)

    # conv weights; PyTorch stores (Cout, Cin, kh, kw) -> kernel uses matmul layouts
    w1 = 0.3 * jax.random.normal(ks[0], (inplanes, width), jnp.float32)     # (Cin, Cw)
    w2 = 0.3 * jax.random.normal(ks[1], (3, 3, width, width), jnp.float32)  # HWIO
    w3 = 0.3 * jax.random.normal(ks[2], (width, cout), jnp.float32)         # (Cw, Cout)
    s1, b1 = fold_bn(ks[3], ks[4], ks[5], ks[6], width)
    s2, b2 = fold_bn(ks[7], ks[8], ks[9], ks[10], width)
    s3, b3 = fold_bn(ks[11], ks[0], ks[1], ks[2], cout)
    return (w1, s1, b1, w2, s2, b2, w3, s3, b3)


def bottleneck_reference(x_nchw, params, *, no_relu=False, matmul_dtype=jnp.float32):
    """Pure-JAX reference (lax.conv_general_dilated) for validation.

    matmul_dtype=jnp.bfloat16 mirrors the kernel's bf16-operand / f32-accumulate
    matmuls (f32 BN epilogue, f32 residual); matmul_dtype=jnp.float32 is the
    exact PyTorch-module math.
    """
    w1, s1, b1, w2, s2, b2, w3, s3, b3 = params
    x = jnp.transpose(x_nchw, (0, 2, 3, 1)).astype(jnp.float32)

    def conv(h, w_hwio, pad=0):
        return lax.conv_general_dilated(
            h.astype(matmul_dtype), w_hwio.astype(matmul_dtype), (1, 1),
            [(pad, pad), (pad, pad)],
            dimension_numbers=("NHWC", "HWIO", "NHWC"),
            preferred_element_type=jnp.float32)

    y = conv(x, w1.reshape(1, 1, *w1.shape))
    y = jnp.maximum(y * s1[0] + b1[0], 0.0)
    y = conv(y, w2, pad=1)
    y = jnp.maximum(y * s2[0] + b2[0], 0.0)
    y = conv(y, w3.reshape(1, 1, *w3.shape))
    y = y * s3[0] + b3[0]
    y = y + x
    if not no_relu:
        y = jnp.maximum(y, 0.0)
    return jnp.transpose(y, (0, 3, 1, 2))


if __name__ == "__main__":
    # Small shapes consistent with the module: downsample=None, stride=1 =>
    # inplanes must equal planes * expansion.
    N, planes, H, W = 2, 4, 16, 16
    inplanes = planes * 4                  # 16
    key = jax.random.PRNGKey(0)
    kx, kp = jax.random.split(key)
    x = jax.random.normal(kx, (N, inplanes, H, W), jnp.float32)   # NCHW, like PyTorch
    params = make_params(kp, inplanes, planes)

    out = jax.block_until_ready(bottleneck_forward(x, params))
    assert out.shape == (N, planes * 4, H, W)

    # Tight check vs a reference using the same bf16-operand / f32-accumulate math.
    ref_bf16 = bottleneck_reference(x, params, matmul_dtype=jnp.bfloat16)
    assert jnp.allclose(out, ref_bf16, atol=5e-3, rtol=5e-3), \
        "mismatch vs bf16-matmul JAX reference"
    # Loose sanity check vs the exact f32 module math (bf16 quantization noise).
    ref_f32 = bottleneck_reference(x, params, matmul_dtype=jnp.float32)
    assert jnp.allclose(out, ref_f32, atol=1.5e-1, rtol=1e-1), \
        "mismatch vs f32 JAX reference"

    # Also exercise the no_relu path.
    out_nr = jax.block_until_ready(bottleneck_forward(x, params, no_relu=True))
    ref_nr = bottleneck_reference(x, params, no_relu=True, matmul_dtype=jnp.bfloat16)
    assert jnp.allclose(out_nr, ref_nr, atol=5e-3, rtol=5e-3), \
        "mismatch vs bf16-matmul JAX reference (no_relu)"
    print("KERNEL_OK")
</pallas_src>

<mosaic_0001>
module attributes {stable_mosaic.version = 11 : i64} {
  func.func @_bottleneck_kernel(%arg0: i32, %arg1: memref<1x16x16x128xf32, #tpu.memory_space<vmem>>, %arg2: memref<128x128xbf16, #tpu.memory_space<vmem>>, %arg3: memref<1x128xf32, #tpu.memory_space<vmem>>, %arg4: memref<1x128xf32, #tpu.memory_space<vmem>>, %arg5: memref<9x128x128xbf16, #tpu.memory_space<vmem>>, %arg6: memref<1x128xf32, #tpu.memory_space<vmem>>, %arg7: memref<1x128xf32, #tpu.memory_space<vmem>>, %arg8: memref<128x128xbf16, #tpu.memory_space<vmem>>, %arg9: memref<1x128xf32, #tpu.memory_space<vmem>>, %arg10: memref<1x128xf32, #tpu.memory_space<vmem>>, %arg11: memref<1x16x16x128xf32, #tpu.memory_space<vmem>>, %arg12: memref<1x18x32x128xbf16, #tpu.memory_space<vmem>>) attributes {dimension_semantics = [#tpu.dimension_semantics<parallel>], iteration_bounds = array<i64: 2>, scalar_prefetch = 0 : i64, scratch_operands = 1 : i64, tpu.core_type = #tpu.core_type<tc>, window_params = [{transform_indices = @transform_0, window_bounds = array<i64: 1, 16, 16, 128>}, {pipeline_mode = #tpu.pipeline_mode<synchronous>, transform_indices = @transform_1, window_bounds = array<i64: 128, 128>}, {pipeline_mode = #tpu.pipeline_mode<synchronous>, transform_indices = @transform_2, window_bounds = array<i64: 1, 128>}, {pipeline_mode = #tpu.pipeline_mode<synchronous>, transform_indices = @transform_3, window_bounds = array<i64: 1, 128>}, {pipeline_mode = #tpu.pipeline_mode<synchronous>, transform_indices = @transform_4, window_bounds = array<i64: 9, 128, 128>}, {pipeline_mode = #tpu.pipeline_mode<synchronous>, transform_indices = @transform_5, window_bounds = array<i64: 1, 128>}, {pipeline_mode = #tpu.pipeline_mode<synchronous>, transform_indices = @transform_6, window_bounds = array<i64: 1, 128>}, {pipeline_mode = #tpu.pipeline_mode<synchronous>, transform_indices = @transform_7, window_bounds = array<i64: 128, 128>}, {pipeline_mode = #tpu.pipeline_mode<synchronous>, transform_indices = @transform_8, window_bounds = array<i64: 1, 128>}, {pipeline_mode = #tpu.pipeline_mode<synchronous>, transform_indices = @transform_9, window_bounds = array<i64: 1, 128>}, {transform_indices = @transform_10, window_bounds = array<i64: 1, 16, 16, 128>}]} {
    %c0 = arith.constant 0 : index
    %c0_0 = arith.constant 0 : index
    %c0_1 = arith.constant 0 : index
    %c0_2 = arith.constant 0 : index
    %0 = vector.load %arg1[%c0, %c0_0, %c0_1, %c0_2] : memref<1x16x16x128xf32, #tpu.memory_space<vmem>>, vector<1x16x16x128xf32>
    %1 = vector.shape_cast %0 : vector<1x16x16x128xf32> to vector<256x128xf32>
    %2 = arith.truncf %1 : vector<256x128xf32> to vector<256x128xbf16>
    %c0_3 = arith.constant 0 : index
    %c0_4 = arith.constant 0 : index
    %3 = vector.load %arg2[%c0_3, %c0_4] : memref<128x128xbf16, #tpu.memory_space<vmem>>, vector<128x128xbf16>
    %cst = arith.constant dense<0.000000e+00> : vector<256x128xf32>
    %4 = tpu.matmul %2, %3, %cst {dimension_numbers = #tpu.dot_dimension_numbers<[1], [0], [0], [1], [0, 0, 1, 1], [], []>} : vector<256x128xbf16>, vector<128x128xbf16>, vector<256x128xf32> -> vector<256x128xf32>
    %c0_5 = arith.constant 0 : index
    %c0_6 = arith.constant 0 : index
    %5 = vector.load %arg3[%c0_5, %c0_6] : memref<1x128xf32, #tpu.memory_space<vmem>>, vector<1x128xf32>
    %6 = vector.broadcast %5 : vector<1x128xf32> to vector<256x128xf32>
    %7 = arith.mulf %4, %6 : vector<256x128xf32>
    %c0_7 = arith.constant 0 : index
    %c0_8 = arith.constant 0 : index
    %8 = vector.load %arg4[%c0_7, %c0_8] : memref<1x128xf32, #tpu.memory_space<vmem>>, vector<1x128xf32>
    %9 = vector.broadcast %8 : vector<1x128xf32> to vector<256x128xf32>
    %10 = arith.addf %7, %9 : vector<256x128xf32>
    %cst_9 = arith.constant 0.000000e+00 : f32
    %11 = vector.broadcast %cst_9 : f32 to vector<256x128xf32>
    %12 = arith.maximumf %10, %11 : vector<256x128xf32>
    %cst_10 = arith.constant 0.000000e+00 : bf16
    %13 = vector.broadcast %cst_10 : bf16 to vector<1x1x32x128xbf16>
    %c0_11 = arith.constant 0 : index
    %c0_12 = arith.constant 0 : index
    %c0_13 = arith.constant 0 : index
    %c0_14 = arith.constant 0 : index
    %14 = vector.load %arg12[%c0_11, %c0_12, %c0_13, %c0_14] : memref<1x18x32x128xbf16, #tpu.memory_space<vmem>>, vector<1x1x32x128xbf16>
    tpu.vector_store %arg12[%c0_11, %c0_12, %c0_13, %c0_14], %13 {strides = array<i32>} : memref<1x18x32x128xbf16, #tpu.memory_space<vmem>>, vector<1x1x32x128xbf16>,
    %c0_15 = arith.constant 0 : index
    %c17 = arith.constant 17 : index
    %c0_16 = arith.constant 0 : index
    %c0_17 = arith.constant 0 : index
    %15 = vector.load %arg12[%c0_15, %c17, %c0_16, %c0_17] : memref<1x18x32x128xbf16, #tpu.memory_space<vmem>>, vector<1x1x32x128xbf16>
    tpu.vector_store %arg12[%c0_15, %c17, %c0_16, %c0_17], %13 {strides = array<i32>} : memref<1x18x32x128xbf16, #tpu.memory_space<vmem>>, vector<1x1x32x128xbf16>,
    %cst_18 = arith.constant 0.000000e+00 : bf16
    %16 = vector.broadcast %cst_18 : bf16 to vector<1x18x1x128xbf16>
    %c0_19 = arith.constant 0 : index
    %c0_20 = arith.constant 0 : index
    %c7 = arith.constant 7 : index
    %c0_21 = arith.constant 0 : index
    %17 = vector.load %arg12[%c0_19, %c0_20, %c7, %c0_21] : memref<1x18x32x128xbf16, #tpu.memory_space<vmem>>, vector<1x18x1x128xbf16>
    tpu.vector_store %arg12[%c0_19, %c0_20, %c7, %c0_21], %16 {strides = array<i32>} : memref<1x18x32x128xbf16, #tpu.memory_space<vmem>>, vector<1x18x1x128xbf16>,
    %c0_22 = arith.constant 0 : index
    %c0_23 = arith.constant 0 : index
    %c24 = arith.constant 24 : index
    %c0_24 = arith.constant 0 : index
    %18 = vector.load %arg12[%c0_22, %c0_23, %c24, %c0_24] : memref<1x18x32x128xbf16, #tpu.memory_space<vmem>>, vector<1x18x1x128xbf16>
    tpu.vector_store %arg12[%c0_22, %c0_23, %c24, %c0_24], %16 {strides = array<i32>} : memref<1x18x32x128xbf16, #tpu.memory_space<vmem>>, vector<1x18x1x128xbf16>,
    %19 = arith.truncf %12 : vector<256x128xf32> to vector<256x128xbf16>
    %20 = vector.shape_cast %19 : vector<256x128xbf16> to vector<1x16x16x128xbf16>
    %c0_25 = arith.constant 0 : index
    %c1 = arith.constant 1 : index
    %c8 = arith.constant 8 : index
    %c0_26 = arith.constant 0 : index
    %21 = vector.load %arg12[%c0_25, %c1, %c8, %c0_26] : memref<1x18x32x128xbf16, #tpu.memory_space<vmem>>, vector<1x16x16x128xbf16>
    tpu.vector_store %arg12[%c0_25, %c1, %c8, %c0_26], %20 {strides = array<i32>} : memref<1x18x32x128xbf16, #tpu.memory_space<vmem>>, vector<1x16x16x128xbf16>,
    %c0_27 = arith.constant 0 : index
    %c0_28 = arith.constant 0 : index
    %c7_29 = arith.constant 7 : index
    %c0_30 = arith.constant 0 : index
    %22 = vector.load %arg12[%c0_27, %c0_28, %c7_29, %c0_30] : memref<1x18x32x128xbf16, #tpu.memory_space<vmem>>, vector<1x16x16x128xbf16>
    %23 = vector.shape_cast %22 : vector<1x16x16x128xbf16> to vector<256x128xbf16>
    %c0_31 = arith.constant 0 : index
    %c0_32 = arith.constant 0 : index
    %c0_33 = arith.constant 0 : index
    %24 = vector.load %arg5[%c0_31, %c0_32, %c0_33] : memref<9x128x128xbf16, #tpu.memory_space<vmem>>, vector<1x128x128xbf16>
    %25 = vector.shape_cast %24 : vector<1x128x128xbf16> to vector<128x128xbf16>
    %cst_34 = arith.constant dense<0.000000e+00> : vector<256x128xf32>
    %26 = tpu.matmul %23, %25, %cst_34 {dimension_numbers = #tpu.dot_dimension_numbers<[1], [0], [0], [1], [0, 0, 1, 1], [], []>} : vector<256x128xbf16>, vector<128x128xbf16>, vector<256x128xf32> -> vector<256x128xf32>
    %c0_35 = arith.constant 0 : index
    %c0_36 = arith.constant 0 : index
    %c8_37 = arith.constant 8 : index
    %c0_38 = arith.constant 0 : index
    %27 = vector.load %arg12[%c0_35, %c0_36, %c8_37, %c0_38] : memref<1x18x32x128xbf16, #tpu.memory_space<vmem>>, vector<1x16x16x128xbf16>
    %28 = vector.shape_cast %27 : vector<1x16x16x128xbf16> to vector<256x128xbf16>
    %c1_39 = arith.constant 1 : index
    %c0_40 = arith.constant 0 : index
    %c0_41 = arith.constant 0 : index
    %29 = vector.load %arg5[%c1_39, %c0_40, %c0_41] : memref<9x128x128xbf16, #tpu.memory_space<vmem>>, vector<1x128x128xbf16>
    %30 = vector.shape_cast %29 : vector<1x128x128xbf16> to vector<128x128xbf16>
    %cst_42 = arith.constant dense<0.000000e+00> : vector<256x128xf32>
    %31 = tpu.matmul %28, %30, %cst_42 {dimension_numbers = #tpu.dot_dimension_numbers<[1], [0], [0], [1], [0, 0, 1, 1], [], []>} : vector<256x128xbf16>, vector<128x128xbf16>, vector<256x128xf32> -> vector<256x128xf32>
    %32 = arith.addf %26, %31 : vector<256x128xf32>
    %c0_43 = arith.constant 0 : index
    %c0_44 = arith.constant 0 : index
    %c9 = arith.constant 9 : index
    %c0_45 = arith.constant 0 : index
    %33 = vector.load %arg12[%c0_43, %c0_44, %c9, %c0_45] : memref<1x18x32x128xbf16, #tpu.memory_space<vmem>>, vector<1x16x16x128xbf16>
    %34 = vector.shape_cast %33 : vector<1x16x16x128xbf16> to vector<256x128xbf16>
    %c2 = arith.constant 2 : index
    %c0_46 = arith.constant 0 : index
    %c0_47 = arith.constant 0 : index
    %35 = vector.load %arg5[%c2, %c0_46, %c0_47] : memref<9x128x128xbf16, #tpu.memory_space<vmem>>, vector<1x128x128xbf16>
    %36 = vector.shape_cast %35 : vector<1x128x128xbf16> to vector<128x128xbf16>
    %cst_48 = arith.constant dense<0.000000e+00> : vector<256x128xf32>
    %37 = tpu.matmul %34, %36, %cst_48 {dimension_numbers = #tpu.dot_dimension_numbers<[1], [0], [0], [1], [0, 0, 1, 1], [], []>} : vector<256x128xbf16>, vector<128x128xbf16>, vector<256x128xf32> -> vector<256x128xf32>
    %38 = arith.addf %32, %37 : vector<256x128xf32>
    %c0_49 = arith.constant 0 : index
    %c1_50 = arith.constant 1 : index
    %c7_51 = arith.constant 7 : index
    %c0_52 = arith.constant 0 : index
    %39 = vector.load %arg12[%c0_49, %c1_50, %c7_51, %c0_52] : memref<1x18x32x128xbf16, #tpu.memory_space<vmem>>, vector<1x16x16x128xbf16>
    %40 = vector.shape_cast %39 : vector<1x16x16x128xbf16> to vector<256x128xbf16>
    %c3 = arith.constant 3 : index
    %c0_53 = arith.constant 0 : index
    %c0_54 = arith.constant 0 : index
    %41 = vector.load %arg5[%c3, %c0_53, %c0_54] : memref<9x128x128xbf16, #tpu.memory_space<vmem>>, vector<1x128x128xbf16>
    %42 = vector.shape_cast %41 : vector<1x128x128xbf16> to vector<128x128xbf16>
    %cst_55 = arith.constant dense<0.000000e+00> : vector<256x128xf32>
    %43 = tpu.matmul %40, %42, %cst_55 {dimension_numbers = #tpu.dot_dimension_numbers<[1], [0], [0], [1], [0, 0, 1, 1], [], []>} : vector<256x128xbf16>, vector<128x128xbf16>, vector<256x128xf32> -> vector<256x128xf32>
    %44 = arith.addf %38, %43 : vector<256x128xf32>
    %c0_56 = arith.constant 0 : index
    %c1_57 = arith.constant 1 : index
    %c8_58 = arith.constant 8 : index
    %c0_59 = arith.constant 0 : index
    %45 = vector.load %arg12[%c0_56, %c1_57, %c8_58, %c0_59] : memref<1x18x32x128xbf16, #tpu.memory_space<vmem>>, vector<1x16x16x128xbf16>
    %46 = vector.shape_cast %45 : vector<1x16x16x128xbf16> to vector<256x128xbf16>
    %c4 = arith.constant 4 : index
    %c0_60 = arith.constant 0 : index
    %c0_61 = arith.constant 0 : index
    %47 = vector.load %arg5[%c4, %c0_60, %c0_61] : memref<9x128x128xbf16, #tpu.memory_space<vmem>>, vector<1x128x128xbf16>
    %48 = vector.shape_cast %47 : vector<1x128x128xbf16> to vector<128x128xbf16>
    %cst_62 = arith.constant dense<0.000000e+00> : vector<256x128xf32>
    %49 = tpu.matmul %46, %48, %cst_62 {dimension_numbers = #tpu.dot_dimension_numbers<[1], [0], [0], [1], [0, 0, 1, 1], [], []>} : vector<256x128xbf16>, vector<128x128xbf16>, vector<256x128xf32> -> vector<256x128xf32>
    %50 = arith.addf %44, %49 : vector<256x128xf32>
    %c0_63 = arith.constant 0 : index
    %c1_64 = arith.constant 1 : index
    %c9_65 = arith.constant 9 : index
    %c0_66 = arith.constant 0 : index
    %51 = vector.load %arg12[%c0_63, %c1_64, %c9_65, %c0_66] : memref<1x18x32x128xbf16, #tpu.memory_space<vmem>>, vector<1x16x16x128xbf16>
    %52 = vector.shape_cast %51 : vector<1x16x16x128xbf16> to vector<256x128xbf16>
    %c5 = arith.constant 5 : index
    %c0_67 = arith.constant 0 : index
    %c0_68 = arith.constant 0 : index
    %53 = vector.load %arg5[%c5, %c0_67, %c0_68] : memref<9x128x128xbf16, #tpu.memory_space<vmem>>, vector<1x128x128xbf16>
    %54 = vector.shape_cast %53 : vector<1x128x128xbf16> to vector<128x128xbf16>
    %cst_69 = arith.constant dense<0.000000e+00> : vector<256x128xf32>
    %55 = tpu.matmul %52, %54, %cst_69 {dimension_numbers = #tpu.dot_dimension_numbers<[1], [0], [0], [1], [0, 0, 1, 1], [], []>} : vector<256x128xbf16>, vector<128x128xbf16>, vector<256x128xf32> -> vector<256x128xf32>
    %56 = arith.addf %50, %55 : vector<256x128xf32>
    %c0_70 = arith.constant 0 : index
    %c2_71 = arith.constant 2 : index
    %c7_72 = arith.constant 7 : index
    %c0_73 = arith.constant 0 : index
    %57 = vector.load %arg12[%c0_70, %c2_71, %c7_72, %c0_73] : memref<1x18x32x128xbf16, #tpu.memory_space<vmem>>, vector<1x16x16x128xbf16>
    %58 = vector.shape_cast %57 : vector<1x16x16x128xbf16> to vector<256x128xbf16>
    %c6 = arith.constant 6 : index
    %c0_74 = arith.constant 0 : index
    %c0_75 = arith.constant 0 : index
    %59 = vector.load %arg5[%c6, %c0_74, %c0_75] : memref<9x128x128xbf16, #tpu.memory_space<vmem>>, vector<1x128x128xbf16>
    %60 = vector.shape_cast %59 : vector<1x128x128xbf16> to vector<128x128xbf16>
    %cst_76 = arith.constant dense<0.000000e+00> : vector<256x128xf32>
    %61 = tpu.matmul %58, %60, %cst_76 {dimension_numbers = #tpu.dot_dimension_numbers<[1], [0], [0], [1], [0, 0, 1, 1], [], []>} : vector<256x128xbf16>, vector<128x128xbf16>, vector<256x128xf32> -> vector<256x128xf32>
    %62 = arith.addf %56, %61 : vector<256x128xf32>
    %c0_77 = arith.constant 0 : index
    %c2_78 = arith.constant 2 : index
    %c8_79 = arith.constant 8 : index
    %c0_80 = arith.constant 0 : index
    %63 = vector.load %arg12[%c0_77, %c2_78, %c8_79, %c0_80] : memref<1x18x32x128xbf16, #tpu.memory_space<vmem>>, vector<1x16x16x128xbf16>
    %64 = vector.shape_cast %63 : vector<1x16x16x128xbf16> to vector<256x128xbf16>
    %c7_81 = arith.constant 7 : index
    %c0_82 = arith.constant 0 : index
    %c0_83 = arith.constant 0 : index
    %65 = vector.load %arg5[%c7_81, %c0_82, %c0_83] : memref<9x128x128xbf16, #tpu.memory_space<vmem>>, vector<1x128x128xbf16>
    %66 = vector.shape_cast %65 : vector<1x128x128xbf16> to vector<128x128xbf16>
    %cst_84 = arith.constant dense<0.000000e+00> : vector<256x128xf32>
    %67 = tpu.matmul %64, %66, %cst_84 {dimension_numbers = #tpu.dot_dimension_numbers<[1], [0], [0], [1], [0, 0, 1, 1], [], []>} : vector<256x128xbf16>, vector<128x128xbf16>, vector<256x128xf32> -> vector<256x128xf32>
    %68 = arith.addf %62, %67 : vector<256x128xf32>
    %c0_85 = arith.constant 0 : index
    %c2_86 = arith.constant 2 : index
    %c9_87 = arith.constant 9 : index
    %c0_88 = arith.constant 0 : index
    %69 = vector.load %arg12[%c0_85, %c2_86, %c9_87, %c0_88] : memref<1x18x32x128xbf16, #tpu.memory_space<vmem>>, vector<1x16x16x128xbf16>
    %70 = vector.shape_cast %69 : vector<1x16x16x128xbf16> to vector<256x128xbf16>
    %c8_89 = arith.constant 8 : index
    %c0_90 = arith.constant 0 : index
    %c0_91 = arith.constant 0 : index
    %71 = vector.load %arg5[%c8_89, %c0_90, %c0_91] : memref<9x128x128xbf16, #tpu.memory_space<vmem>>, vector<1x128x128xbf16>
    %72 = vector.shape_cast %71 : vector<1x128x128xbf16> to vector<128x128xbf16>
    %cst_92 = arith.constant dense<0.000000e+00> : vector<256x128xf32>
    %73 = tpu.matmul %70, %72, %cst_92 {dimension_numbers = #tpu.dot_dimension_numbers<[1], [0], [0], [1], [0, 0, 1, 1], [], []>} : vector<256x128xbf16>, vector<128x128xbf16>, vector<256x128xf32> -> vector<256x128xf32>
    %74 = arith.addf %68, %73 : vector<256x128xf32>
    %c0_93 = arith.constant 0 : index
    %c0_94 = arith.constant 0 : index
    %75 = vector.load %arg6[%c0_93, %c0_94] : memref<1x128xf32, #tpu.memory_space<vmem>>, vector<1x128xf32>
    %76 = vector.broadcast %75 : vector<1x128xf32> to vector<256x128xf32>
    %77 = arith.mulf %74, %76 : vector<256x128xf32>
    %c0_95 = arith.constant 0 : index
    %c0_96 = arith.constant 0 : index
    %78 = vector.load %arg7[%c0_95, %c0_96] : memref<1x128xf32, #tpu.memory_space<vmem>>, vector<1x128xf32>
    %79 = vector.broadcast %78 : vector<1x128xf32> to vector<256x128xf32>
    %80 = arith.addf %77, %79 : vector<256x128xf32>
    %cst_97 = arith.constant 0.000000e+00 : f32
    %81 = vector.broadcast %cst_97 : f32 to vector<256x128xf32>
    %82 = arith.maximumf %80, %81 : vector<256x128xf32>
    %83 = arith.truncf %82 : vector<256x128xf32> to vector<256x128xbf16>
    %c0_98 = arith.constant 0 : index
    %c0_99 = arith.constant 0 : index
    %84 = vector.load %arg8[%c0_98, %c0_99] : memref<128x128xbf16, #tpu.memory_space<vmem>>, vector<128x128xbf16>
    %cst_100 = arith.constant dense<0.000000e+00> : vector<256x128xf32>
    %85 = tpu.matmul %83, %84, %cst_100 {dimension_numbers = #tpu.dot_dimension_numbers<[1], [0], [0], [1], [0, 0, 1, 1], [], []>} : vector<256x128xbf16>, vector<128x128xbf16>, vector<256x128xf32> -> vector<256x128xf32>
    %c0_101 = arith.constant 0 : index
    %c0_102 = arith.constant 0 : index
    %86 = vector.load %arg9[%c0_101, %c0_102] : memref<1x128xf32, #tpu.memory_space<vmem>>, vector<1x128xf32>
    %87 = vector.broadcast %86 : vector<1x128xf32> to vector<256x128xf32>
    %88 = arith.mulf %85, %87 : vector<256x128xf32>
    %c0_103 = arith.constant 0 : index
    %c0_104 = arith.constant 0 : index
    %89 = vector.load %arg10[%c0_103, %c0_104] : memref<1x128xf32, #tpu.memory_space<vmem>>, vector<1x128xf32>
    %90 = vector.broadcast %89 : vector<1x128xf32> to vector<256x128xf32>
    %91 = arith.addf %88, %90 : vector<256x128xf32>
    %c0_105 = arith.constant 0 : index
    %c0_106 = arith.constant 0 : index
    %c0_107 = arith.constant 0 : index
    %c0_108 = arith.constant 0 : index
    %92 = vector.load %arg1[%c0_105, %c0_106, %c0_107, %c0_108] : memref<1x16x16x128xf32, #tpu.memory_space<vmem>>, vector<1x16x16x128xf32>
    %93 = vector.shape_cast %92 : vector<1x16x16x128xf32> to vector<256x128xf32>
    %94 = arith.addf %91, %93 : vector<256x128xf32>
    %cst_109 = arith.constant 0.000000e+00 : f32
    %95 = vector.broadcast %cst_109 : f32 to vector<256x128xf32>
    %96 = arith.maximumf %94, %95 : vector<256x128xf32>
    %97 = vector.shape_cast %96 : vector<256x128xf32> to vector<1x16x16x128xf32>
    %c0_110 = arith.constant 0 : index
    %c0_111 = arith.constant 0 : index
    %c0_112 = arith.constant 0 : index
    %c0_113 = arith.constant 0 : index
    %98 = vector.load %arg11[%c0_110, %c0_111, %c0_112, %c0_113] : memref<1x16x16x128xf32, #tpu.memory_space<vmem>>, vector<1x16x16x128xf32>
    tpu.vector_store %arg11[%c0_110, %c0_111, %c0_112, %c0_113], %97 {strides = array<i32>} : memref<1x16x16x128xf32, #tpu.memory_space<vmem>>, vector<1x16x16x128xf32>,
    return
  }
  func.func @transform_0(%arg0: i32) -> (i32, i32, i32, i32) {
    %c0_i32 = arith.constant 0 : i32
    %c0_i32_0 = arith.constant 0 : i32
    %c0_i32_1 = arith.constant 0 : i32
    %c0_i32_2 = arith.constant 0 : i32
    return %arg0, %c0_i32, %c0_i32_0, %c0_i32_1 : i32, i32, i32, i32
  }
  func.func @transform_1(%arg0: i32) -> (i32, i32) {
    %c0_i32 = arith.constant 0 : i32
    %c0_i32_0 = arith.constant 0 : i32
    %c0_i32_1 = arith.constant 0 : i32
    return %c0_i32, %c0_i32_0 : i32, i32
  }
  func.func @transform_2(%arg0: i32) -> (i32, i32) {
    %c0_i32 = arith.constant 0 : i32
    %c0_i32_0 = arith.constant 0 : i32
    %c0_i32_1 = arith.constant 0 : i32
    return %c0_i32, %c0_i32_0 : i32, i32
  }
  func.func @transform_3(%arg0: i32) -> (i32, i32) {
    %c0_i32 = arith.constant 0 : i32
    %c0_i32_0 = arith.constant 0 : i32
    %c0_i32_1 = arith.constant 0 : i32
    return %c0_i32, %c0_i32_0 : i32, i32
  }
  func.func @transform_4(%arg0: i32) -> (i32, i32, i32) {
    %c0_i32 = arith.constant 0 : i32
    %c0_i32_0 = arith.constant 0 : i32
    %c0_i32_1 = arith.constant 0 : i32
    %c0_i32_2 = arith.constant 0 : i32
    return %c0_i32, %c0_i32_0, %c0_i32_1 : i32, i32, i32
  }
  func.func @transform_5(%arg0: i32) -> (i32, i32) {
    %c0_i32 = arith.constant 0 : i32
    %c0_i32_0 = arith.constant 0 : i32
    %c0_i32_1 = arith.constant 0 : i32
    return %c0_i32, %c0_i32_0 : i32, i32
  }
  func.func @transform_6(%arg0: i32) -> (i32, i32) {
    %c0_i32 = arith.constant 0 : i32
    %c0_i32_0 = arith.constant 0 : i32
    %c0_i32_1 = arith.constant 0 : i32
    return %c0_i32, %c0_i32_0 : i32, i32
  }
  func.func @transform_7(%arg0: i32) -> (i32, i32) {
    %c0_i32 = arith.constant 0 : i32
    %c0_i32_0 = arith.constant 0 : i32
    %c0_i32_1 = arith.constant 0 : i32
    return %c0_i32, %c0_i32_0 : i32, i32
  }
  func.func @transform_8(%arg0: i32) -> (i32, i32) {
    %c0_i32 = arith.constant 0 : i32
    %c0_i32_0 = arith.constant 0 : i32
    %c0_i32_1 = arith.constant 0 : i32
    return %c0_i32, %c0_i32_0 : i32, i32
  }
  func.func @transform_9(%arg0: i32) -> (i32, i32) {
    %c0_i32 = arith.constant 0 : i32
    %c0_i32_0 = arith.constant 0 : i32
    %c0_i32_1 = arith.constant 0 : i32
    return %c0_i32, %c0_i32_0 : i32, i32
  }
  func.func @transform_10(%arg0: i32) -> (i32, i32, i32, i32) {
    %c0_i32 = arith.constant 0 : i32
    %c0_i32_0 = arith.constant 0 : i32
    %c0_i32_1 = arith.constant 0 : i32
    %c0_i32_2 = arith.constant 0 : i32
    return %arg0, %c0_i32, %c0_i32_0, %c0_i32_1 : i32, i32, i32, i32
  }
}

</mosaic_0001>

<llo_original>
// kernel: tpu_custom_call.1
$region0: #{tpu_custom_call.1}
  #allocation0 [shape = 'u32[]', space=smem, size = 0x4, offset = 0x4, fixed_abs, tag = 'smem constant byte address 0x4 - core index']
  #allocation1 [shape = 'u32[144,128]{1,0:T(1,128)}', space=vmem, size = 0x12000, scoped, tag = 'internal scratch']
  #allocation2 [shape = 'bf16[1,18,32,128]{3,2,1,0:T(16,128)(2,1)}', space=vmem, size = 0x24000, scoped, tag = 'scratch operand']
  %s0 = inlined_call_operand.hbm [shape: f32[2,16,16,128], index: 0, kind: input, shape index: {}]
  %s1 = inlined_call_operand.hbm [shape: bf16[128,128], index: 1, kind: input, shape index: {}]
  %s2 = inlined_call_operand.vmem [shape: f32[1,128], index: 2, kind: input, shape index: {}]
  %s3 = inlined_call_operand.vmem [shape: f32[1,128], index: 3, kind: input, shape index: {}]
  %s4 = inlined_call_operand.hbm [shape: bf16[9,128,128], index: 4, kind: input, shape index: {}]
  %s5 = inlined_call_operand.vmem [shape: f32[1,128], index: 5, kind: input, shape index: {}]
  %s6 = inlined_call_operand.vmem [shape: f32[1,128], index: 6, kind: input, shape index: {}]
  %s7 = inlined_call_operand.hbm [shape: bf16[128,128], index: 7, kind: input, shape index: {}]
  %s8 = inlined_call_operand.vmem [shape: f32[1,128], index: 8, kind: input, shape index: {}]
  %s9 = inlined_call_operand.vmem [shape: f32[1,128], index: 9, kind: input, shape index: {}]
  %s10 = inlined_call_operand.hbm [shape: f32[2,16,16,128], index: 10, kind: output, shape index: {}]
  %s11 = sld [smem:[#allocation0]]
  $region89: #{tpu_custom_call.1} parent=0
    _
  %s13 = ssub.s32 1, %s11
  %s14 = scalar_select 0, %s13, %s11
  $region1: #{tpu_custom_call.1} parent=0
    #allocation3 [shape = 'u8[262144]{0}', space=vmem, size = 0x40000, scoped, tag = 'input window, operand 0']
    #allocation4 [shape = 's32[2]{0}', space=sflag, size = 0x8, scoped, tag = 'scoped memory for tpu_custom_call.1']
    #allocation5 [shape = 's32[2]{0}', space=sflag, size = 0x8, scoped, tag = 'scoped memory for tpu_custom_call.1']
    #allocation6 [shape = 'u8[32768]{0}', space=vmem, size = 0x8000, scoped, tag = 'input window, operand 1, single buffered']
    #allocation7 [shape = 's32[1]{0}', space=sflag, size = 0x4, scoped, tag = 'scoped memory for tpu_custom_call.1']
    #allocation8 [shape = 'u8[294912]{0}', space=vmem, size = 0x48000, scoped, tag = 'input window, operand 4, single buffered']
    #allocation9 [shape = 'u8[32768]{0}', space=vmem, size = 0x8000, scoped, tag = 'input window, operand 7, single buffered']
    #allocation10 [shape = 's32[1]{0}', space=sflag, size = 0x4, scoped, tag = 'scoped memory for tpu_custom_call.1']
    #allocation11 [shape = 'u8[262144]{0}', space=vmem, size = 0x40000, scoped, tag = 'output window, operand 0']
    %15 = vsyncpa [#allocation4], 0
    %s16 = scalar_lea.sflag [#allocation4], 1
    %17 = vsyncpa %s16, 0
    %18 = vsyncpa [#allocation7], 0
    %19 = vsyncpa [#allocation10], 0
    %20 = vsyncpa [#allocation5], 0
    %s21 = scalar_lea.sflag [#allocation5], 1
    %22 = vsyncpa %s21, 0
    loop: start=0, step=1, limit=4
    $region2: #{tpu_custom_call.1} parent=1 // loop_pre_header
      _
    $region3: #{tpu_custom_call.1} parent=1 // loop_header
      %s24 = sphi 0, %s28
      %p25 = scmp.ge.s32.totalorder %s24, 4
      %s34 = sphi 0, %s36
      %s37 = sphi 0, %s34
      %s38 = sphi 0, %s37
      %s54 = sphi 0, %s38
      %s58 = sphi 0, %s58
      %s60 = sphi 0, %s58
      %s61 = sphi 0, %s60
      %s75 = sphi 0, %s61
      %s79 = sphi 0, %s79
      %s81 = sphi 0, %s79
      %s82 = sphi 0, %s81
      %s96 = sphi 0, %s82
      %s100 = sphi 0, %s100
      %s102 = sphi 0, %s100
      %s103 = sphi 0, %s102
      %s117 = sphi 0, %s103
      %s121 = sphi 0, %s121
      %s123 = sphi 0, %s121
      %s124 = sphi 0, %s123
      %s138 = sphi 0, %s124
      %s142 = sphi 0, %s142
      %s144 = sphi 0, %s142
      %s145 = sphi 0, %s144
      %s159 = sphi 0, %s145
      %s163 = sphi 0, %s163
      %s165 = sphi 0, %s163
      %s166 = sphi 0, %s165
      %s180 = sphi 0, %s166
      %s184 = sphi 0, %s184
      %s186 = sphi 0, %s184
      %s187 = sphi 0, %s186
      %s201 = sphi 0, %s187
      %s205 = sphi 0, %s205
      %s207 = sphi 0, %s205
      %s208 = sphi 0, %s207
      %s222 = sphi 0, %s208
      %s226 = sphi 0, %s226
      %s228 = sphi 0, %s226
      %s229 = sphi 0, %s228
      %s243 = sphi 0, %s229
      %s249 = sphi 0, %s251
      %s252 = sphi 0, %s249
      %s253 = sphi 0, %s252
      %s269 = sphi 0, %s253
    $region4: #{tpu_custom_call.1} parent=1 // loop_header_branch
      %27 = sbr.rel (%p25) target = $region8
    $region5: #{tpu_custom_call.1} parent=1 // loop_body
      %s29 = ssub.s32 %s24, 1
      %s30 = ssub.s32 %s24, 2
      %s31 = sadd.s32 %s24, 1
      %s32 = ssub.s32 %s24, %s31
      %p33 = scmp.eq.s32.totalorder %s32, 0
      %s35 = sadd.s32 %s34, 1
      %s36 = scalar_select %p33, %s34, %s35
      %p39 = pneg %p33
      %p40 = scmp.eq.s32.totalorder %s24, 1
      %p41 = por %p39, %p40
      %p42 = scmp.ne.s32.totalorder %s34, %s37
      %p43 = scmp.eq.s32.totalorder %s24, 0
      %p44 = por %p42, %p43
      %p45 = scmp.ne.s32.totalorder %s34, %s37
      %p46 = scmp.eq.s32.totalorder %s29, 1
      %p47 = por %p45, %p46
      %p48 = scmp.ne.s32.totalorder %s37, %s38
      %p49 = scmp.eq.s32.totalorder %s29, 0
      %p50 = por %p48, %p49
      %p51 = scmp.ne.s32.totalorder %s37, %s38
      %p52 = scmp.eq.s32.totalorder %s30, 1
      %p53 = por %p51, %p52
      %p55 = scmp.ne.s32.totalorder %s38, %s54
      %p56 = scmp.eq.s32.totalorder %s30, 0
      %p57 = por %p55, %p56
      %s59 = sadd.s32 %s58, 1
      %p62 = scmp.eq.s32.totalorder %s24, 1
      %p63 = scmp.ne.s32.totalorder %s58, %s60
      %p64 = scmp.eq.s32.totalorder %s24, 0
      %p65 = por %p63, %p64
      %p66 = scmp.ne.s32.totalorder %s58, %s60
      %p67 = scmp.eq.s32.totalorder %s29, 1
      %p68 = por %p66, %p67
      %p69 = scmp.ne.s32.totalorder %s60, %s61
      %p70 = scmp.eq.s32.totalorder %s29, 0
      %p71 = por %p69, %p70
      %p72 = scmp.ne.s32.totalorder %s60, %s61
      %p73 = scmp.eq.s32.totalorder %s30, 1
      %p74 = por %p72, %p73
      %p76 = scmp.ne.s32.totalorder %s61, %s75
      %p77 = scmp.eq.s32.totalorder %s30, 0
      %p78 = por %p76, %p77
      %s80 = sadd.s32 %s79, 1
      %p83 = scmp.eq.s32.totalorder %s24, 1
      %p84 = scmp.ne.s32.totalorder %s79, %s81
      %p85 = scmp.eq.s32.totalorder %s24, 0
      %p86 = por %p84, %p85
      %p87 = scmp.ne.s32.totalorder %s79, %s81
      %p88 = scmp.eq.s32.totalorder %s29, 1
      %p89 = por %p87, %p88
      %p90 = scmp.ne.s32.totalorder %s81, %s82
      %p91 = scmp.eq.s32.totalorder %s29, 0
      %p92 = por %p90, %p91
      %p93 = scmp.ne.s32.totalorder %s81, %s82
      %p94 = scmp.eq.s32.totalorder %s30, 1
      %p95 = por %p93, %p94
      %p97 = scmp.ne.s32.totalorder %s82, %s96
      %p98 = scmp.eq.s32.totalorder %s30, 0
      %p99 = por %p97, %p98
      %s101 = sadd.s32 %s100, 1
      %p104 = scmp.eq.s32.totalorder %s24, 1
      %p105 = scmp.ne.s32.totalorder %s100, %s102
      %p106 = scmp.eq.s32.totalorder %s24, 0
      %p107 = por %p105, %p106
      %p108 = scmp.ne.s32.totalorder %s100, %s102
      %p109 = scmp.eq.s32.totalorder %s29, 1
      %p110 = por %p108, %p109
      %p111 = scmp.ne.s32.totalorder %s102, %s103
      %p112 = scmp.eq.s32.totalorder %s29, 0
      %p113 = por %p111, %p112
      %p114 = scmp.ne.s32.totalorder %s102, %s103
      %p115 = scmp.eq.s32.totalorder %s30, 1
      %p116 = por %p114, %p115
      %p118 = scmp.ne.s32.totalorder %s103, %s117
      %p119 = scmp.eq.s32.totalorder %s30, 0
      %p120 = por %p118, %p119
      %s122 = sadd.s32 %s121, 1
      %p125 = scmp.eq.s32.totalorder %s24, 1
      %p126 = scmp.ne.s32.totalorder %s121, %s123
      %p127 = scmp.eq.s32.totalorder %s24, 0
      %p128 = por %p126, %p127
      %p129 = scmp.ne.s32.totalorder %s121, %s123
      %p130 = scmp.eq.s32.totalorder %s29, 1
      %p131 = por %p129, %p130
      %p132 = scmp.ne.s32.totalorder %s123, %s124
      %p133 = scmp.eq.s32.totalorder %s29, 0
      %p134 = por %p132, %p133
      %p135 = scmp.ne.s32.totalorder %s123, %s124
      %p136 = scmp.eq.s32.totalorder %s30, 1
      %p137 = por %p135, %p136
      %p139 = scmp.ne.s32.totalorder %s124, %s138
      %p140 = scmp.eq.s32.totalorder %s30, 0
      %p141 = por %p139, %p140
      %s143 = sadd.s32 %s142, 1
      %p146 = scmp.eq.s32.totalorder %s24, 1
      %p147 = scmp.ne.s32.totalorder %s142, %s144
      %p148 = scmp.eq.s32.totalorder %s24, 0
      %p149 = por %p147, %p148
      %p150 = scmp.ne.s32.totalorder %s142, %s144
      %p151 = scmp.eq.s32.totalorder %s29, 1
      %p152 = por %p150, %p151
      %p153 = scmp.ne.s32.totalorder %s144, %s145
      %p154 = scmp.eq.s32.totalorder %s29, 0
      %p155 = por %p153, %p154
      %p156 = scmp.ne.s32.totalorder %s144, %s145
      %p157 = scmp.eq.s32.totalorder %s30, 1
      %p158 = por %p156, %p157
      %p160 = scmp.ne.s32.totalorder %s145, %s159
      %p161 = scmp.eq.s32.totalorder %s30, 0
      %p162 = por %p160, %p161
      %s164 = sadd.s32 %s163, 1
      %p167 = scmp.eq.s32.totalorder %s24, 1
      %p168 = scmp.ne.s32.totalorder %s163, %s165
      %p169 = scmp.eq.s32.totalorder %s24, 0
      %p170 = por %p168, %p169
      %p171 = scmp.ne.s32.totalorder %s163, %s165
      %p172 = scmp.eq.s32.totalorder %s29, 1
      %p173 = por %p171, %p172
      %p174 = scmp.ne.s32.totalorder %s165, %s166
      %p175 = scmp.eq.s32.totalorder %s29, 0
      %p176 = por %p174, %p175
      %p177 = scmp.ne.s32.totalorder %s165, %s166
      %p178 = scmp.eq.s32.totalorder %s30, 1
      %p179 = por %p177, %p178
      %p181 = scmp.ne.s32.totalorder %s166, %s180
      %p182 = scmp.eq.s32.totalorder %s30, 0
      %p183 = por %p181, %p182
      %s185 = sadd.s32 %s184, 1
      %p188 = scmp.eq.s32.totalorder %s24, 1
      %p189 = scmp.ne.s32.totalorder %s184, %s186
      %p190 = scmp.eq.s32.totalorder %s24, 0
      %p191 = por %p189, %p190
      %p192 = scmp.ne.s32.totalorder %s184, %s186
      %p193 = scmp.eq.s32.totalorder %s29, 1
      %p194 = por %p192, %p193
      %p195 = scmp.ne.s32.totalorder %s186, %s187
      %p196 = scmp.eq.s32.totalorder %s29, 0
      %p197 = por %p195, %p196
      %p198 = scmp.ne.s32.totalorder %s186, %s187
      %p199 = scmp.eq.s32.totalorder %s30, 1
      %p200 = por %p198, %p199
      %p202 = scmp.ne.s32.totalorder %s187, %s201
      %p203 = scmp.eq.s32.totalorder %s30, 0
      %p204 = por %p202, %p203
      %s206 = sadd.s32 %s205, 1
      %p209 = scmp.eq.s32.totalorder %s24, 1
      %p210 = scmp.ne.s32.totalorder %s205, %s207
      %p211 = scmp.eq.s32.totalorder %s24, 0
      %p212 = por %p210, %p211
      %p213 = scmp.ne.s32.totalorder %s205, %s207
      %p214 = scmp.eq.s32.totalorder %s29, 1
      %p215 = por %p213, %p214
      %p216 = scmp.ne.s32.totalorder %s207, %s208
      %p217 = scmp.eq.s32.totalorder %s29, 0
      %p218 = por %p216, %p217
      %p219 = scmp.ne.s32.totalorder %s207, %s208
      %p220 = scmp.eq.s32.totalorder %s30, 1
      %p221 = por %p219, %p220
      %p223 = scmp.ne.s32.totalorder %s208, %s222
      %p224 = scmp.eq.s32.totalorder %s30, 0
      %p225 = por %p223, %p224
      %s227 = sadd.s32 %s226, 1
      %p230 = scmp.eq.s32.totalorder %s24, 1
      %p231 = scmp.ne.s32.totalorder %s226, %s228
      %p232 = scmp.eq.s32.totalorder %s24, 0
      %p233 = por %p231, %p232
      %p234 = scmp.ne.s32.totalorder %s226, %s228
      %p235 = scmp.eq.s32.totalorder %s29, 1
      %p236 = por %p234, %p235
      %p237 = scmp.ne.s32.totalorder %s228, %s229
      %p238 = scmp.eq.s32.totalorder %s29, 0
      %p239 = por %p237, %p238
      %p240 = scmp.ne.s32.totalorder %s228, %s229
      %p241 = scmp.eq.s32.totalorder %s30, 1
      %p242 = por %p240, %p241
      %p244 = scmp.ne.s32.totalorder %s229, %s243
      %p245 = scmp.eq.s32.totalorder %s30, 0
      %p246 = por %p244, %p245
      %s247 = ssub.s32 %s24, %s31
      %p248 = scmp.eq.s32.totalorder %s247, 0
      %s250 = sadd.s32 %s249, 1
      %s251 = scalar_select %p248, %s249, %s250
      %p254 = pneg %p248
      %p255 = scmp.eq.s32.totalorder %s24, 1
      %p256 = por %p254, %p255
      %p257 = scmp.ne.s32.totalorder %s249, %s252
      %p258 = scmp.eq.s32.totalorder %s24, 0
      %p259 = por %p257, %p258
      %p260 = scmp.ne.s32.totalorder %s249, %s252
      %p261 = scmp.eq.s32.totalorder %s29, 1
      %p262 = por %p260, %p261
      %p263 = scmp.ne.s32.totalorder %s252, %s253
      %p264 = scmp.eq.s32.totalorder %s29, 0
      %p265 = por %p263, %p264
      %p266 = scmp.ne.s32.totalorder %s252, %s253
      %p267 = scmp.eq.s32.totalorder %s30, 1
      %p268 = por %p266, %p267
      %p270 = scmp.ne.s32.totalorder %s253, %s269
      %p271 = scmp.eq.s32.totalorder %s30, 0
      %p272 = por %p270, %p271
      %p273 = scmp.le.s32.totalorder 1, %s24
      %p274 = scmp.lt.s32.totalorder %s24, 3
      %p275 = pnand %p273, %p274
      %p276 = pneg %p275
      // Predicated region
      $region9: #{tpu_custom_call.1} parent=5 // pred_check
        _
      $region10: #{tpu_custom_call.1} parent=5 // pred_check_branch
        %278 = sbr.rel (%p275) target = $region12
      $region11: #{tpu_custom_call.1} parent=5 // pred_region
        %s279 = ssub.s32 %s24, 1
        // Predicated region
        $region13: #{tpu_custom_call.1} parent=11 // pred_check
          %p280 = pneg %p71
        $region14: #{tpu_custom_call.1} parent=11 // pred_check_branch
          %282 = sbr.rel (%p280) target = $region16
        $region15: #{tpu_custom_call.1} parent=11 // pred_region
          %s284 = ssub.s32 1024, 1024
          %285 = vsyncadd [#allocation7], %s284
          %s286 = sshll.u32 [#allocation6], 4
          %s287 = int_to_ptr.vmem [resolvable:$true] %s286
          %292 = dma.hbm_to_vmem [thread:$0]  %s1, 1024, %s287, [#allocation7], 64, 64, 4
        $region16: #{tpu_custom_call.1} parent=11 // pred_fallthru
          _
        // Predicated region
        $region17: #{tpu_custom_call.1} parent=11 // pred_check
          %p293 = pneg %p92
        $region18: #{tpu_custom_call.1} parent=11 // pred_check_branch
          %295 = sbr.rel (%p293) target = $region20
        $region19: #{tpu_custom_call.1} parent=11 // pred_region
          _
        $region20: #{tpu_custom_call.1} parent=11 // pred_fallthru
          _
        // Predicated region
        $region21: #{tpu_custom_call.1} parent=11 // pred_check
          %p296 = pneg %p113
        $region22: #{tpu_custom_call.1} parent=11 // pred_check_branch
          %298 = sbr.rel (%p296) target = $region24
        $region23: #{tpu_custom_call.1} parent=11 // pred_region
          _
        $region24: #{tpu_custom_call.1} parent=11 // pred_fallthru
          _
        // Predicated region
        $region25: #{tpu_custom_call.1} parent=11 // pred_check
          %p299 = pneg %p134
        $region26: #{tpu_custom_call.1} parent=11 // pred_check_branch
          %301 = sbr.rel (%p299) target = $region28
        $region27: #{tpu_custom_call.1} parent=11 // pred_region
          %s303 = ssub.s32 9216, 9216
          %304 = vsyncadd [#allocation7], %s303
          %s305 = sshll.u32 [#allocation8], 4
          %s306 = int_to_ptr.vmem [resolvable:$true] %s305
          %311 = dma.hbm_to_vmem [thread:$0]  %s4, 9216, %s306, [#allocation7], 64, 64, 4
        $region28: #{tpu_custom_call.1} parent=11 // pred_fallthru
          _
        // Predicated region
        $region29: #{tpu_custom_call.1} parent=11 // pred_check
          %p312 = pneg %p155
        $region30: #{tpu_custom_call.1} parent=11 // pred_check_branch
          %314 = sbr.rel (%p312) target = $region32
        $region31: #{tpu_custom_call.1} parent=11 // pred_region
          _
        $region32: #{tpu_custom_call.1} parent=11 // pred_fallthru
          _
        // Predicated region
        $region33: #{tpu_custom_call.1} parent=11 // pred_check
          %p315 = pneg %p176
        $region34: #{tpu_custom_call.1} parent=11 // pred_check_branch
          %317 = sbr.rel (%p315) target = $region36
        $region35: #{tpu_custom_call.1} parent=11 // pred_region
          _
        $region36: #{tpu_custom_call.1} parent=11 // pred_fallthru
          _
        // Predicated region
        $region37: #{tpu_custom_call.1} parent=11 // pred_check
          %p318 = pneg %p197
        $region38: #{tpu_custom_call.1} parent=11 // pred_check_branch
          %320 = sbr.rel (%p318) target = $region40
        $region39: #{tpu_custom_call.1} parent=11 // pred_region
          %s322 = ssub.s32 1024, 1024
          %323 = vsyncadd [#allocation10], %s322
          %s324 = sshll.u32 [#allocation9], 4
          %s325 = int_to_ptr.vmem [resolvable:$true] %s324
          %330 = dma.hbm_to_vmem [thread:$0]  %s7, 1024, %s325, [#allocation10], 64, 64, 4
        $region40: #{tpu_custom_call.1} parent=11 // pred_fallthru
          _
        // Predicated region
        $region41: #{tpu_custom_call.1} parent=11 // pred_check
          %p331 = pneg %p218
        $region42: #{tpu_custom_call.1} parent=11 // pred_check_branch
          %333 = sbr.rel (%p331) target = $region44
        $region43: #{tpu_custom_call.1} parent=11 // pred_region
          _
        $region44: #{tpu_custom_call.1} parent=11 // pred_fallthru
          _
        // Predicated region
        $region45: #{tpu_custom_call.1} parent=11 // pred_check
          %p334 = pneg %p239
        $region46: #{tpu_custom_call.1} parent=11 // pred_check_branch
          %336 = sbr.rel (%p334) target = $region48
        $region47: #{tpu_custom_call.1} parent=11 // pred_region
          _
        $region48: #{tpu_custom_call.1} parent=11 // pred_fallthru
          _
      $region12: #{tpu_custom_call.1} parent=5 // pred_fallthru
        _
      %p337 = scmp.lt.s32.totalorder %s24, 2
      // Predicated region
      $region49: #{tpu_custom_call.1} parent=5 // pred_check
        %p338 = pneg %p337
      $region50: #{tpu_custom_call.1} parent=5 // pred_check_branch
        %340 = sbr.rel (%p338) target = $region52
      $region51: #{tpu_custom_call.1} parent=5 // pred_region
        // Predicated region
        $region53: #{tpu_custom_call.1} parent=51 // pred_check
          %p341 = pneg %p44
        $region54: #{tpu_custom_call.1} parent=51 // pred_check_branch
          %343 = sbr.rel (%p341) target = $region56
        $region55: #{tpu_custom_call.1} parent=51 // pred_region
          %s344 = sand.u32 %s34, 1
          %s345 = scalar_lea.sflag [#allocation4], %s344
          %s346 = sand.u32 %s34, 1
          %s347 = smul.addr %s346, 256
          %s348 = scalar_lea.vmem [#allocation3], %s347
          %s350 = ssub.s32 4096, 4096
          %351 = vsyncadd %s345, %s350
          %s352 = smul.addr %s24, 32
          %s353 = smul.addr %s352, 128
          %s354 = scalar_lea.hbm %s0, %s353
          %s355 = sshll.u32 %s348, 4
          %s356 = int_to_ptr.vmem [resolvable:$true] %s355
          %361 = dma.hbm_to_vmem [thread:$0]  %s354, 4096, %s356, %s345, 128, 128, 8
        $region56: #{tpu_custom_call.1} parent=51 // pred_fallthru
          _
      $region52: #{tpu_custom_call.1} parent=5 // pred_fallthru
        _
      %p362 = scmp.le.s32.totalorder 1, %s24
      %p363 = scmp.lt.s32.totalorder %s24, 3
      %p364 = pnand %p362, %p363
      %p365 = pneg %p364
      // Predicated region
      $region57: #{tpu_custom_call.1} parent=5 // pred_check
        _
      $region58: #{tpu_custom_call.1} parent=5 // pred_check_branch
        %367 = sbr.rel (%p364) target = $region60
      $region59: #{tpu_custom_call.1} parent=5 // pred_region
        %s368 = ssub.s32 %s24, 1
        %s369 = sand.u32 %s37, 1
        %s370 = scalar_lea.sflag [#allocation4], %s369
        %s371 = sand.u32 %s37, 1
        %s372 = smul.addr %s371, 256
        %s373 = scalar_lea.vmem [#allocation3], %s372
        // Predicated region
        $region61: #{tpu_custom_call.1} parent=59 // pred_check
          %p374 = pneg %p50
        $region62: #{tpu_custom_call.1} parent=59 // pred_check_branch
          %376 = sbr.rel (%p374) target = $region64
        $region63: #{tpu_custom_call.1} parent=59 // pred_region
          %377 = dma.done %s370, 4096
        $region64: #{tpu_custom_call.1} parent=59 // pred_fallthru
          _
        // Predicated region
        $region65: #{tpu_custom_call.1} parent=59 // pred_check
          %p378 = pneg %p71
        $region66: #{tpu_custom_call.1} parent=59 // pred_check_branch
          %380 = sbr.rel (%p378) target = $region68
        $region67: #{tpu_custom_call.1} parent=59 // pred_region
          %381 = dma.done [#allocation7], 1024
        $region68: #{tpu_custom_call.1} parent=59 // pred_fallthru
          _
        // Predicated region
        $region69: #{tpu_custom_call.1} parent=59 // pred_check
          %p382 = pneg %p134
        $region70: #{tpu_custom_call.1} parent=59 // pred_check_branch
          %384 = sbr.rel (%p382) target = $region72
        $region71: #{tpu_custom_call.1} parent=59 // pred_region
          %385 = dma.done [#allocation7], 9216
        $region72: #{tpu_custom_call.1} parent=59 // pred_fallthru
          _
        // Predicated region
        $region73: #{tpu_custom_call.1} parent=59 // pred_check
          %p386 = pneg %p197
        $region74: #{tpu_custom_call.1} parent=59 // pred_check_branch
          %388 = sbr.rel (%p386) target = $region76
        $region75: #{tpu_custom_call.1} parent=59 // pred_region
          %389 = dma.done [#allocation10], 1024
        $region76: #{tpu_custom_call.1} parent=59 // pred_fallthru
          _
        %s390 = sand.u32 %s37, 1
        %s391 = scalar_lea.sflag [#allocation4], %s390
        %s392 = sand.u32 %s37, 1
        %s393 = smul.addr %s392, 256
        %s394 = scalar_lea.vmem [#allocation3], %s393
        %p395 = pneg %p50
        %p396 = pneg %p47
        %p397 = pneg %p71
        %p398 = pneg %p68
        %p399 = pneg %p92
        %p400 = pneg %p89
        %p401 = pneg %p113
        %p402 = pneg %p110
        %p403 = pneg %p134
        %p404 = pneg %p131
        %p405 = pneg %p155
        %p406 = pneg %p152
        %p407 = pneg %p176
        %p408 = pneg %p173
        %p409 = pneg %p197
        %p410 = pneg %p194
        %p411 = pneg %p218
        %p412 = pneg %p215
        %p413 = pneg %p239
        %p414 = pneg %p236
        %p415 = pneg %p265
        %p416 = pneg %p262
        %s417 = sand.u32 %s252, 1
        %s418 = scalar_lea.sflag [#allocation5], %s417
        %s419 = sand.u32 %s252, 1
        %s420 = smul.addr %s419, 256
        %s421 = scalar_lea.vmem [#allocation11], %s420
        %v423 = vld [vmem:[%s373] sm:$0xff]
        %v424 = vld [vmem:[%s373 + $0x8] sm:$0xff]
        %v425 = vld [vmem:[%s373 + $0x10] sm:$0xff]
        %v426 = vld [vmem:[%s373 + $0x18] sm:$0xff]
        %v427 = vld [vmem:[%s373 + $0x20] sm:$0xff]
        %v428 = vld [vmem:[%s373 + $0x28] sm:$0xff]
        %v429 = vld [vmem:[%s373 + $0x30] sm:$0xff]
        %v430 = vld [vmem:[%s373 + $0x38] sm:$0xff]
        %v431 = vld [vmem:[%s373 + $0x40] sm:$0xff]
        %v432 = vld [vmem:[%s373 + $0x48] sm:$0xff]
        %v433 = vld [vmem:[%s373 + $0x50] sm:$0xff]
        %v434 = vld [vmem:[%s373 + $0x58] sm:$0xff]
        %v435 = vld [vmem:[%s373 + $0x60] sm:$0xff]
        %v436 = vld [vmem:[%s373 + $0x68] sm:$0xff]
        %v437 = vld [vmem:[%s373 + $0x70] sm:$0xff]
        %v438 = vld [vmem:[%s373 + $0x78] sm:$0xff]
        %v439 = vld [vmem:[%s373 + $0x80] sm:$0xff]
        %v440 = vld [vmem:[%s373 + $0x88] sm:$0xff]
        %v441 = vld [vmem:[%s373 + $0x90] sm:$0xff]
        %v442 = vld [vmem:[%s373 + $0x98] sm:$0xff]
        %v443 = vld [vmem:[%s373 + $0xa0] sm:$0xff]
        %v444 = vld [vmem:[%s373 + $0xa8] sm:$0xff]
        %v445 = vld [vmem:[%s373 + $0xb0] sm:$0xff]
        %v446 = vld [vmem:[%s373 + $0xb8] sm:$0xff]
        %v447 = vld [vmem:[%s373 + $0xc0] sm:$0xff]
        %v448 = vld [vmem:[%s373 + $0xc8] sm:$0xff]
        %v449 = vld [vmem:[%s373 + $0xd0] sm:$0xff]
        %v450 = vld [vmem:[%s373 + $0xd8] sm:$0xff]
        %v451 = vld [vmem:[%s373 + $0xe0] sm:$0xff]
        %v452 = vld [vmem:[%s373 + $0xe8] sm:$0xff]
        %v453 = vld [vmem:[%s373 + $0xf0] sm:$0xff]
        %v454 = vld [vmem:[%s373 + $0xf8] sm:$0xff]
        %v455 = vpack.c.bf16 %v424, %v423
        %v456 = vpack.c.bf16 %v426, %v425
        %v457 = vpack.c.bf16 %v428, %v427
        %v458 = vpack.c.bf16 %v430, %v429
        %v459 = vpack.c.bf16 %v432, %v431
        %v460 = vpack.c.bf16 %v434, %v433
        %v461 = vpack.c.bf16 %v436, %v435
        %v462 = vpack.c.bf16 %v438, %v437
        %v463 = vpack.c.bf16 %v440, %v439
        %v464 = vpack.c.bf16 %v442, %v441
        %v465 = vpack.c.bf16 %v444, %v443
        %v466 = vpack.c.bf16 %v446, %v445
        %v467 = vpack.c.bf16 %v448, %v447
        %v468 = vpack.c.bf16 %v450, %v449
        %v469 = vpack.c.bf16 %v452, %v451
        %v470 = vpack.c.bf16 %v454, %v453
        %v471 = vld [vmem:[#allocation6] sm:$0xf]
        %v472 = vld [vmem:[#allocation6 + $0x4] sm:$0xf]
        %v473 = vld [vmem:[#allocation6 + $0x8] sm:$0xf]
        %v474 = vld [vmem:[#allocation6 + $0xc] sm:$0xf]
        %v475 = vld [vmem:[#allocation6 + $0x10] sm:$0xf]
        %v476 = vld [vmem:[#allocation6 + $0x14] sm:$0xf]
        %v477 = vld [vmem:[#allocation6 + $0x18] sm:$0xf]
        %v478 = vld [vmem:[#allocation6 + $0x1c] sm:$0xf]
        %v479 = vld [vmem:[#allocation6 + $0x20] sm:$0xf]
        %v480 = vld [vmem:[#allocation6 + $0x24] sm:$0xf]
        %v481 = vld [vmem:[#allocation6 + $0x28] sm:$0xf]
        %v482 = vld [vmem:[#allocation6 + $0x2c] sm:$0xf]
        %v483 = vld [vmem:[#allocation6 + $0x30] sm:$0xf]
        %v484 = vld [vmem:[#allocation6 + $0x34] sm:$0xf]
        %v485 = vld [vmem:[#allocation6 + $0x38] sm:$0xf]
        %v486 = vld [vmem:[#allocation6 + $0x3c] sm:$0xf]
        %v503 = vunpack.c.l.b16 %v471
        %v504 = vunpack.c.l.b16 %v472
        %v505 = vunpack.c.l.b16 %v473
        %v506 = vunpack.c.l.b16 %v474
        %v507 = vunpack.c.l.b16 %v475
        %v508 = vunpack.c.l.b16 %v476
        %v509 = vunpack.c.l.b16 %v477
        %v510 = vunpack.c.l.b16 %v478
        %v511 = vunpack.c.l.b16 %v479
        %v512 = vunpack.c.l.b16 %v480
        %v513 = vunpack.c.l.b16 %v481
        %v514 = vunpack.c.l.b16 %v482
        %v515 = vunpack.c.l.b16 %v483
        %v516 = vunpack.c.l.b16 %v484
        %v517 = vunpack.c.l.b16 %v485
        %v518 = vunpack.c.l.b16 %v486
        %v519 = vpack.c.b16 %v504, %v503
        %v520 = vpack.c.b16 %v506, %v505
        %v521 = vpack.c.b16 %v508, %v507
        %v522 = vpack.c.b16 %v510, %v509
        %v523 = vpack.c.b16 %v512, %v511
        %v524 = vpack.c.b16 %v514, %v513
        %v525 = vpack.c.b16 %v516, %v515
        %v526 = vpack.c.b16 %v518, %v517
        %535 = vmatprep.subr.bf16.mxu0 0
        %536 = vmatpush1.bf16.msra.mxu0 %v519
        %537 = vmatprep.subr.bf16.mxu0 0
        %538 = vmatpush1.bf16.msra.mxu0 %v520
        %539 = vmatprep.subr.bf16.mxu0 0
        %540 = vmatpush1.bf16.msra.mxu0 %v521
        %541 = vmatprep.subr.bf16.mxu0 0
        %542 = vmatpush1.bf16.msra.mxu0 %v522
        %543 = vmatprep.subr.bf16.mxu0 0
        %544 = vmatpush1.bf16.msra.mxu0 %v523
        %545 = vmatprep.subr.bf16.mxu0 0
        %546 = vmatpush1.bf16.msra.mxu0 %v524
        %547 = vmatprep.subr.bf16.mxu0 0
        %548 = vmatpush1.bf16.msra.mxu0 %v525
        %549 = vmatprep.subr.bf16.mxu0 0
        %550 = vmatpush1.bf16.msra.mxu0 %v526
        %551 = vmatprep.subr.bf16.mxu0 0
        %552 = vmatpush1.bf16.msra.mxu0 0
        %553 = vmatprep.subr.bf16.mxu0 0
        %554 = vmatpush1.bf16.msra.mxu0 0
        %555 = vmatprep.subr.bf16.mxu0 0
        %556 = vmatpush1.bf16.msra.mxu0 0
        %557 = vmatprep.subr.bf16.mxu0 0
        %558 = vmatpush1.bf16.msra.mxu0 0
        %559 = vmatprep.subr.bf16.mxu0 0
        %560 = vmatpush1.bf16.msra.mxu0 0
        %561 = vmatprep.subr.bf16.mxu0 0
        %562 = vmatpush1.bf16.msra.mxu0 0
        %563 = vmatprep.subr.bf16.mxu0 0
        %564 = vmatpush1.bf16.msra.mxu0 0
        %565 = vmatprep.subr.bf16.mxu0 0
        %566 = vmatpush1.bf16.msra.mxu0 0
        %567 = vmatprep.mubr.bf16.mxu0 0
        %568 = vmatmul.mubr.bf16.gmra.mrb[0].mxu0 %v455
        %v569 = vpop.f32.mrb[0].mxu0
        %v570 = vadd.f32 0.0, %v569
        %v571 = vpop.f32.mrb[0].mxu0
        %v572 = vpop.f32.mrb[0].mxu0
        %v573 = vadd.f32 0.0, %v572
        %v574 = vpop.f32.mrb[0].mxu0
        %575 = vmatprep.mubr.bf16.mxu0 0
        %576 = vmatmul.mubr.bf16.gmra.mrb[0].mxu0 %v456
        %v577 = vpop.f32.mrb[0].mxu0
        %v578 = vadd.f32 0.0, %v577
        %v579 = vpop.f32.mrb[0].mxu0
        %v580 = vpop.f32.mrb[0].mxu0
        %v581 = vadd.f32 0.0, %v580
        %v582 = vpop.f32.mrb[0].mxu0
        %583 = vmatprep.mubr.bf16.mxu0 0
        %584 = vmatmul.mubr.bf16.gmra.mrb[0].mxu0 %v457
        %v585 = vpop.f32.mrb[0].mxu0
        %v586 = vadd.f32 0.0, %v585
        %v587 = vpop.f32.mrb[0].mxu0
        %v588 = vpop.f32.mrb[0].mxu0
        %v589 = vadd.f32 0.0, %v588
        %v590 = vpop.f32.mrb[0].mxu0
        %591 = vmatprep.mubr.bf16.mxu0 0
        %592 = vmatmul.mubr.bf16.gmra.mrb[0].mxu0 %v458
        %v593 = vpop.f32.mrb[0].mxu0
        %v594 = vadd.f32 0.0, %v593
        %v595 = vpop.f32.mrb[0].mxu0
        %v596 = vpop.f32.mrb[0].mxu0
        %v597 = vadd.f32 0.0, %v596
        %v598 = vpop.f32.mrb[0].mxu0
        %599 = vmatprep.mubr.bf16.mxu0 0
        %600 = vmatmul.mubr.bf16.gmra.mrb[0].mxu0 %v459
        %v601 = vpop.f32.mrb[0].mxu0
        %v602 = vadd.f32 0.0, %v601
        %v603 = vpop.f32.mrb[0].mxu0
        %v604 = vpop.f32.mrb[0].mxu0
        %v605 = vadd.f32 0.0, %v604
        %v606 = vpop.f32.mrb[0].mxu0
        %607 = vmatprep.mubr.bf16.mxu0 0
        %608 = vmatmul.mubr.bf16.gmra.mrb[0].mxu0 %v460
        %v609 = vpop.f32.mrb[0].mxu0
        %v610 = vadd.f32 0.0, %v609
        %v611 = vpop.f32.mrb[0].mxu0
        %v612 = vpop.f32.mrb[0].mxu0
        %v613 = vadd.f32 0.0, %v612
        %v614 = vpop.f32.mrb[0].mxu0
        %615 = vmatprep.mubr.bf16.mxu0 0
        %616 = vmatmul.mubr.bf16.gmra.mrb[0].mxu0 %v461
        %v617 = vpop.f32.mrb[0].mxu0
        %v618 = vadd.f32 0.0, %v617
        %v619 = vpop.f32.mrb[0].mxu0
        %v620 = vpop.f32.mrb[0].mxu0
        %v621 = vadd.f32 0.0, %v620
        %v622 = vpop.f32.mrb[0].mxu0
        %623 = vmatprep.mubr.bf16.mxu0 0
        %624 = vmatmul.mubr.bf16.gmra.mrb[0].mxu0 %v462
        %v625 = vpop.f32.mrb[0].mxu0
        %v626 = vadd.f32 0.0, %v625
        %v627 = vpop.f32.mrb[0].mxu0
        %v628 = vpop.f32.mrb[0].mxu0
        %v629 = vadd.f32 0.0, %v628
        %v630 = vpop.f32.mrb[0].mxu0
        %631 = vmatprep.mubr.bf16.mxu0 0
        %632 = vmatmul.mubr.bf16.gmra.mrb[0].mxu0 %v463
        %v633 = vpop.f32.mrb[0].mxu0
        %v634 = vadd.f32 0.0, %v633
        %v635 = vpop.f32.mrb[0].mxu0
        %v636 = vpop.f32.mrb[0].mxu0
        %v637 = vadd.f32 0.0, %v636
        %v638 = vpop.f32.mrb[0].mxu0
        %639 = vmatprep.mubr.bf16.mxu0 0
        %640 = vmatmul.mubr.bf16.gmra.mrb[0].mxu0 %v464
        %v641 = vpop.f32.mrb[0].mxu0
        %v642 = vadd.f32 0.0, %v641
        %v643 = vpop.f32.mrb[0].mxu0
        %v644 = vpop.f32.mrb[0].mxu0
        %v645 = vadd.f32 0.0, %v644
        %v646 = vpop.f32.mrb[0].mxu0
        %647 = vmatprep.mubr.bf16.mxu0 0
        %648 = vmatmul.mubr.bf16.gmra.mrb[0].mxu0 %v465
        %v649 = vpop.f32.mrb[0].mxu0
        %v650 = vadd.f32 0.0, %v649
        %v651 = vpop.f32.mrb[0].mxu0
        %v652 = vpop.f32.mrb[0].mxu0
        %v653 = vadd.f32 0.0, %v652
        %v654 = vpop.f32.mrb[0].mxu0
        %655 = vmatprep.mubr.bf16.mxu0 0
        %656 = vmatmul.mubr.bf16.gmra.mrb[0].mxu0 %v466
        %v657 = vpop.f32.mrb[0].mxu0
        %v658 = vadd.f32 0.0, %v657
        %v659 = vpop.f32.mrb[0].mxu0
        %v660 = vpop.f32.mrb[0].mxu0
        %v661 = vadd.f32 0.0, %v660
        %v662 = vpop.f32.mrb[0].mxu0
        %663 = vmatprep.mubr.bf16.mxu0 0
        %664 = vmatmul.mubr.bf16.gmra.mrb[0].mxu0 %v467
        %v665 = vpop.f32.mrb[0].mxu0
        %v666 = vadd.f32 0.0, %v665
        %v667 = vpop.f32.mrb[0].mxu0
        %v668 = vpop.f32.mrb[0].mxu0
        %v669 = vadd.f32 0.0, %v668
        %v670 = vpop.f32.mrb[0].mxu0
        %671 = vmatprep.mubr.bf16.mxu0 0
        %672 = vmatmul.mubr.bf16.gmra.mrb[0].mxu0 %v468
        %v673 = vpop.f32.mrb[0].mxu0
        %v674 = vadd.f32 0.0, %v673
        %v675 = vpop.f32.mrb[0].mxu0
        %v676 = vpop.f32.mrb[0].mxu0
        %v677 = vadd.f32 0.0, %v676
        %v678 = vpop.f32.mrb[0].mxu0
        %679 = vmatprep.mubr.bf16.mxu0 0
        %680 = vmatmul.mubr.bf16.gmra.mrb[0].mxu0 %v469
        %v681 = vpop.f32.mrb[0].mxu0
        %v682 = vadd.f32 0.0, %v681
        %v683 = vpop.f32.mrb[0].mxu0
        %v684 = vpop.f32.mrb[0].mxu0
        %v685 = vadd.f32 0.0, %v684
        %v686 = vpop.f32.mrb[0].mxu0
        %687 = vmatprep.mubr.bf16.mxu0 0
        %688 = vmatmul.mubr.bf16.gmra.mrb[0].mxu0 %v470
        %v689 = vpop.f32.mrb[0].mxu0
        %v690 = vadd.f32 0.0, %v689
        %v691 = vpop.f32.mrb[0].mxu0
        %v692 = vpop.f32.mrb[0].mxu0
        %v693 = vadd.f32 0.0, %v692
        %v694 = vpop.f32.mrb[0].mxu0
        %695 = vdwg.mxu0
        %v696 = vld [vmem:[%s2] sm:$0x1]
        %v698 = vlaneseq
        %v699 = vshrl.u32 %v698, 7
        %v700 = vsub.s32 0, %v699
        %v701 = vrot.slane %v696, %v700
        %v703 = vmul.f32 %v570, %v701
        %v704 = vmul.f32 %v573, %v701
        %v705 = vmul.f32 %v578, %v701
        %v706 = vmul.f32 %v581, %v701
        %v707 = vmul.f32 %v586, %v701
        %v708 = vmul.f32 %v589, %v701
        %v709 = vmul.f32 %v594, %v701
        %v710 = vmul.f32 %v597, %v701
        %v711 = vmul.f32 %v602, %v701
        %v712 = vmul.f32 %v605, %v701
        %v713 = vmul.f32 %v610, %v701
        %v714 = vmul.f32 %v613, %v701
        %v715 = vmul.f32 %v618, %v701
        %v716 = vmul.f32 %v621, %v701
        %v717 = vmul.f32 %v626, %v701
        %v718 = vmul.f32 %v629, %v701
        %v719 = vmul.f32 %v634, %v701
        %v720 = vmul.f32 %v637, %v701
        %v721 = vmul.f32 %v642, %v701
        %v722 = vmul.f32 %v645, %v701
        %v723 = vmul.f32 %v650, %v701
        %v724 = vmul.f32 %v653, %v701
        %v725 = vmul.f32 %v658, %v701
        %v726 = vmul.f32 %v661, %v701
        %v727 = vmul.f32 %v666, %v701
        %v728 = vmul.f32 %v669, %v701
        %v729 = vmul.f32 %v674, %v701
        %v730 = vmul.f32 %v677, %v701
        %v731 = vmul.f32 %v682, %v701
        %v732 = vmul.f32 %v685, %v701
        %v733 = vmul.f32 %v690, %v701
        %v734 = vmul.f32 %v693, %v701
        %v735 = vld [vmem:[%s3] sm:$0x1]
        %v737 = vlaneseq
        %v738 = vshrl.u32 %v737, 7
        %v739 = vsub.s32 0, %v738
        %v740 = vrot.slane %v735, %v739
        %v742 = vadd.f32 %v703, %v740
        %v743 = vadd.f32 %v704, %v740
        %v744 = vadd.f32 %v705, %v740
        %v745 = vadd.f32 %v706, %v740
        %v746 = vadd.f32 %v707, %v740
        %v747 = vadd.f32 %v708, %v740
        %v748 = vadd.f32 %v709, %v740
        %v749 = vadd.f32 %v710, %v740
        %v750 = vadd.f32 %v711, %v740
        %v751 = vadd.f32 %v712, %v740
        %v752 = vadd.f32 %v713, %v740
        %v753 = vadd.f32 %v714, %v740
        %v754 = vadd.f32 %v715, %v740
        %v755 = vadd.f32 %v716, %v740
        %v756 = vadd.f32 %v717, %v740
        %v757 = vadd.f32 %v718, %v740
        %v758 = vadd.f32 %v719, %v740
        %v759 = vadd.f32 %v720, %v740
        %v760 = vadd.f32 %v721, %v740
        %v761 = vadd.f32 %v722, %v740
        %v762 = vadd.f32 %v723, %v740
        %v763 = vadd.f32 %v724, %v740
        %v764 = vadd.f32 %v725, %v740
        %v765 = vadd.f32 %v726, %v740
        %v766 = vadd.f32 %v727, %v740
        %v767 = vadd.f32 %v728, %v740
        %v768 = vadd.f32 %v729, %v740
        %v769 = vadd.f32 %v730, %v740
        %v770 = vadd.f32 %v731, %v740
        %v771 = vadd.f32 %v732, %v740
        %v772 = vadd.f32 %v733, %v740
        %v773 = vadd.f32 %v734, %v740
        %v774 = vmax.f32 %v742, 0.0
        %v775 = vmax.f32 %v743, 0.0
        %v776 = vmax.f32 %v744, 0.0
        %v777 = vmax.f32 %v745, 0.0
        %v778 = vmax.f32 %v746, 0.0
        %v779 = vmax.f32 %v747, 0.0
        %v780 = vmax.f32 %v748, 0.0
        %v781 = vmax.f32 %v749, 0.0
        %v782 = vmax.f32 %v750, 0.0
        %v783 = vmax.f32 %v751, 0.0
        %v784 = vmax.f32 %v752, 0.0
        %v785 = vmax.f32 %v753, 0.0
        %v786 = vmax.f32 %v754, 0.0
        %v787 = vmax.f32 %v755, 0.0
        %v788 = vmax.f32 %v756, 0.0
        %v789 = vmax.f32 %v757, 0.0
        %v790 = vmax.f32 %v758, 0.0
        %v791 = vmax.f32 %v759, 0.0
        %v792 = vmax.f32 %v760, 0.0
        %v793 = vmax.f32 %v761, 0.0
        %v794 = vmax.f32 %v762, 0.0
        %v795 = vmax.f32 %v763, 0.0
        %v796 = vmax.f32 %v764, 0.0
        %v797 = vmax.f32 %v765, 0.0
        %v798 = vmax.f32 %v766, 0.0
        %v799 = vmax.f32 %v767, 0.0
        %v800 = vmax.f32 %v768, 0.0
        %v801 = vmax.f32 %v769, 0.0
        %v802 = vmax.f32 %v770, 0.0
        %v803 = vmax.f32 %v771, 0.0
        %v804 = vmax.f32 %v772, 0.0
        %v805 = vmax.f32 %v773, 0.0
        %806 = vst [vmem:[#allocation2] sm:$0xff] 0
        %807 = vst [vmem:[#allocation2 + $0x8] sm:$0xff] 0
        %s808 = scalar_lea.vmem [#allocation2], 272
        %809 = vst [vmem:[%s808] sm:$0xff] 0
        %810 = vst [vmem:[%s808 + $0x8] sm:$0xff] 0
        %vm811 = vcmask 1043459
        %vm812 = vsmask.f32 7950
        %vm813 = vmand %vm811, %vm812
        %v814 = vld [vmem:[#allocation2] sm:$0x8]
        %v815 = vsel %vm813, 0, %v814
        %816 = vst [vmem:[#allocation2] sm:$0x8] %v815
        %v817 = vld [vmem:[#allocation2 + $0x10] sm:$0x8]
        %v818 = vsel %vm813, 0, %v817
        %819 = vst [vmem:[#allocation2 + $0x10] sm:$0x8] %v818
        %v820 = vld [vmem:[#allocation2 + $0x20] sm:$0x8]
        %v821 = vsel %vm813, 0, %v820
        %822 = vst [vmem:[#allocation2 + $0x20] sm:$0x8] %v821
        %v823 = vld [vmem:[#allocation2 + $0x30] sm:$0x8]
        %v824 = vsel %vm813, 0, %v823
        %825 = vst [vmem:[#allocation2 + $0x30] sm:$0x8] %v824
        %v826 = vld [vmem:[#allocation2 + $0x40] sm:$0x8]
        %v827 = vsel %vm813, 0, %v826
        %828 = vst [vmem:[#allocation2 + $0x40] sm:$0x8] %v827
        %v829 = vld [vmem:[#allocation2 + $0x50] sm:$0x8]
        %v830 = vsel %vm813, 0, %v829
        %831 = vst [vmem:[#allocation2 + $0x50] sm:$0x8] %v830
        %v832 = vld [vmem:[#allocation2 + $0x60] sm:$0x8]
        %v833 = vsel %vm813, 0, %v832
        %834 = vst [vmem:[#allocation2 + $0x60] sm:$0x8] %v833
        %v835 = vld [vmem:[#allocation2 + $0x70] sm:$0x8]
        %v836 = vsel %vm813, 0, %v835
        %837 = vst [vmem:[#allocation2 + $0x70] sm:$0x8] %v836
        %v838 = vld [vmem:[#allocation2 + $0x80] sm:$0x8]
        %v839 = vsel %vm813, 0, %v838
        %840 = vst [vmem:[#allocation2 + $0x80] sm:$0x8] %v839
        %v841 = vld [vmem:[#allocation2 + $0x90] sm:$0x8]
        %v842 = vsel %vm813, 0, %v841
        %843 = vst [vmem:[#allocation2 + $0x90] sm:$0x8] %v842
        %v844 = vld [vmem:[#allocation2 + $0xa0] sm:$0x8]
        %v845 = vsel %vm813, 0, %v844
        %846 = vst [vmem:[#allocation2 + $0xa0] sm:$0x8] %v845
        %v847 = vld [vmem:[#allocation2 + $0xb0] sm:$0x8]
        %v848 = vsel %vm813, 0, %v847
        %849 = vst [vmem:[#allocation2 + $0xb0] sm:$0x8] %v848
        %v850 = vld [vmem:[#allocation2 + $0xc0] sm:$0x8]
        %v851 = vsel %vm813, 0, %v850
        %852 = vst [vmem:[#allocation2 + $0xc0] sm:$0x8] %v851
        %v853 = vld [vmem:[#allocation2 + $0xd0] sm:$0x8]
        %v854 = vsel %vm813, 0, %v853
        %855 = vst [vmem:[#allocation2 + $0xd0] sm:$0x8] %v854
        %v856 = vld [vmem:[#allocation2 + $0xe0] sm:$0x8]
        %v857 = vsel %vm813, 0, %v856
        %858 = vst [vmem:[#allocation2 + $0xe0] sm:$0x8] %v857
        %v859 = vld [vmem:[#allocation2 + $0xf0] sm:$0x8]
        %v860 = vsel %vm813, 0, %v859
        %861 = vst [vmem:[#allocation2 + $0xf0] sm:$0x8] %v860
        %v862 = vld [vmem:[#allocation2 + $0x100] sm:$0x8]
        %v863 = vsel %vm813, 0, %v862
        %864 = vst [vmem:[#allocation2 + $0x100] sm:$0x8] %v863
        %v865 = vld [vmem:[#allocation2 + $0x110] sm:$0x8]
        %v866 = vsel %vm813, 0, %v865
        %867 = vst [vmem:[#allocation2 + $0x110] sm:$0x8] %v866
        %vm868 = vcmask 1044484
        %vm869 = vsmask.f32 4352
        %vm870 = vmand %vm868, %vm869
        %v871 = vld [vmem:[#allocation2 + $0x8] sm:$0x10]
        %v872 = vsel %vm870, 0, %v871
        %873 = vst [vmem:[#allocation2 + $0x8] sm:$0x10] %v872
        %v874 = vld [vmem:[#allocation2 + $0x18] sm:$0x10]
        %v875 = vsel %vm870, 0, %v874
        %876 = vst [vmem:[#allocation2 + $0x18] sm:$0x10] %v875
        %v877 = vld [vmem:[#allocation2 + $0x28] sm:$0x10]
        %v878 = vsel %vm870, 0, %v877
        %879 = vst [vmem:[#allocation2 + $0x28] sm:$0x10] %v878
        %v880 = vld [vmem:[#allocation2 + $0x38] sm:$0x10]
        %v881 = vsel %vm870, 0, %v880
        %882 = vst [vmem:[#allocation2 + $0x38] sm:$0x10] %v881
        %v883 = vld [vmem:[#allocation2 + $0x48] sm:$0x10]
        %v884 = vsel %vm870, 0, %v883
        %885 = vst [vmem:[#allocation2 + $0x48] sm:$0x10] %v884
        %v886 = vld [vmem:[#allocation2 + $0x58] sm:$0x10]
        %v887 = vsel %vm870, 0, %v886
        %888 = vst [vmem:[#allocation2 + $0x58] sm:$0x10] %v887
        %v889 = vld [vmem:[#allocation2 + $0x68] sm:$0x10]
        %v890 = vsel %vm870, 0, %v889
        %891 = vst [vmem:[#allocation2 + $0x68] sm:$0x10] %v890
        %v892 = vld [vmem:[#allocation2 + $0x78] sm:$0x10]
        %v893 = vsel %vm870, 0, %v892
        %894 = vst [vmem:[#allocation2 + $0x78] sm:$0x10] %v893
        %v895 = vld [vmem:[#allocation2 + $0x88] sm:$0x10]
        %v896 = vsel %vm870, 0, %v895
        %897 = vst [vmem:[#allocation2 + $0x88] sm:$0x10] %v896
        %v898 = vld [vmem:[#allocation2 + $0x98] sm:$0x10]
        %v899 = vsel %vm870, 0, %v898
        %900 = vst [vmem:[#allocation2 + $0x98] sm:$0x10] %v899
        %v901 = vld [vmem:[#allocation2 + $0xa8] sm:$0x10]
        %v902 = vsel %vm870, 0, %v901
        %903 = vst [vmem:[#allocation2 + $0xa8] sm:$0x10] %v902
        %v904 = vld [vmem:[#allocation2 + $0xb8] sm:$0x10]
        %v905 = vsel %vm870, 0, %v904
        %906 = vst [vmem:[#allocation2 + $0xb8] sm:$0x10] %v905
        %v907 = vld [vmem:[#allocation2 + $0xc8] sm:$0x10]
        %v908 = vsel %vm870, 0, %v907
        %909 = vst [vmem:[#allocation2 + $0xc8] sm:$0x10] %v908
        %v910 = vld [vmem:[#allocation2 + $0xd8] sm:$0x10]
        %v911 = vsel %vm870, 0, %v910
        %912 = vst [vmem:[#allocation2 + $0xd8] sm:$0x10] %v911
        %v913 = vld [vmem:[#allocation2 + $0xe8] sm:$0x10]
        %v914 = vsel %vm870, 0, %v913
        %915 = vst [vmem:[#allocation2 + $0xe8] sm:$0x10] %v914
        %v916 = vld [vmem:[#allocation2 + $0xf8] sm:$0x10]
        %v917 = vsel %vm870, 0, %v916
        %918 = vst [vmem:[#allocation2 + $0xf8] sm:$0x10] %v917
        %v919 = vld [vmem:[#allocation2 + $0x108] sm:$0x10]
        %v920 = vsel %vm870, 0, %v919
        %921 = vst [vmem:[#allocation2 + $0x108] sm:$0x10] %v920
        %v922 = vld [vmem:[#allocation2 + $0x118] sm:$0x10]
        %v923 = vsel %vm870, 0, %v922
        %924 = vst [vmem:[#allocation2 + $0x118] sm:$0x10] %v923
        %v925 = vpack.c.bf16 %v775, %v774
        %v926 = vpack.c.bf16 %v777, %v776
        %v927 = vpack.c.bf16 %v779, %v778
        %v928 = vpack.c.bf16 %v781, %v780
        %v929 = vpack.c.bf16 %v783, %v782
        %v930 = vpack.c.bf16 %v785, %v784
        %v931 = vpack.c.bf16 %v787, %v786
        %v932 = vpack.c.bf16 %v789, %v788
        %v933 = vpack.c.bf16 %v791, %v790
        %v934 = vpack.c.bf16 %v793, %v792
        %v935 = vpack.c.bf16 %v795, %v794
        %v936 = vpack.c.bf16 %v797, %v796
        %v937 = vpack.c.bf16 %v799, %v798
        %v938 = vpack.c.bf16 %v801, %v800
        %v939 = vpack.c.bf16 %v803, %v802
        %v940 = vpack.c.bf16 %v805, %v804
        %v957 = vrot.slane %v925, 4
        %v958 = vrot.slane %v926, 4
        %v959 = vrot.slane %v927, 4
        %v960 = vrot.slane %v928, 4
        %v961 = vrot.slane %v929, 4
        %v962 = vrot.slane %v930, 4
        %v963 = vrot.slane %v931, 4
        %v964 = vrot.slane %v932, 4
        %v965 = vrot.slane %v933, 4
        %v966 = vrot.slane %v934, 4
        %v967 = vrot.slane %v935, 4
        %v968 = vrot.slane %v936, 4
        %v969 = vrot.slane %v937, 4
        %v970 = vrot.slane %v938, 4
        %v971 = vrot.slane %v939, 4
        %v972 = vrot.slane %v940, 4
        %s989 = scalar_lea.vmem [#allocation2], 16
        %990 = vst [vmem:[%s989] sm:$0xf0] %v957
        %991 = vst [vmem:[%s989 + $0x8] sm:$0xf] %v957
        %992 = vst [vmem:[%s989 + $0x10] sm:$0xf0] %v958
        %993 = vst [vmem:[%s989 + $0x18] sm:$0xf] %v958
        %994 = vst [vmem:[%s989 + $0x20] sm:$0xf0] %v959
        %995 = vst [vmem:[%s989 + $0x28] sm:$0xf] %v959
        %996 = vst [vmem:[%s989 + $0x30] sm:$0xf0] %v960
        %997 = vst [vmem:[%s989 + $0x38] sm:$0xf] %v960
        %998 = vst [vmem:[%s989 + $0x40] sm:$0xf0] %v961
        %999 = vst [vmem:[%s989 + $0x48] sm:$0xf] %v961
        %1000 = vst [vmem:[%s989 + $0x50] sm:$0xf0] %v962
        %1001 = vst [vmem:[%s989 + $0x58] sm:$0xf] %v962
        %1002 = vst [vmem:[%s989 + $0x60] sm:$0xf0] %v963
        %1003 = vst [vmem:[%s989 + $0x68] sm:$0xf] %v963
        %1004 = vst [vmem:[%s989 + $0x70] sm:$0xf0] %v964
        %1005 = vst [vmem:[%s989 + $0x78] sm:$0xf] %v964
        %1006 = vst [vmem:[%s989 + $0x80] sm:$0xf0] %v965
        %1007 = vst [vmem:[%s989 + $0x88] sm:$0xf] %v965
        %1008 = vst [vmem:[%s989 + $0x90] sm:$0xf0] %v966
        %1009 = vst [vmem:[%s989 + $0x98] sm:$0xf] %v966
        %1010 = vst [vmem:[%s989 + $0xa0] sm:$0xf0] %v967
        %1011 = vst [vmem:[%s989 + $0xa8] sm:$0xf] %v967
        %1012 = vst [vmem:[%s989 + $0xb0] sm:$0xf0] %v968
        %1013 = vst [vmem:[%s989 + $0xb8] sm:$0xf] %v968
        %1014 = vst [vmem:[%s989 + $0xc0] sm:$0xf0] %v969
        %1015 = vst [vmem:[%s989 + $0xc8] sm:$0xf] %v969
        %1016 = vst [vmem:[%s989 + $0xd0] sm:$0xf0] %v970
        %1017 = vst [vmem:[%s989 + $0xd8] sm:$0xf] %v970
        %1018 = vst [vmem:[%s989 + $0xe0] sm:$0xf0] %v971
        %1019 = vst [vmem:[%s989 + $0xe8] sm:$0xf] %v971
        %1020 = vst [vmem:[%s989 + $0xf0] sm:$0xf0] %v972
        %1021 = vst [vmem:[%s989 + $0xf8] sm:$0xf] %v972
        %v1022 = vld [vmem:[#allocation2] sm:$0xf8]
        %v1023 = vld [vmem:[#allocation2 + $0x8] sm:$0xf]
        %v1024 = vld [vmem:[#allocation2 + $0x10] sm:$0xf8]
        %v1025 = vld [vmem:[#allocation2 + $0x18] sm:$0xf]
        %v1026 = vld [vmem:[#allocation2 + $0x20] sm:$0xf8]
        %v1027 = vld [vmem:[#allocation2 + $0x28] sm:$0xf]
        %v1028 = vld [vmem:[#allocation2 + $0x30] sm:$0xf8]
        %v1029 = vld [vmem:[#allocation2 + $0x38] sm:$0xf]
        %v1030 = vld [vmem:[#allocation2 + $0x40] sm:$0xf8]
        %v1031 = vld [vmem:[#allocation2 + $0x48] sm:$0xf]
        %v1032 = vld [vmem:[#allocation2 + $0x50] sm:$0xf8]
        %v1033 = vld [vmem:[#allocation2 + $0x58] sm:$0xf]
        %v1034 = vld [vmem:[#allocation2 + $0x60] sm:$0xf8]
        %v1035 = vld [vmem:[#allocation2 + $0x68] sm:$0xf]
        %v1036 = vld [vmem:[#allocation2 + $0x70] sm:$0xf8]
        %v1037 = vld [vmem:[#allocation2 + $0x78] sm:$0xf]
        %v1038 = vld [vmem:[#allocation2 + $0x80] sm:$0xf8]
        %v1039 = vld [vmem:[#allocation2 + $0x88] sm:$0xf]
        %v1040 = vld [vmem:[#allocation2 + $0x90] sm:$0xf8]
        %v1041 = vld [vmem:[#allocation2 + $0x98] sm:$0xf]
        %v1042 = vld [vmem:[#allocation2 + $0xa0] sm:$0xf8]
        %v1043 = vld [vmem:[#allocation2 + $0xa8] sm:$0xf]
        %v1044 = vld [vmem:[#allocation2 + $0xb0] sm:$0xf8]
        %v1045 = vld [vmem:[#allocation2 + $0xb8] sm:$0xf]
        %v1046 = vld [vmem:[#allocation2 + $0xc0] sm:$0xf8]
        %v1047 = vld [vmem:[#allocation2 + $0xc8] sm:$0xf]
        %v1048 = vld [vmem:[#allocation2 + $0xd0] sm:$0xf8]
        %v1049 = vld [vmem:[#allocation2 + $0xd8] sm:$0xf]
        %v1050 = vld [vmem:[#allocation2 + $0xe0] sm:$0xf8]
        %v1051 = vld [vmem:[#allocation2 + $0xe8] sm:$0xf]
        %v1052 = vld [vmem:[#allocation2 + $0xf0] sm:$0xf8]
        %v1053 = vld [vmem:[#allocation2 + $0xf8] sm:$0xf]
        %v1055 = vshrl.u32 %v1022, 16
        %v1057 = vrot.slane %v1055, 3
        %v1058 = vshll.u32 %v1022, 16
        %v1060 = vrot.slane %v1058, 4
        %v1061 = vor.u32 %v1057, %v1060
        %v1063 = vshrl.u32 %v1023, 16
        %v1065 = vrot.slane %v1063, 3
        %v1066 = vshll.u32 %v1023, 16
        %v1068 = vrot.slane %v1066, 4
        %v1069 = vor.u32 %v1065, %v1068
        %v1070 = vsel %vm869, %v1061, %v1069
        %v1072 = vshrl.u32 %v1024, 16
        %v1074 = vrot.slane %v1072, 3
        %v1075 = vshll.u32 %v1024, 16
        %v1077 = vrot.slane %v1075, 4
        %v1078 = vor.u32 %v1074, %v1077
        %v1080 = vshrl.u32 %v1025, 16
        %v1082 = vrot.slane %v1080, 3
        %v1083 = vshll.u32 %v1025, 16
        %v1085 = vrot.slane %v1083, 4
        %v1086 = vor.u32 %v1082, %v1085
        %v1087 = vsel %vm869, %v1078, %v1086
        %v1089 = vshrl.u32 %v1026, 16
        %v1091 = vrot.slane %v1089, 3
        %v1092 = vshll.u32 %v1026, 16
        %v1094 = vrot.slane %v1092, 4
        %v1095 = vor.u32 %v1091, %v1094
        %v1097 = vshrl.u32 %v1027, 16
        %v1099 = vrot.slane %v1097, 3
        %v1100 = vshll.u32 %v1027, 16
        %v1102 = vrot.slane %v1100, 4
        %v1103 = vor.u32 %v1099, %v1102
        %v1104 = vsel %vm869, %v1095, %v1103
        %v1106 = vshrl.u32 %v1028, 16
        %v1108 = vrot.slane %v1106, 3
        %v1109 = vshll.u32 %v1028, 16
        %v1111 = vrot.slane %v1109, 4
        %v1112 = vor.u32 %v1108, %v1111
        %v1114 = vshrl.u32 %v1029, 16
        %v1116 = vrot.slane %v1114, 3
        %v1117 = vshll.u32 %v1029, 16
        %v1119 = vrot.slane %v1117, 4
        %v1120 = vor.u32 %v1116, %v1119
        %v1121 = vsel %vm869, %v1112, %v1120
        %v1123 = vshrl.u32 %v1030, 16
        %v1125 = vrot.slane %v1123, 3
        %v1126 = vshll.u32 %v1030, 16
        %v1128 = vrot.slane %v1126, 4
        %v1129 = vor.u32 %v1125, %v1128
        %v1131 = vshrl.u32 %v1031, 16
        %v1133 = vrot.slane %v1131, 3
        %v1134 = vshll.u32 %v1031, 16
        %v1136 = vrot.slane %v1134, 4
        %v1137 = vor.u32 %v1133, %v1136
        %v1138 = vsel %vm869, %v1129, %v1137
        %v1140 = vshrl.u32 %v1032, 16
        %v1142 = vrot.slane %v1140, 3
        %v1143 = vshll.u32 %v1032, 16
        %v1145 = vrot.slane %v1143, 4
        %v1146 = vor.u32 %v1142, %v1145
        %v1148 = vshrl.u32 %v1033, 16
        %v1150 = vrot.slane %v1148, 3
        %v1151 = vshll.u32 %v1033, 16
        %v1153 = vrot.slane %v1151, 4
        %v1154 = vor.u32 %v1150, %v1153
        %v1155 = vsel %vm869, %v1146, %v1154
        %v1157 = vshrl.u32 %v1034, 16
        %v1159 = vrot.slane %v1157, 3
        %v1160 = vshll.u32 %v1034, 16
        %v1162 = vrot.slane %v1160, 4
        %v1163 = vor.u32 %v1159, %v1162
        %v1165 = vshrl.u32 %v1035, 16
        %v1167 = vrot.slane %v1165, 3
        %v1168 = vshll.u32 %v1035, 16
        %v1170 = vrot.slane %v1168, 4
        %v1171 = vor.u32 %v1167, %v1170
        %v1172 = vsel %vm869, %v1163, %v1171
        %v1174 = vshrl.u32 %v1036, 16
        %v1176 = vrot.slane %v1174, 3
        %v1177 = vshll.u32 %v1036, 16
        %v1179 = vrot.slane %v1177, 4
        %v1180 = vor.u32 %v1176, %v1179
        %v1182 = vshrl.u32 %v1037, 16
        %v1184 = vrot.slane %v1182, 3
        %v1185 = vshll.u32 %v1037, 16
        %v1187 = vrot.slane %v1185, 4
        %v1188 = vor.u32 %v1184, %v1187
        %v1189 = vsel %vm869, %v1180, %v1188
        %v1191 = vshrl.u32 %v1038, 16
        %v1193 = vrot.slane %v1191, 3
        %v1194 = vshll.u32 %v1038, 16
        %v1196 = vrot.slane %v1194, 4
        %v1197 = vor.u32 %v1193, %v1196
        %v1199 = vshrl.u32 %v1039, 16
        %v1201 = vrot.slane %v1199, 3
        %v1202 = vshll.u32 %v1039, 16
        %v1204 = vrot.slane %v1202, 4
        %v1205 = vor.u32 %v1201, %v1204
        %v1206 = vsel %vm869, %v1197, %v1205
        %v1208 = vshrl.u32 %v1040, 16
        %v1210 = vrot.slane %v1208, 3
        %v1211 = vshll.u32 %v1040, 16
        %v1213 = vrot.slane %v1211, 4
        %v1214 = vor.u32 %v1210, %v1213
        %v1216 = vshrl.u32 %v1041, 16
        %v1218 = vrot.slane %v1216, 3
        %v1219 = vshll.u32 %v1041, 16
        %v1221 = vrot.slane %v1219, 4
        %v1222 = vor.u32 %v1218, %v1221
        %v1223 = vsel %vm869, %v1214, %v1222
        %v1225 = vshrl.u32 %v1042, 16
        %v1227 = vrot.slane %v1225, 3
        %v1228 = vshll.u32 %v1042, 16
        %v1230 = vrot.slane %v1228, 4
        %v1231 = vor.u32 %v1227, %v1230
        %v1233 = vshrl.u32 %v1043, 16
        %v1235 = vrot.slane %v1233, 3
        %v1236 = vshll.u32 %v1043, 16
        %v1238 = vrot.slane %v1236, 4
        %v1239 = vor.u32 %v1235, %v1238
        %v1240 = vsel %vm869, %v1231, %v1239
        %v1242 = vshrl.u32 %v1044, 16
        %v1244 = vrot.slane %v1242, 3
        %v1245 = vshll.u32 %v1044, 16
        %v1247 = vrot.slane %v1245, 4
        %v1248 = vor.u32 %v1244, %v1247
        %v1250 = vshrl.u32 %v1045, 16
        %v1252 = vrot.slane %v1250, 3
        %v1253 = vshll.u32 %v1045, 16
        %v1255 = vrot.slane %v1253, 4
        %v1256 = vor.u32 %v1252, %v1255
        %v1257 = vsel %vm869, %v1248, %v1256
        %v1259 = vshrl.u32 %v1046, 16
        %v1261 = vrot.slane %v1259, 3
        %v1262 = vshll.u32 %v1046, 16
        %v1264 = vrot.slane %v1262, 4
        %v1265 = vor.u32 %v1261, %v1264
        %v1267 = vshrl.u32 %v1047, 16
        %v1269 = vrot.slane %v1267, 3
        %v1270 = vshll.u32 %v1047, 16
        %v1272 = vrot.slane %v1270, 4
        %v1273 = vor.u32 %v1269, %v1272
        %v1274 = vsel %vm869, %v1265, %v1273
        %v1276 = vshrl.u32 %v1048, 16
        %v1278 = vrot.slane %v1276, 3
        %v1279 = vshll.u32 %v1048, 16
        %v1281 = vrot.slane %v1279, 4
        %v1282 = vor.u32 %v1278, %v1281
        %v1284 = vshrl.u32 %v1049, 16
        %v1286 = vrot.slane %v1284, 3
        %v1287 = vshll.u32 %v1049, 16
        %v1289 = vrot.slane %v1287, 4
        %v1290 = vor.u32 %v1286, %v1289
        %v1291 = vsel %vm869, %v1282, %v1290
        %v1293 = vshrl.u32 %v1050, 16
        %v1295 = vrot.slane %v1293, 3
        %v1296 = vshll.u32 %v1050, 16
        %v1298 = vrot.slane %v1296, 4
        %v1299 = vor.u32 %v1295, %v1298
        %v1301 = vshrl.u32 %v1051, 16
        %v1303 = vrot.slane %v1301, 3
        %v1304 = vshll.u32 %v1051, 16
        %v1306 = vrot.slane %v1304, 4
        %v1307 = vor.u32 %v1303, %v1306
        %v1308 = vsel %vm869, %v1299, %v1307
        %v1310 = vshrl.u32 %v1052, 16
        %v1312 = vrot.slane %v1310, 3
        %v1313 = vshll.u32 %v1052, 16
        %v1315 = vrot.slane %v1313, 4
        %v1316 = vor.u32 %v1312, %v1315
        %v1318 = vshrl.u32 %v1053, 16
        %v1320 = vrot.slane %v1318, 3
        %v1321 = vshll.u32 %v1053, 16
        %v1323 = vrot.slane %v1321, 4
        %v1324 = vor.u32 %v1320, %v1323
        %v1325 = vsel %vm869, %v1316, %v1324
        %v1342 = vld [vmem:[#allocation8] sm:$0xf]
        %v1343 = vld [vmem:[#allocation8 + $0x4] sm:$0xf]
        %v1344 = vld [vmem:[#allocation8 + $0x8] sm:$0xf]
        %v1345 = vld [vmem:[#allocation8 + $0xc] sm:$0xf]
        %v1346 = vld [vmem:[#allocation8 + $0x10] sm:$0xf]
        %v1347 = vld [vmem:[#allocation8 + $0x14] sm:$0xf]
        %v1348 = vld [vmem:[#allocation8 + $0x18] sm:$0xf]
        %v1349 = vld [vmem:[#allocation8 + $0x1c] sm:$0xf]
        %v1350 = vld [vmem:[#allocation8 + $0x20] sm:$0xf]
        %v1351 = vld [vmem:[#allocation8 + $0x24] sm:$0xf]
        %v1352 = vld [vmem:[#allocation8 + $0x28] sm:$0xf]
        %v1353 = vld [vmem:[#allocation8 + $0x2c] sm:$0xf]
        %v1354 = vld [vmem:[#allocation8 + $0x30] sm:$0xf]
        %v1355 = vld [vmem:[#allocation8 + $0x34] sm:$0xf]
        %v1356 = vld [vmem:[#allocation8 + $0x38] sm:$0xf]
        %v1357 = vld [vmem:[#allocation8 + $0x3c] sm:$0xf]
        %v1358 = vld [vmem:[#allocation2] sm:$0xf0]
        %v1359 = vld [vmem:[#allocation2 + $0x10] sm:$0xf0]
        %v1360 = vld [vmem:[#allocation2 + $0x20] sm:$0xf0]
        %v1361 = vld [vmem:[#allocation2 + $0x30] sm:$0xf0]
        %v1362 = vld [vmem:[#allocation2 + $0x40] sm:$0xf0]
        %v1363 = vld [vmem:[#allocation2 + $0x50] sm:$0xf0]
        %v1364 = vld [vmem:[#allocation2 + $0x60] sm:$0xf0]
        %v1365 = vld [vmem:[#allocation2 + $0x70] sm:$0xf0]
        %v1366 = vld [vmem:[#allocation2 + $0x80] sm:$0xf0]
        %v1367 = vld [vmem:[#allocation2 + $0x90] sm:$0xf0]
        %v1368 = vld [vmem:[#allocation2 + $0xa0] sm:$0xf0]
        %v1369 = vld [vmem:[#allocation2 + $0xb0] sm:$0xf0]
        %v1370 = vld [vmem:[#allocation2 + $0xc0] sm:$0xf0]
        %v1371 = vld [vmem:[#allocation2 + $0xd0] sm:$0xf0]
        %v1372 = vld [vmem:[#allocation2 + $0xe0] sm:$0xf0]
        %v1373 = vld [vmem:[#allocation2 + $0xf0] sm:$0xf0]
        %vm1406 = vcmask 1043456
        %v1407 = vrot.slane %v1358, 4
        %v1408 = vrot.slane %v1023, 4
        %v1409 = vsel %vm1406, %v1407, %v1408
        %v1410 = vrot.slane %v1359, 4
        %v1411 = vrot.slane %v1025, 4
        %v1412 = vsel %vm1406, %v1410, %v1411
        %v1413 = vrot.slane %v1360, 4
        %v1414 = vrot.slane %v1027, 4
        %v1415 = vsel %vm1406, %v1413, %v1414
        %v1416 = vrot.slane %v1361, 4
        %v1417 = vrot.slane %v1029, 4
        %v1418 = vsel %vm1406, %v1416, %v1417
        %v1419 = vrot.slane %v1362, 4
        %v1420 = vrot.slane %v1031, 4
        %v1421 = vsel %vm1406, %v1419, %v1420
        %v1422 = vrot.slane %v1363, 4
        %v1423 = vrot.slane %v1033, 4
        %v1424 = vsel %vm1406, %v1422, %v1423
        %v1425 = vrot.slane %v1364, 4
        %v1426 = vrot.slane %v1035, 4
        %v1427 = vsel %vm1406, %v1425, %v1426
        %v1428 = vrot.slane %v1365, 4
        %v1429 = vrot.slane %v1037, 4
        %v1430 = vsel %vm1406, %v1428, %v1429
        %v1431 = vrot.slane %v1366, 4
        %v1432 = vrot.slane %v1039, 4
        %v1433 = vsel %vm1406, %v1431, %v1432
        %v1434 = vrot.slane %v1367, 4
        %v1435 = vrot.slane %v1041, 4
        %v1436 = vsel %vm1406, %v1434, %v1435
        %v1437 = vrot.slane %v1368, 4
        %v1438 = vrot.slane %v1043, 4
        %v1439 = vsel %vm1406, %v1437, %v1438
        %v1440 = vrot.slane %v1369, 4
        %v1441 = vrot.slane %v1045, 4
        %v1442 = vsel %vm1406, %v1440, %v1441
        %v1443 = vrot.slane %v1370, 4
        %v1444 = vrot.slane %v1047, 4
        %v1445 = vsel %vm1406, %v1443, %v1444
        %v1446 = vrot.slane %v1371, 4
        %v1447 = vrot.slane %v1049, 4
        %v1448 = vsel %vm1406, %v1446, %v1447
        %v1449 = vrot.slane %v1372, 4
        %v1450 = vrot.slane %v1051, 4
        %v1451 = vsel %vm1406, %v1449, %v1450
        %v1452 = vrot.slane %v1373, 4
        %v1453 = vrot.slane %v1053, 4
        %v1454 = vsel %vm1406, %v1452, %v1453
        %s1471 = scalar_lea.vmem [#allocation8], 64
        %v1472 = vld [vmem:[%s1471] sm:$0xf]
        %v1473 = vld [vmem:[%s1471 + $0x4] sm:$0xf]
        %v1474 = vld [vmem:[%s1471 + $0x8] sm:$0xf]
        %v1475 = vld [vmem:[%s1471 + $0xc] sm:$0xf]
        %v1476 = vld [vmem:[%s1471 + $0x10] sm:$0xf]
        %v1477 = vld [vmem:[%s1471 + $0x14] sm:$0xf]
        %v1478 = vld [vmem:[%s1471 + $0x18] sm:$0xf]
        %v1479 = vld [vmem:[%s1471 + $0x1c] sm:$0xf]
        %v1480 = vld [vmem:[%s1471 + $0x20] sm:$0xf]
        %v1481 = vld [vmem:[%s1471 + $0x24] sm:$0xf]
        %v1482 = vld [vmem:[%s1471 + $0x28] sm:$0xf]
        %v1483 = vld [vmem:[%s1471 + $0x2c] sm:$0xf]
        %v1484 = vld [vmem:[%s1471 + $0x30] sm:$0xf]
        %v1485 = vld [vmem:[%s1471 + $0x34] sm:$0xf]
        %v1486 = vld [vmem:[%s1471 + $0x38] sm:$0xf]
        %v1487 = vld [vmem:[%s1471 + $0x3c] sm:$0xf]
        %v1504 = vunpack.c.l.b16 %v1472
        %v1505 = vunpack.c.l.b16 %v1473
        %v1506 = vunpack.c.l.b16 %v1474
        %v1507 = vunpack.c.l.b16 %v1475
        %v1508 = vunpack.c.l.b16 %v1476
        %v1509 = vunpack.c.l.b16 %v1477
        %v1510 = vunpack.c.l.b16 %v1478
        %v1511 = vunpack.c.l.b16 %v1479
        %v1512 = vunpack.c.l.b16 %v1480
        %v1513 = vunpack.c.l.b16 %v1481
        %v1514 = vunpack.c.l.b16 %v1482
        %v1515 = vunpack.c.l.b16 %v1483
        %v1516 = vunpack.c.l.b16 %v1484
        %v1517 = vunpack.c.l.b16 %v1485
        %v1518 = vunpack.c.l.b16 %v1486
        %v1519 = vunpack.c.l.b16 %v1487
        %v1520 = vpack.c.b16 %v1505, %v1504
        %v1521 = vpack.c.b16 %v1507, %v1506
        %v1522 = vpack.c.b16 %v1509, %v1508
        %v1523 = vpack.c.b16 %v1511, %v1510
        %v1524 = vpack.c.b16 %v1513, %v1512
        %v1525 = vpack.c.b16 %v1515, %v1514
        %v1526 = vpack.c.b16 %v1517, %v1516
        %v1527 = vpack.c.b16 %v1519, %v1518
        %1536 = vmatprep.subr.bf16.mxu0 0
        %1537 = vmatpush1.bf16.msra.mxu0 %v1520
        %1538 = vmatprep.subr.bf16.mxu0 0
        %1539 = vmatpush1.bf16.msra.mxu0 %v1521
        %1540 = vmatprep.subr.bf16.mxu0 0
        %1541 = vmatpush1.bf16.msra.mxu0 %v1522
        %1542 = vmatprep.subr.bf16.mxu0 0
        %1543 = vmatpush1.bf16.msra.mxu0 %v1523
        %1544 = vmatprep.subr.bf16.mxu0 0
        %1545 = vmatpush1.bf16.msra.mxu0 %v1524
        %1546 = vmatprep.subr.bf16.mxu0 0
        %1547 = vmatpush1.bf16.msra.mxu0 %v1525
        %1548 = vmatprep.subr.bf16.mxu0 0
        %1549 = vmatpush1.bf16.msra.mxu0 %v1526
        %1550 = vmatprep.subr.bf16.mxu0 0
        %1551 = vmatpush1.bf16.msra.mxu0 %v1527
        %1552 = vmatprep.subr.bf16.mxu0 0
        %1553 = vmatpush1.bf16.msra.mxu0 0
        %1554 = vmatprep.subr.bf16.mxu0 0
        %1555 = vmatpush1.bf16.msra.mxu0 0
        %1556 = vmatprep.subr.bf16.mxu0 0
        %1557 = vmatpush1.bf16.msra.mxu0 0
        %1558 = vmatprep.subr.bf16.mxu0 0
        %1559 = vmatpush1.bf16.msra.mxu0 0
        %1560 = vmatprep.subr.bf16.mxu0 0
        %1561 = vmatpush1.bf16.msra.mxu0 0
        %1562 = vmatprep.subr.bf16.mxu0 0
        %1563 = vmatpush1.bf16.msra.mxu0 0
        %1564 = vmatprep.subr.bf16.mxu0 0
        %1565 = vmatpush1.bf16.msra.mxu0 0
        %1566 = vmatprep.subr.bf16.mxu0 0
        %1567 = vmatpush1.bf16.msra.mxu0 0
        %1568 = vmatprep.mubr.bf16.mxu0 0
        %1569 = vmatmul.mubr.bf16.gmra.mrb[0].mxu0 %v1409
        %v1570 = vpop.f32.mrb[0].mxu0
        %v1571 = vadd.f32 0.0, %v1570
        %v1572 = vpop.f32.mrb[0].mxu0
        %v1573 = vpop.f32.mrb[0].mxu0
        %v1574 = vadd.f32 0.0, %v1573
        %v1575 = vpop.f32.mrb[0].mxu0
        %1576 = vmatprep.mubr.bf16.mxu0 0
        %1577 = vmatmul.mubr.bf16.gmra.mrb[0].mxu0 %v1412
        %v1578 = vpop.f32.mrb[0].mxu0
        %v1579 = vadd.f32 0.0, %v1578
        %v1580 = vpop.f32.mrb[0].mxu0
        %v1581 = vpop.f32.mrb[0].mxu0
        %v1582 = vadd.f32 0.0, %v1581
        %v1583 = vpop.f32.mrb[0].mxu0
        %1584 = vmatprep.mubr.bf16.mxu0 0
        %1585 = vmatmul.mubr.bf16.gmra.mrb[0].mxu0 %v1415
        %v1586 = vpop.f32.mrb[0].mxu0
        %v1587 = vadd.f32 0.0, %v1586
        %v1588 = vpop.f32.mrb[0].mxu0
        %v1589 = vpop.f32.mrb[0].mxu0
        %v1590 = vadd.f32 0.0, %v1589
        %v1591 = vpop.f32.mrb[0].mxu0
        %1592 = vmatprep.mubr.bf16.mxu0 0
        %1593 = vmatmul.mubr.bf16.gmra.mrb[0].mxu0 %v1418
        %v1594 = vpop.f32.mrb[0].mxu0
        %v1595 = vadd.f32 0.0, %v1594
        %v1596 = vpop.f32.mrb[0].mxu0
        %v1597 = vpop.f32.mrb[0].mxu0
        %v1598 = vadd.f32 0.0, %v1597
        %v1599 = vpop.f32.mrb[0].mxu0
        %1600 = vmatprep.mubr.bf16.mxu0 0
        %1601 = vmatmul.mubr.bf16.gmra.mrb[0].mxu0 %v1421
        %v1602 = vpop.f32.mrb[0].mxu0
        %v1603 = vadd.f32 0.0, %v1602
        %v1604 = vpop.f32.mrb[0].mxu0
        %v1605 = vpop.f32.mrb[0].mxu0
        %v1606 = vadd.f32 0.0, %v1605
        %v1607 = vpop.f32.mrb[0].mxu0
        %1608 = vmatprep.mubr.bf16.mxu0 0
        %1609 = vmatmul.mubr.bf16.gmra.mrb[0].mxu0 %v1424
        %v1610 = vpop.f32.mrb[0].mxu0
        %v1611 = vadd.f32 0.0, %v1610
        %v1612 = vpop.f32.mrb[0].mxu0
        %v1613 = vpop.f32.mrb[0].mxu0
        %v1614 = vadd.f32 0.0, %v1613
        %v1615 = vpop.f32.mrb[0].mxu0
        %1616 = vmatprep.mubr.bf16.mxu0 0
        %1617 = vmatmul.mubr.bf16.gmra.mrb[0].mxu0 %v1427
        %v1618 = vpop.f32.mrb[0].mxu0
        %v1619 = vadd.f32 0.0, %v1618
        %v1620 = vpop.f32.mrb[0].mxu0
        %v1621 = vpop.f32.mrb[0].mxu0
        %v1622 = vadd.f32 0.0, %v1621
        %v1623 = vpop.f32.mrb[0].mxu0
        %1624 = vmatprep.mubr.bf16.mxu0 0
        %1625 = vmatmul.mubr.bf16.gmra.mrb[0].mxu0 %v1430
        %v1626 = vpop.f32.mrb[0].mxu0
        %v1627 = vadd.f32 0.0, %v1626
        %v1628 = vpop.f32.mrb[0].mxu0
        %v1629 = vpop.f32.mrb[0].mxu0
        %v1630 = vadd.f32 0.0, %v1629
        %v1631 = vpop.f32.mrb[0].mxu0
        %1632 = vmatprep.mubr.bf16.mxu0 0
        %1633 = vmatmul.mubr.bf16.gmra.mrb[0].mxu0 %v1433
        %v1634 = vpop.f32.mrb[0].mxu0
        %v1635 = vadd.f32 0.0, %v1634
        %v1636 = vpop.f32.mrb[0].mxu0
        %v1637 = vpop.f32.mrb[0].mxu0
        %v1638 = vadd.f32 0.0, %v1637
        %v1639 = vpop.f32.mrb[0].mxu0
        %1640 = vmatprep.mubr.bf16.mxu0 0
        %1641 = vmatmul.mubr.bf16.gmra.mrb[0].mxu0 %v1436
        %v1642 = vpop.f32.mrb[0].mxu0
        %v1643 = vadd.f32 0.0, %v1642
        %v1644 = vpop.f32.mrb[0].mxu0
        %v1645 = vpop.f32.mrb[0].mxu0
        %v1646 = vadd.f32 0.0, %v1645
        %v1647 = vpop.f32.mrb[0].mxu0
        %1648 = vmatprep.mubr.bf16.mxu0 0
        %1649 = vmatmul.mubr.bf16.gmra.mrb[0].mxu0 %v1439
        %v1650 = vpop.f32.mrb[0].mxu0
        %v1651 = vadd.f32 0.0, %v1650
        %v1652 = vpop.f32.mrb[0].mxu0
        %v1653 = vpop.f32.mrb[0].mxu0
        %v1654 = vadd.f32 0.0, %v1653
        %v1655 = vpop.f32.mrb[0].mxu0
        %1656 = vmatprep.mubr.bf16.mxu0 0
        %1657 = vmatmul.mubr.bf16.gmra.mrb[0].mxu0 %v1442
        %v1658 = vpop.f32.mrb[0].mxu0
        %v1659 = vadd.f32 0.0, %v1658
        %v1660 = vpop.f32.mrb[0].mxu0
        %v1661 = vpop.f32.mrb[0].mxu0
        %v1662 = vadd.f32 0.0, %v1661
        %v1663 = vpop.f32.mrb[0].mxu0
        %1664 = vmatprep.mubr.bf16.mxu0 0
        %1665 = vmatmul.mubr.bf16.gmra.mrb[0].mxu0 %v1445
        %v1666 = vpop.f32.mrb[0].mxu0
        %v1667 = vadd.f32 0.0, %v1666
        %v1668 = vpop.f32.mrb[0].mxu0
        %v1669 = vpop.f32.mrb[0].mxu0
        %v1670 = vadd.f32 0.0, %v1669
        %v1671 = vpop.f32.mrb[0].mxu0
        %1672 = vmatprep.mubr.bf16.mxu0 0
        %1673 = vmatmul.mubr.bf16.gmra.mrb[0].mxu0 %v1448
        %v1674 = vpop.f32.mrb[0].mxu0
        %v1675 = vadd.f32 0.0, %v1674
        %v1676 = vpop.f32.mrb[0].mxu0
        %v1677 = vpop.f32.mrb[0].mxu0
        %v1678 = vadd.f32 0.0, %v1677
        %v1679 = vpop.f32.mrb[0].mxu0
        %1680 = vmatprep.mubr.bf16.mxu0 0
        %1681 = vmatmul.mubr.bf16.gmra.mrb[0].mxu0 %v1451
        %v1682 = vpop.f32.mrb[0].mxu0
        %v1683 = vadd.f32 0.0, %v1682
        %v1684 = vpop.f32.mrb[0].mxu0
        %v1685 = vpop.f32.mrb[0].mxu0
        %v1686 = vadd.f32 0.0, %v1685
        %v1687 = vpop.f32.mrb[0].mxu0
        %1688 = vmatprep.mubr.bf16.mxu0 0
        %1689 = vmatmul.mubr.bf16.gmra.mrb[0].mxu0 %v1454
        %v1690 = vpop.f32.mrb[0].mxu0
        %v1691 = vadd.f32 0.0, %v1690
        %v1692 = vpop.f32.mrb[0].mxu0
        %v1693 = vpop.f32.mrb[0].mxu0
        %v1694 = vadd.f32 0.0, %v1693
        %v1695 = vpop.f32.mrb[0].mxu0
        %1696 = vdwg.mxu0
        %v1713 = vunpack.c.l.b16 %v1342
        %v1714 = vunpack.c.l.b16 %v1343
        %v1715 = vunpack.c.l.b16 %v1344
        %v1716 = vunpack.c.l.b16 %v1345
        %v1717 = vunpack.c.l.b16 %v1346
        %v1718 = vunpack.c.l.b16 %v1347
        %v1719 = vunpack.c.l.b16 %v1348
        %v1720 = vunpack.c.l.b16 %v1349
        %v1721 = vunpack.c.l.b16 %v1350
        %v1722 = vunpack.c.l.b16 %v1351
        %v1723 = vunpack.c.l.b16 %v1352
        %v1724 = vunpack.c.l.b16 %v1353
        %v1725 = vunpack.c.l.b16 %v1354
        %v1726 = vunpack.c.l.b16 %v1355
        %v1727 = vunpack.c.l.b16 %v1356
        %v1728 = vunpack.c.l.b16 %v1357
        %v1729 = vpack.c.b16 %v1714, %v1713
        %v1730 = vpack.c.b16 %v1716, %v1715
        %v1731 = vpack.c.b16 %v1718, %v1717
        %v1732 = vpack.c.b16 %v1720, %v1719
        %v1733 = vpack.c.b16 %v1722, %v1721
        %v1734 = vpack.c.b16 %v1724, %v1723
        %v1735 = vpack.c.b16 %v1726, %v1725
        %v1736 = vpack.c.b16 %v1728, %v1727
        %1745 = vmatprep.subr.bf16.mxu0 0
        %1746 = vmatpush1.bf16.msra.mxu0 %v1729
        %1747 = vmatprep.subr.bf16.mxu0 0
        %1748 = vmatpush1.bf16.msra.mxu0 %v1730
        %1749 = vmatprep.subr.bf16.mxu0 0
        %1750 = vmatpush1.bf16.msra.mxu0 %v1731
        %1751 = vmatprep.subr.bf16.mxu0 0
        %1752 = vmatpush1.bf16.msra.mxu0 %v1732
        %1753 = vmatprep.subr.bf16.mxu0 0
        %1754 = vmatpush1.bf16.msra.mxu0 %v1733
        %1755 = vmatprep.subr.bf16.mxu0 0
        %1756 = vmatpush1.bf16.msra.mxu0 %v1734
        %1757 = vmatprep.subr.bf16.mxu0 0
        %1758 = vmatpush1.bf16.msra.mxu0 %v1735
        %1759 = vmatprep.subr.bf16.mxu0 0
        %1760 = vmatpush1.bf16.msra.mxu0 %v1736
        %1761 = vmatprep.subr.bf16.mxu0 0
        %1762 = vmatpush1.bf16.msra.mxu0 0
        %1763 = vmatprep.subr.bf16.mxu0 0
        %1764 = vmatpush1.bf16.msra.mxu0 0
        %1765 = vmatprep.subr.bf16.mxu0 0
        %1766 = vmatpush1.bf16.msra.mxu0 0
        %1767 = vmatprep.subr.bf16.mxu0 0
        %1768 = vmatpush1.bf16.msra.mxu0 0
        %1769 = vmatprep.subr.bf16.mxu0 0
        %1770 = vmatpush1.bf16.msra.mxu0 0
        %1771 = vmatprep.subr.bf16.mxu0 0
        %1772 = vmatpush1.bf16.msra.mxu0 0
        %1773 = vmatprep.subr.bf16.mxu0 0
        %1774 = vmatpush1.bf16.msra.mxu0 0
        %1775 = vmatprep.subr.bf16.mxu0 0
        %1776 = vmatpush1.bf16.msra.mxu0 0
        %1777 = vmatprep.mubr.bf16.mxu0 0
        %1778 = vmatmul.mubr.bf16.gmra.mrb[0].mxu0 %v1070
        %v1779 = vpop.f32.mrb[0].mxu0
        %v1780 = vadd.f32 %v1571, %v1779
        %v1781 = vpop.f32.mrb[0].mxu0
        %v1782 = vpop.f32.mrb[0].mxu0
        %v1783 = vadd.f32 %v1574, %v1782
        %v1784 = vpop.f32.mrb[0].mxu0
        %1785 = vmatprep.mubr.bf16.mxu0 0
        %1786 = vmatmul.mubr.bf16.gmra.mrb[0].mxu0 %v1087
        %v1787 = vpop.f32.mrb[0].mxu0
        %v1788 = vadd.f32 %v1579, %v1787
        %v1789 = vpop.f32.mrb[0].mxu0
        %v1790 = vpop.f32.mrb[0].mxu0
        %v1791 = vadd.f32 %v1582, %v1790
        %v1792 = vpop.f32.mrb[0].mxu0
        %1793 = vmatprep.mubr.bf16.mxu0 0
        %1794 = vmatmul.mubr.bf16.gmra.mrb[0].mxu0 %v1104
        %v1795 = vpop.f32.mrb[0].mxu0
        %v1796 = vadd.f32 %v1587, %v1795
        %v1797 = vpop.f32.mrb[0].mxu0
        %v1798 = vpop.f32.mrb[0].mxu0
        %v1799 = vadd.f32 %v1590, %v1798
        %v1800 = vpop.f32.mrb[0].mxu0
        %1801 = vmatprep.mubr.bf16.mxu0 0
        %1802 = vmatmul.mubr.bf16.gmra.mrb[0].mxu0 %v1121
        %v1803 = vpop.f32.mrb[0].mxu0
        %v1804 = vadd.f32 %v1595, %v1803
        %v1805 = vpop.f32.mrb[0].mxu0
        %v1806 = vpop.f32.mrb[0].mxu0
        %v1807 = vadd.f32 %v1598, %v1806
        %v1808 = vpop.f32.mrb[0].mxu0
        %1809 = vmatprep.mubr.bf16.mxu0 0
        %1810 = vmatmul.mubr.bf16.gmra.mrb[0].mxu0 %v1138
        %v1811 = vpop.f32.mrb[0].mxu0
        %v1812 = vadd.f32 %v1603, %v1811
        %v1813 = vpop.f32.mrb[0].mxu0
        %v1814 = vpop.f32.mrb[0].mxu0
        %v1815 = vadd.f32 %v1606, %v1814
        %v1816 = vpop.f32.mrb[0].mxu0
        %1817 = vmatprep.mubr.bf16.mxu0 0
        %1818 = vmatmul.mubr.bf16.gmra.mrb[0].mxu0 %v1155
        %v1819 = vpop.f32.mrb[0].mxu0
        %v1820 = vadd.f32 %v1611, %v1819
        %v1821 = vpop.f32.mrb[0].mxu0
        %v1822 = vpop.f32.mrb[0].mxu0
        %v1823 = vadd.f32 %v1614, %v1822
        %v1824 = vpop.f32.mrb[0].mxu0
        %1825 = vmatprep.mubr.bf16.mxu0 0
        %1826 = vmatmul.mubr.bf16.gmra.mrb[0].mxu0 %v1172
        %v1827 = vpop.f32.mrb[0].mxu0
        %v1828 = vadd.f32 %v1619, %v1827
        %v1829 = vpop.f32.mrb[0].mxu0
        %v1830 = vpop.f32.mrb[0].mxu0
        %v1831 = vadd.f32 %v1622, %v1830
        %v1832 = vpop.f32.mrb[0].mxu0
        %1833 = vmatprep.mubr.bf16.mxu0 0
        %1834 = vmatmul.mubr.bf16.gmra.mrb[0].mxu0 %v1189
        %v1835 = vpop.f32.mrb[0].mxu0
        %v1836 = vadd.f32 %v1627, %v1835
        %v1837 = vpop.f32.mrb[0].mxu0
        %v1838 = vpop.f32.mrb[0].mxu0
        %v1839 = vadd.f32 %v1630, %v1838
        %v1840 = vpop.f32.mrb[0].mxu0
        %1841 = vmatprep.mubr.bf16.mxu0 0
        %1842 = vmatmul.mubr.bf16.gmra.mrb[0].mxu0 %v1206
        %v1843 = vpop.f32.mrb[0].mxu0
        %v1844 = vadd.f32 %v1635, %v1843
        %v1845 = vpop.f32.mrb[0].mxu0
        %v1846 = vpop.f32.mrb[0].mxu0
        %v1847 = vadd.f32 %v1638, %v1846
        %v1848 = vpop.f32.mrb[0].mxu0
        %1849 = vmatprep.mubr.bf16.mxu0 0
        %1850 = vmatmul.mubr.bf16.gmra.mrb[0].mxu0 %v1223
        %v1851 = vpop.f32.mrb[0].mxu0
        %v1852 = vadd.f32 %v1643, %v1851
        %v1853 = vpop.f32.mrb[0].mxu0
        %v1854 = vpop.f32.mrb[0].mxu0
        %v1855 = vadd.f32 %v1646, %v1854
        %v1856 = vpop.f32.mrb[0].mxu0
        %1857 = vmatprep.mubr.bf16.mxu0 0
        %1858 = vmatmul.mubr.bf16.gmra.mrb[0].mxu0 %v1240
        %v1859 = vpop.f32.mrb[0].mxu0
        %v1860 = vadd.f32 %v1651, %v1859
        %v1861 = vpop.f32.mrb[0].mxu0
        %v1862 = vpop.f32.mrb[0].mxu0
        %v1863 = vadd.f32 %v1654, %v1862
        %v1864 = vpop.f32.mrb[0].mxu0
        %1865 = vmatprep.mubr.bf16.mxu0 0
        %1866 = vmatmul.mubr.bf16.gmra.mrb[0].mxu0 %v1257
        %v1867 = vpop.f32.mrb[0].mxu0
        %v1868 = vadd.f32 %v1659, %v1867
        %v1869 = vpop.f32.mrb[0].mxu0
        %v1870 = vpop.f32.mrb[0].mxu0
        %v1871 = vadd.f32 %v1662, %v1870
        %v1872 = vpop.f32.mrb[0].mxu0
        %1873 = vmatprep.mubr.bf16.mxu0 0
        %1874 = vmatmul.mubr.bf16.gmra.mrb[0].mxu0 %v1274
        %v1875 = vpop.f32.mrb[0].mxu0
        %v1876 = vadd.f32 %v1667, %v1875
        %v1877 = vpop.f32.mrb[0].mxu0
        %v1878 = vpop.f32.mrb[0].mxu0
        %v1879 = vadd.f32 %v1670, %v1878
        %v1880 = vpop.f32.mrb[0].mxu0
        %1881 = vmatprep.mubr.bf16.mxu0 0
        %1882 = vmatmul.mubr.bf16.gmra.mrb[0].mxu0 %v1291
        %v1883 = vpop.f32.mrb[0].mxu0
        %v1884 = vadd.f32 %v1675, %v1883
        %v1885 = vpop.f32.mrb[0].mxu0
        %v1886 = vpop.f32.mrb[0].mxu0
        %v1887 = vadd.f32 %v1678, %v1886
        %v1888 = vpop.f32.mrb[0].mxu0
        %1889 = vmatprep.mubr.bf16.mxu0 0
        %1890 = vmatmul.mubr.bf16.gmra.mrb[0].mxu0 %v1308
        %v1891 = vpop.f32.mrb[0].mxu0
        %v1892 = vadd.f32 %v1683, %v1891
        %v1893 = vpop.f32.mrb[0].mxu0
        %v1894 = vpop.f32.mrb[0].mxu0
        %v1895 = vadd.f32 %v1686, %v1894
        %v1896 = vpop.f32.mrb[0].mxu0
        %1897 = vmatprep.mubr.bf16.mxu0 0
        %1898 = vmatmul.mubr.bf16.gmra.mrb[0].mxu0 %v1325
        %v1899 = vpop.f32.mrb[0].mxu0
        %v1900 = vadd.f32 %v1691, %v1899
        %v1901 = vpop.f32.mrb[0].mxu0
        %v1902 = vpop.f32.mrb[0].mxu0
        %v1903 = vadd.f32 %v1694, %v1902
        %v1904 = vpop.f32.mrb[0].mxu0
        %1905 = vdwg.mxu0
        %v1906 = vld [vmem:[#allocation2 + $0x8] sm:$0x1f]
        %v1907 = vld [vmem:[#allocation2 + $0x18] sm:$0x1f]
        %v1908 = vld [vmem:[#allocation2 + $0x28] sm:$0x1f]
        %v1909 = vld [vmem:[#allocation2 + $0x38] sm:$0x1f]
        %v1910 = vld [vmem:[#allocation2 + $0x48] sm:$0x1f]
        %v1911 = vld [vmem:[#allocation2 + $0x58] sm:$0x1f]
        %v1912 = vld [vmem:[#allocation2 + $0x68] sm:$0x1f]
        %v1913 = vld [vmem:[#allocation2 + $0x78] sm:$0x1f]
        %v1914 = vld [vmem:[#allocation2 + $0x88] sm:$0x1f]
        %v1915 = vld [vmem:[#allocation2 + $0x98] sm:$0x1f]
        %v1916 = vld [vmem:[#allocation2 + $0xa8] sm:$0x1f]
        %v1917 = vld [vmem:[#allocation2 + $0xb8] sm:$0x1f]
        %v1918 = vld [vmem:[#allocation2 + $0xc8] sm:$0x1f]
        %v1919 = vld [vmem:[#allocation2 + $0xd8] sm:$0x1f]
        %v1920 = vld [vmem:[#allocation2 + $0xe8] sm:$0x1f]
        %v1921 = vld [vmem:[#allocation2 + $0xf8] sm:$0x1f]
        %vm1922 = vsmask.f32 3328
        %v1924 = vshrl.u32 %v1358, 16
        %v1926 = vrot.slane %v1924, 4
        %v1927 = vshll.u32 %v1358, 16
        %v1929 = vrot.slane %v1927, 5
        %v1930 = vor.u32 %v1926, %v1929
        %v1932 = vshrl.u32 %v1906, 16
        %v1934 = vrot.slane %v1932, 4
        %v1935 = vshll.u32 %v1906, 16
        %v1937 = vrot.slane %v1935, 5
        %v1938 = vor.u32 %v1934, %v1937
        %v1939 = vsel %vm1922, %v1930, %v1938
        %v1941 = vshrl.u32 %v1359, 16
        %v1943 = vrot.slane %v1941, 4
        %v1944 = vshll.u32 %v1359, 16
        %v1946 = vrot.slane %v1944, 5
        %v1947 = vor.u32 %v1943, %v1946
        %v1949 = vshrl.u32 %v1907, 16
        %v1951 = vrot.slane %v1949, 4
        %v1952 = vshll.u32 %v1907, 16
        %v1954 = vrot.slane %v1952, 5
        %v1955 = vor.u32 %v1951, %v1954
        %v1956 = vsel %vm1922, %v1947, %v1955
        %v1958 = vshrl.u32 %v1360, 16
        %v1960 = vrot.slane %v1958, 4
        %v1961 = vshll.u32 %v1360, 16
        %v1963 = vrot.slane %v1961, 5
        %v1964 = vor.u32 %v1960, %v1963
        %v1966 = vshrl.u32 %v1908, 16
        %v1968 = vrot.slane %v1966, 4
        %v1969 = vshll.u32 %v1908, 16
        %v1971 = vrot.slane %v1969, 5
        %v1972 = vor.u32 %v1968, %v1971
        %v1973 = vsel %vm1922, %v1964, %v1972
        %v1975 = vshrl.u32 %v1361, 16
        %v1977 = vrot.slane %v1975, 4
        %v1978 = vshll.u32 %v1361, 16
        %v1980 = vrot.slane %v1978, 5
        %v1981 = vor.u32 %v1977, %v1980
        %v1983 = vshrl.u32 %v1909, 16
        %v1985 = vrot.slane %v1983, 4
        %v1986 = vshll.u32 %v1909, 16
        %v1988 = vrot.slane %v1986, 5
        %v1989 = vor.u32 %v1985, %v1988
        %v1990 = vsel %vm1922, %v1981, %v1989
        %v1992 = vshrl.u32 %v1362, 16
        %v1994 = vrot.slane %v1992, 4
        %v1995 = vshll.u32 %v1362, 16
        %v1997 = vrot.slane %v1995, 5
        %v1998 = vor.u32 %v1994, %v1997
        %v2000 = vshrl.u32 %v1910, 16
        %v2002 = vrot.slane %v2000, 4
        %v2003 = vshll.u32 %v1910, 16
        %v2005 = vrot.slane %v2003, 5
        %v2006 = vor.u32 %v2002, %v2005
        %v2007 = vsel %vm1922, %v1998, %v2006
        %v2009 = vshrl.u32 %v1363, 16
        %v2011 = vrot.slane %v2009, 4
        %v2012 = vshll.u32 %v1363, 16
        %v2014 = vrot.slane %v2012, 5
        %v2015 = vor.u32 %v2011, %v2014
        %v2017 = vshrl.u32 %v1911, 16
        %v2019 = vrot.slane %v2017, 4
        %v2020 = vshll.u32 %v1911, 16
        %v2022 = vrot.slane %v2020, 5
        %v2023 = vor.u32 %v2019, %v2022
        %v2024 = vsel %vm1922, %v2015, %v2023
        %v2026 = vshrl.u32 %v1364, 16
        %v2028 = vrot.slane %v2026, 4
        %v2029 = vshll.u32 %v1364, 16
        %v2031 = vrot.slane %v2029, 5
        %v2032 = vor.u32 %v2028, %v2031
        %v2034 = vshrl.u32 %v1912, 16
        %v2036 = vrot.slane %v2034, 4
        %v2037 = vshll.u32 %v1912, 16
        %v2039 = vrot.slane %v2037, 5
        %v2040 = vor.u32 %v2036, %v2039
        %v2041 = vsel %vm1922, %v2032, %v2040
        %v2043 = vshrl.u32 %v1365, 16
        %v2045 = vrot.slane %v2043, 4
        %v2046 = vshll.u32 %v1365, 16
        %v2048 = vrot.slane %v2046, 5
        %v2049 = vor.u32 %v2045, %v2048
        %v2051 = vshrl.u32 %v1913, 16
        %v2053 = vrot.slane %v2051, 4
        %v2054 = vshll.u32 %v1913, 16
        %v2056 = vrot.slane %v2054, 5
        %v2057 = vor.u32 %v2053, %v2056
        %v2058 = vsel %vm1922, %v2049, %v2057
        %v2060 = vshrl.u32 %v1366, 16
        %v2062 = vrot.slane %v2060, 4
        %v2063 = vshll.u32 %v1366, 16
        %v2065 = vrot.slane %v2063, 5
        %v2066 = vor.u32 %v2062, %v2065
        %v2068 = vshrl.u32 %v1914, 16
        %v2070 = vrot.slane %v2068, 4
        %v2071 = vshll.u32 %v1914, 16
        %v2073 = vrot.slane %v2071, 5
        %v2074 = vor.u32 %v2070, %v2073
        %v2075 = vsel %vm1922, %v2066, %v2074
        %v2077 = vshrl.u32 %v1367, 16
        %v2079 = vrot.slane %v2077, 4
        %v2080 = vshll.u32 %v1367, 16
        %v2082 = vrot.slane %v2080, 5
        %v2083 = vor.u32 %v2079, %v2082
        %v2085 = vshrl.u32 %v1915, 16
        %v2087 = vrot.slane %v2085, 4
        %v2088 = vshll.u32 %v1915, 16
        %v2090 = vrot.slane %v2088, 5
        %v2091 = vor.u32 %v2087, %v2090
        %v2092 = vsel %vm1922, %v2083, %v2091
        %v2094 = vshrl.u32 %v1368, 16
        %v2096 = vrot.slane %v2094, 4
        %v2097 = vshll.u32 %v1368, 16
        %v2099 = vrot.slane %v2097, 5
        %v2100 = vor.u32 %v2096, %v2099
        %v2102 = vshrl.u32 %v1916, 16
        %v2104 = vrot.slane %v2102, 4
        %v2105 = vshll.u32 %v1916, 16
        %v2107 = vrot.slane %v2105, 5
        %v2108 = vor.u32 %v2104, %v2107
        %v2109 = vsel %vm1922, %v2100, %v2108
        %v2111 = vshrl.u32 %v1369, 16
        %v2113 = vrot.slane %v2111, 4
        %v2114 = vshll.u32 %v1369, 16
        %v2116 = vrot.slane %v2114, 5
        %v2117 = vor.u32 %v2113, %v2116
        %v2119 = vshrl.u32 %v1917, 16
        %v2121 = vrot.slane %v2119, 4
        %v2122 = vshll.u32 %v1917, 16
        %v2124 = vrot.slane %v2122, 5
        %v2125 = vor.u32 %v2121, %v2124
        %v2126 = vsel %vm1922, %v2117, %v2125
        %v2128 = vshrl.u32 %v1370, 16
        %v2130 = vrot.slane %v2128, 4
        %v2131 = vshll.u32 %v1370, 16
        %v2133 = vrot.slane %v2131, 5
        %v2134 = vor.u32 %v2130, %v2133
        %v2136 = vshrl.u32 %v1918, 16
        %v2138 = vrot.slane %v2136, 4
        %v2139 = vshll.u32 %v1918, 16
        %v2141 = vrot.slane %v2139, 5
        %v2142 = vor.u32 %v2138, %v2141
        %v2143 = vsel %vm1922, %v2134, %v2142
        %v2145 = vshrl.u32 %v1371, 16
        %v2147 = vrot.slane %v2145, 4
        %v2148 = vshll.u32 %v1371, 16
        %v2150 = vrot.slane %v2148, 5
        %v2151 = vor.u32 %v2147, %v2150
        %v2153 = vshrl.u32 %v1919, 16
        %v2155 = vrot.slane %v2153, 4
        %v2156 = vshll.u32 %v1919, 16
        %v2158 = vrot.slane %v2156, 5
        %v2159 = vor.u32 %v2155, %v2158
        %v2160 = vsel %vm1922, %v2151, %v2159
        %v2162 = vshrl.u32 %v1372, 16
        %v2164 = vrot.slane %v2162, 4
        %v2165 = vshll.u32 %v1372, 16
        %v2167 = vrot.slane %v2165, 5
        %v2168 = vor.u32 %v2164, %v2167
        %v2170 = vshrl.u32 %v1920, 16
        %v2172 = vrot.slane %v2170, 4
        %v2173 = vshll.u32 %v1920, 16
        %v2175 = vrot.slane %v2173, 5
        %v2176 = vor.u32 %v2172, %v2175
        %v2177 = vsel %vm1922, %v2168, %v2176
        %v2179 = vshrl.u32 %v1373, 16
        %v2181 = vrot.slane %v2179, 4
        %v2182 = vshll.u32 %v1373, 16
        %v2184 = vrot.slane %v2182, 5
        %v2185 = vor.u32 %v2181, %v2184
        %v2187 = vshrl.u32 %v1921, 16
        %v2189 = vrot.slane %v2187, 4
        %v2190 = vshll.u32 %v1921, 16
        %v2192 = vrot.slane %v2190, 5
        %v2193 = vor.u32 %v2189, %v2192
        %v2194 = vsel %vm1922, %v2185, %v2193
        %s2211 = scalar_lea.vmem [#allocation8], 128
        %v2212 = vld [vmem:[%s2211] sm:$0xf]
        %v2213 = vld [vmem:[%s2211 + $0x4] sm:$0xf]
        %v2214 = vld [vmem:[%s2211 + $0x8] sm:$0xf]
        %v2215 = vld [vmem:[%s2211 + $0xc] sm:$0xf]
        %v2216 = vld [vmem:[%s2211 + $0x10] sm:$0xf]
        %v2217 = vld [vmem:[%s2211 + $0x14] sm:$0xf]
        %v2218 = vld [vmem:[%s2211 + $0x18] sm:$0xf]
        %v2219 = vld [vmem:[%s2211 + $0x1c] sm:$0xf]
        %v2220 = vld [vmem:[%s2211 + $0x20] sm:$0xf]
        %v2221 = vld [vmem:[%s2211 + $0x24] sm:$0xf]
        %v2222 = vld [vmem:[%s2211 + $0x28] sm:$0xf]
        %v2223 = vld [vmem:[%s2211 + $0x2c] sm:$0xf]
        %v2224 = vld [vmem:[%s2211 + $0x30] sm:$0xf]
        %v2225 = vld [vmem:[%s2211 + $0x34] sm:$0xf]
        %v2226 = vld [vmem:[%s2211 + $0x38] sm:$0xf]
        %v2227 = vld [vmem:[%s2211 + $0x3c] sm:$0xf]
        %v2244 = vunpack.c.l.b16 %v2212
        %v2245 = vunpack.c.l.b16 %v2213
        %v2246 = vunpack.c.l.b16 %v2214
        %v2247 = vunpack.c.l.b16 %v2215
        %v2248 = vunpack.c.l.b16 %v2216
        %v2249 = vunpack.c.l.b16 %v2217
        %v2250 = vunpack.c.l.b16 %v2218
        %v2251 = vunpack.c.l.b16 %v2219
        %v2252 = vunpack.c.l.b16 %v2220
        %v2253 = vunpack.c.l.b16 %v2221
        %v2254 = vunpack.c.l.b16 %v2222
        %v2255 = vunpack.c.l.b16 %v2223
        %v2256 = vunpack.c.l.b16 %v2224
        %v2257 = vunpack.c.l.b16 %v2225
        %v2258 = vunpack.c.l.b16 %v2226
        %v2259 = vunpack.c.l.b16 %v2227
        %v2260 = vpack.c.b16 %v2245, %v2244
        %v2261 = vpack.c.b16 %v2247, %v2246
        %v2262 = vpack.c.b16 %v2249, %v2248
        %v2263 = vpack.c.b16 %v2251, %v2250
        %v2264 = vpack.c.b16 %v2253, %v2252
        %v2265 = vpack.c.b16 %v2255, %v2254
        %v2266 = vpack.c.b16 %v2257, %v2256
        %v2267 = vpack.c.b16 %v2259, %v2258
        %2276 = vmatprep.subr.bf16.mxu0 0
        %2277 = vmatpush1.bf16.msra.mxu0 %v2260
        %2278 = vmatprep.subr.bf16.mxu0 0
        %2279 = vmatpush1.bf16.msra.mxu0 %v2261
        %2280 = vmatprep.subr.bf16.mxu0 0
        %2281 = vmatpush1.bf16.msra.mxu0 %v2262
        %2282 = vmatprep.subr.bf16.mxu0 0
        %2283 = vmatpush1.bf16.msra.mxu0 %v2263
        %2284 = vmatprep.subr.bf16.mxu0 0
        %2285 = vmatpush1.bf16.msra.mxu0 %v2264
        %2286 = vmatprep.subr.bf16.mxu0 0
        %2287 = vmatpush1.bf16.msra.mxu0 %v2265
        %2288 = vmatprep.subr.bf16.mxu0 0
        %2289 = vmatpush1.bf16.msra.mxu0 %v2266
        %2290 = vmatprep.subr.bf16.mxu0 0
        %2291 = vmatpush1.bf16.msra.mxu0 %v2267
        %2292 = vmatprep.subr.bf16.mxu0 0
        %2293 = vmatpush1.bf16.msra.mxu0 0
        %2294 = vmatprep.subr.bf16.mxu0 0
        %2295 = vmatpush1.bf16.msra.mxu0 0
        %2296 = vmatprep.subr.bf16.mxu0 0
        %2297 = vmatpush1.bf16.msra.mxu0 0
        %2298 = vmatprep.subr.bf16.mxu0 0
        %2299 = vmatpush1.bf16.msra.mxu0 0
        %2300 = vmatprep.subr.bf16.mxu0 0
        %2301 = vmatpush1.bf16.msra.mxu0 0
        %2302 = vmatprep.subr.bf16.mxu0 0
        %2303 = vmatpush1.bf16.msra.mxu0 0
        %2304 = vmatprep.subr.bf16.mxu0 0
        %2305 = vmatpush1.bf16.msra.mxu0 0
        %2306 = vmatprep.subr.bf16.mxu0 0
        %2307 = vmatpush1.bf16.msra.mxu0 0
        %2308 = vmatprep.mubr.bf16.mxu0 0
        %2309 = vmatmul.mubr.bf16.gmra.mrb[0].mxu0 %v1939
        %v2310 = vpop.f32.mrb[0].mxu0
        %v2311 = vadd.f32 0.0, %v2310
        %v2312 = vpop.f32.mrb[0].mxu0
        %v2313 = vpop.f32.mrb[0].mxu0
        %v2314 = vadd.f32 0.0, %v2313
        %v2315 = vpop.f32.mrb[0].mxu0
        %2316 = vmatprep.mubr.bf16.mxu0 0
        %2317 = vmatmul.mubr.bf16.gmra.mrb[0].mxu0 %v1956
        %v2318 = vpop.f32.mrb[0].mxu0
        %v2319 = vadd.f32 0.0, %v2318
        %v2320 = vpop.f32.mrb[0].mxu0
        %v2321 = vpop.f32.mrb[0].mxu0
        %v2322 = vadd.f32 0.0, %v2321
        %v2323 = vpop.f32.mrb[0].mxu0
        %2324 = vmatprep.mubr.bf16.mxu0 0
        %2325 = vmatmul.mubr.bf16.gmra.mrb[0].mxu0 %v1973
        %v2326 = vpop.f32.mrb[0].mxu0
        %v2327 = vadd.f32 0.0, %v2326
        %v2328 = vpop.f32.mrb[0].mxu0
        %v2329 = vpop.f32.mrb[0].mxu0
        %v2330 = vadd.f32 0.0, %v2329
        %v2331 = vpop.f32.mrb[0].mxu0
        %2332 = vmatprep.mubr.bf16.mxu0 0
        %2333 = vmatmul.mubr.bf16.gmra.mrb[0].mxu0 %v1990
        %v2334 = vpop.f32.mrb[0].mxu0
        %v2335 = vadd.f32 0.0, %v2334
        %v2336 = vpop.f32.mrb[0].mxu0
        %v2337 = vpop.f32.mrb[0].mxu0
        %v2338 = vadd.f32 0.0, %v2337
        %v2339 = vpop.f32.mrb[0].mxu0
        %2340 = vmatprep.mubr.bf16.mxu0 0
        %2341 = vmatmul.mubr.bf16.gmra.mrb[0].mxu0 %v2007
        %v2342 = vpop.f32.mrb[0].mxu0
        %v2343 = vadd.f32 0.0, %v2342
        %v2344 = vpop.f32.mrb[0].mxu0
        %v2345 = vpop.f32.mrb[0].mxu0
        %v2346 = vadd.f32 0.0, %v2345
        %v2347 = vpop.f32.mrb[0].mxu0
        %2348 = vmatprep.mubr.bf16.mxu0 0
        %2349 = vmatmul.mubr.bf16.gmra.mrb[0].mxu0 %v2024
        %v2350 = vpop.f32.mrb[0].mxu0
        %v2351 = vadd.f32 0.0, %v2350
        %v2352 = vpop.f32.mrb[0].mxu0
        %v2353 = vpop.f32.mrb[0].mxu0
        %v2354 = vadd.f32 0.0, %v2353
        %v2355 = vpop.f32.mrb[0].mxu0
        %2356 = vmatprep.mubr.bf16.mxu0 0
        %2357 = vmatmul.mubr.bf16.gmra.mrb[0].mxu0 %v2041
        %v2358 = vpop.f32.mrb[0].mxu0
        %v2359 = vadd.f32 0.0, %v2358
        %v2360 = vpop.f32.mrb[0].mxu0
        %v2361 = vpop.f32.mrb[0].mxu0
        %v2362 = vadd.f32 0.0, %v2361
        %v2363 = vpop.f32.mrb[0].mxu0
        %2364 = vmatprep.mubr.bf16.mxu0 0
        %2365 = vmatmul.mubr.bf16.gmra.mrb[0].mxu0 %v2058
        %v2366 = vpop.f32.mrb[0].mxu0
        %v2367 = vadd.f32 0.0, %v2366
        %v2368 = vpop.f32.mrb[0].mxu0
        %v2369 = vpop.f32.mrb[0].mxu0
        %v2370 = vadd.f32 0.0, %v2369
        %v2371 = vpop.f32.mrb[0].mxu0
        %2372 = vmatprep.mubr.bf16.mxu0 0
        %2373 = vmatmul.mubr.bf16.gmra.mrb[0].mxu0 %v2075
        %v2374 = vpop.f32.mrb[0].mxu0
        %v2375 = vadd.f32 0.0, %v2374
        %v2376 = vpop.f32.mrb[0].mxu0
        %v2377 = vpop.f32.mrb[0].mxu0
        %v2378 = vadd.f32 0.0, %v2377
        %v2379 = vpop.f32.mrb[0].mxu0
        %2380 = vmatprep.mubr.bf16.mxu0 0
        %2381 = vmatmul.mubr.bf16.gmra.mrb[0].mxu0 %v2092
        %v2382 = vpop.f32.mrb[0].mxu0
        %v2383 = vadd.f32 0.0, %v2382
        %v2384 = vpop.f32.mrb[0].mxu0
        %v2385 = vpop.f32.mrb[0].mxu0
        %v2386 = vadd.f32 0.0, %v2385
        %v2387 = vpop.f32.mrb[0].mxu0
        %2388 = vmatprep.mubr.bf16.mxu0 0
        %2389 = vmatmul.mubr.bf16.gmra.mrb[0].mxu0 %v2109
        %v2390 = vpop.f32.mrb[0].mxu0
        %v2391 = vadd.f32 0.0, %v2390
        %v2392 = vpop.f32.mrb[0].mxu0
        %v2393 = vpop.f32.mrb[0].mxu0
        %v2394 = vadd.f32 0.0, %v2393
        %v2395 = vpop.f32.mrb[0].mxu0
        %2396 = vmatprep.mubr.bf16.mxu0 0
        %2397 = vmatmul.mubr.bf16.gmra.mrb[0].mxu0 %v2126
        %v2398 = vpop.f32.mrb[0].mxu0
        %v2399 = vadd.f32 0.0, %v2398
        %v2400 = vpop.f32.mrb[0].mxu0
        %v2401 = vpop.f32.mrb[0].mxu0
        %v2402 = vadd.f32 0.0, %v2401
        %v2403 = vpop.f32.mrb[0].mxu0
        %2404 = vmatprep.mubr.bf16.mxu0 0
        %2405 = vmatmul.mubr.bf16.gmra.mrb[0].mxu0 %v2143
        %v2406 = vpop.f32.mrb[0].mxu0
        %v2407 = vadd.f32 0.0, %v2406
        %v2408 = vpop.f32.mrb[0].mxu0
        %v2409 = vpop.f32.mrb[0].mxu0
        %v2410 = vadd.f32 0.0, %v2409
        %v2411 = vpop.f32.mrb[0].mxu0
        %2412 = vmatprep.mubr.bf16.mxu0 0
        %2413 = vmatmul.mubr.bf16.gmra.mrb[0].mxu0 %v2160
        %v2414 = vpop.f32.mrb[0].mxu0
        %v2415 = vadd.f32 0.0, %v2414
        %v2416 = vpop.f32.mrb[0].mxu0
        %v2417 = vpop.f32.mrb[0].mxu0
        %v2418 = vadd.f32 0.0, %v2417
        %v2419 = vpop.f32.mrb[0].mxu0
        %2420 = vmatprep.mubr.bf16.mxu0 0
        %2421 = vmatmul.mubr.bf16.gmra.mrb[0].mxu0 %v2177
        %v2422 = vpop.f32.mrb[0].mxu0
        %v2423 = vadd.f32 0.0, %v2422
        %v2424 = vpop.f32.mrb[0].mxu0
        %v2425 = vpop.f32.mrb[0].mxu0
        %v2426 = vadd.f32 0.0, %v2425
        %v2427 = vpop.f32.mrb[0].mxu0
        %2428 = vmatprep.mubr.bf16.mxu0 0
        %2429 = vmatmul.mubr.bf16.gmra.mrb[0].mxu0 %v2194
        %v2430 = vpop.f32.mrb[0].mxu0
        %v2431 = vadd.f32 0.0, %v2430
        %v2432 = vpop.f32.mrb[0].mxu0
        %v2433 = vpop.f32.mrb[0].mxu0
        %v2434 = vadd.f32 0.0, %v2433
        %v2435 = vpop.f32.mrb[0].mxu0
        %2436 = vdwg.mxu0
        %v2437 = vadd.f32 %v1780, %v2311
        %v2438 = vadd.f32 %v1783, %v2314
        %v2439 = vadd.f32 %v1788, %v2319
        %v2440 = vadd.f32 %v1791, %v2322
        %v2441 = vadd.f32 %v1796, %v2327
        %v2442 = vadd.f32 %v1799, %v2330
        %v2443 = vadd.f32 %v1804, %v2335
        %v2444 = vadd.f32 %v1807, %v2338
        %v2445 = vadd.f32 %v1812, %v2343
        %v2446 = vadd.f32 %v1815, %v2346
        %v2447 = vadd.f32 %v1820, %v2351
        %v2448 = vadd.f32 %v1823, %v2354
        %v2449 = vadd.f32 %v1828, %v2359
        %v2450 = vadd.f32 %v1831, %v2362
        %v2451 = vadd.f32 %v1836, %v2367
        %v2452 = vadd.f32 %v1839, %v2370
        %v2453 = vadd.f32 %v1844, %v2375
        %v2454 = vadd.f32 %v1847, %v2378
        %v2455 = vadd.f32 %v1852, %v2383
        %v2456 = vadd.f32 %v1855, %v2386
        %v2457 = vadd.f32 %v1860, %v2391
        %v2458 = vadd.f32 %v1863, %v2394
        %v2459 = vadd.f32 %v1868, %v2399
        %v2460 = vadd.f32 %v1871, %v2402
        %v2461 = vadd.f32 %v1876, %v2407
        %v2462 = vadd.f32 %v1879, %v2410
        %v2463 = vadd.f32 %v1884, %v2415
        %v2464 = vadd.f32 %v1887, %v2418
        %v2465 = vadd.f32 %v1892, %v2423
        %v2466 = vadd.f32 %v1895, %v2426
        %v2467 = vadd.f32 %v1900, %v2431
        %v2468 = vadd.f32 %v1903, %v2434
        %v2469 = vld [vmem:[%s989] sm:$0xf8]
        %v2470 = vld [vmem:[%s989 + $0x8] sm:$0xf]
        %v2471 = vld [vmem:[%s989 + $0x10] sm:$0xf8]
        %v2472 = vld [vmem:[%s989 + $0x18] sm:$0xf]
        %v2473 = vld [vmem:[%s989 + $0x20] sm:$0xf8]
        %v2474 = vld [vmem:[%s989 + $0x28] sm:$0xf]
        %v2475 = vld [vmem:[%s989 + $0x30] sm:$0xf8]
        %v2476 = vld [vmem:[%s989 + $0x38] sm:$0xf]
        %v2477 = vld [vmem:[%s989 + $0x40] sm:$0xf8]
        %v2478 = vld [vmem:[%s989 + $0x48] sm:$0xf]
        %v2479 = vld [vmem:[%s989 + $0x50] sm:$0xf8]
        %v2480 = vld [vmem:[%s989 + $0x58] sm:$0xf]
        %v2481 = vld [vmem:[%s989 + $0x60] sm:$0xf8]
        %v2482 = vld [vmem:[%s989 + $0x68] sm:$0xf]
        %v2483 = vld [vmem:[%s989 + $0x70] sm:$0xf8]
        %v2484 = vld [vmem:[%s989 + $0x78] sm:$0xf]
        %v2485 = vld [vmem:[%s989 + $0x80] sm:$0xf8]
        %v2486 = vld [vmem:[%s989 + $0x88] sm:$0xf]
        %v2487 = vld [vmem:[%s989 + $0x90] sm:$0xf8]
        %v2488 = vld [vmem:[%s989 + $0x98] sm:$0xf]
        %v2489 = vld [vmem:[%s989 + $0xa0] sm:$0xf8]
        %v2490 = vld [vmem:[%s989 + $0xa8] sm:$0xf]
        %v2491 = vld [vmem:[%s989 + $0xb0] sm:$0xf8]
        %v2492 = vld [vmem:[%s989 + $0xb8] sm:$0xf]
        %v2493 = vld [vmem:[%s989 + $0xc0] sm:$0xf8]
        %v2494 = vld [vmem:[%s989 + $0xc8] sm:$0xf]
        %v2495 = vld [vmem:[%s989 + $0xd0] sm:$0xf8]
        %v2496 = vld [vmem:[%s989 + $0xd8] sm:$0xf]
        %v2497 = vld [vmem:[%s989 + $0xe0] sm:$0xf8]
        %v2498 = vld [vmem:[%s989 + $0xe8] sm:$0xf]
        %v2499 = vld [vmem:[%s989 + $0xf0] sm:$0xf8]
        %v2500 = vld [vmem:[%s989 + $0xf8] sm:$0xf]
        %v2502 = vshrl.u32 %v2469, 16
        %v2504 = vrot.slane %v2502, 3
        %v2505 = vshll.u32 %v2469, 16
        %v2507 = vrot.slane %v2505, 4
        %v2508 = vor.u32 %v2504, %v2507
        %v2510 = vshrl.u32 %v2470, 16
        %v2512 = vrot.slane %v2510, 3
        %v2513 = vshll.u32 %v2470, 16
        %v2515 = vrot.slane %v2513, 4
        %v2516 = vor.u32 %v2512, %v2515
        %v2517 = vsel %vm869, %v2508, %v2516
        %v2519 = vshrl.u32 %v2471, 16
        %v2521 = vrot.slane %v2519, 3
        %v2522 = vshll.u32 %v2471, 16
        %v2524 = vrot.slane %v2522, 4
        %v2525 = vor.u32 %v2521, %v2524
        %v2527 = vshrl.u32 %v2472, 16
        %v2529 = vrot.slane %v2527, 3
        %v2530 = vshll.u32 %v2472, 16
        %v2532 = vrot.slane %v2530, 4
        %v2533 = vor.u32 %v2529, %v2532
        %v2534 = vsel %vm869, %v2525, %v2533
        %v2536 = vshrl.u32 %v2473, 16
        %v2538 = vrot.slane %v2536, 3
        %v2539 = vshll.u32 %v2473, 16
        %v2541 = vrot.slane %v2539, 4
        %v2542 = vor.u32 %v2538, %v2541
        %v2544 = vshrl.u32 %v2474, 16
        %v2546 = vrot.slane %v2544, 3
        %v2547 = vshll.u32 %v2474, 16
        %v2549 = vrot.slane %v2547, 4
        %v2550 = vor.u32 %v2546, %v2549
        %v2551 = vsel %vm869, %v2542, %v2550
        %v2553 = vshrl.u32 %v2475, 16
        %v2555 = vrot.slane %v2553, 3
        %v2556 = vshll.u32 %v2475, 16
        %v2558 = vrot.slane %v2556, 4
        %v2559 = vor.u32 %v2555, %v2558
        %v2561 = vshrl.u32 %v2476, 16
        %v2563 = vrot.slane %v2561, 3
        %v2564 = vshll.u32 %v2476, 16
        %v2566 = vrot.slane %v2564, 4
        %v2567 = vor.u32 %v2563, %v2566
        %v2568 = vsel %vm869, %v2559, %v2567
        %v2570 = vshrl.u32 %v2477, 16
        %v2572 = vrot.slane %v2570, 3
        %v2573 = vshll.u32 %v2477, 16
        %v2575 = vrot.slane %v2573, 4
        %v2576 = vor.u32 %v2572, %v2575
        %v2578 = vshrl.u32 %v2478, 16
        %v2580 = vrot.slane %v2578, 3
        %v2581 = vshll.u32 %v2478, 16
        %v2583 = vrot.slane %v2581, 4
        %v2584 = vor.u32 %v2580, %v2583
        %v2585 = vsel %vm869, %v2576, %v2584
        %v2587 = vshrl.u32 %v2479, 16
        %v2589 = vrot.slane %v2587, 3
        %v2590 = vshll.u32 %v2479, 16
        %v2592 = vrot.slane %v2590, 4
        %v2593 = vor.u32 %v2589, %v2592
        %v2595 = vshrl.u32 %v2480, 16
        %v2597 = vrot.slane %v2595, 3
        %v2598 = vshll.u32 %v2480, 16
        %v2600 = vrot.slane %v2598, 4
        %v2601 = vor.u32 %v2597, %v2600
        %v2602 = vsel %vm869, %v2593, %v2601
        %v2604 = vshrl.u32 %v2481, 16
        %v2606 = vrot.slane %v2604, 3
        %v2607 = vshll.u32 %v2481, 16
        %v2609 = vrot.slane %v2607, 4
        %v2610 = vor.u32 %v2606, %v2609
        %v2612 = vshrl.u32 %v2482, 16
        %v2614 = vrot.slane %v2612, 3
        %v2615 = vshll.u32 %v2482, 16
        %v2617 = vrot.slane %v2615, 4
        %v2618 = vor.u32 %v2614, %v2617
        %v2619 = vsel %vm869, %v2610, %v2618
        %v2621 = vshrl.u32 %v2483, 16
        %v2623 = vrot.slane %v2621, 3
        %v2624 = vshll.u32 %v2483, 16
        %v2626 = vrot.slane %v2624, 4
        %v2627 = vor.u32 %v2623, %v2626
        %v2629 = vshrl.u32 %v2484, 16
        %v2631 = vrot.slane %v2629, 3
        %v2632 = vshll.u32 %v2484, 16
        %v2634 = vrot.slane %v2632, 4
        %v2635 = vor.u32 %v2631, %v2634
        %v2636 = vsel %vm869, %v2627, %v2635
        %v2638 = vshrl.u32 %v2485, 16
        %v2640 = vrot.slane %v2638, 3
        %v2641 = vshll.u32 %v2485, 16
        %v2643 = vrot.slane %v2641, 4
        %v2644 = vor.u32 %v2640, %v2643
        %v2646 = vshrl.u32 %v2486, 16
        %v2648 = vrot.slane %v2646, 3
        %v2649 = vshll.u32 %v2486, 16
        %v2651 = vrot.slane %v2649, 4
        %v2652 = vor.u32 %v2648, %v2651
        %v2653 = vsel %vm869, %v2644, %v2652
        %v2655 = vshrl.u32 %v2487, 16
        %v2657 = vrot.slane %v2655, 3
        %v2658 = vshll.u32 %v2487, 16
        %v2660 = vrot.slane %v2658, 4
        %v2661 = vor.u32 %v2657, %v2660
        %v2663 = vshrl.u32 %v2488, 16
        %v2665 = vrot.slane %v2663, 3
        %v2666 = vshll.u32 %v2488, 16
        %v2668 = vrot.slane %v2666, 4
        %v2669 = vor.u32 %v2665, %v2668
        %v2670 = vsel %vm869, %v2661, %v2669
        %v2672 = vshrl.u32 %v2489, 16
        %v2674 = vrot.slane %v2672, 3
        %v2675 = vshll.u32 %v2489, 16
        %v2677 = vrot.slane %v2675, 4
        %v2678 = vor.u32 %v2674, %v2677
        %v2680 = vshrl.u32 %v2490, 16
        %v2682 = vrot.slane %v2680, 3
        %v2683 = vshll.u32 %v2490, 16
        %v2685 = vrot.slane %v2683, 4
        %v2686 = vor.u32 %v2682, %v2685
        %v2687 = vsel %vm869, %v2678, %v2686
        %v2689 = vshrl.u32 %v2491, 16
        %v2691 = vrot.slane %v2689, 3
        %v2692 = vshll.u32 %v2491, 16
        %v2694 = vrot.slane %v2692, 4
        %v2695 = vor.u32 %v2691, %v2694
        %v2697 = vshrl.u32 %v2492, 16
        %v2699 = vrot.slane %v2697, 3
        %v2700 = vshll.u32 %v2492, 16
        %v2702 = vrot.slane %v2700, 4
        %v2703 = vor.u32 %v2699, %v2702
        %v2704 = vsel %vm869, %v2695, %v2703
        %v2706 = vshrl.u32 %v2493, 16
        %v2708 = vrot.slane %v2706, 3
        %v2709 = vshll.u32 %v2493, 16
        %v2711 = vrot.slane %v2709, 4
        %v2712 = vor.u32 %v2708, %v2711
        %v2714 = vshrl.u32 %v2494, 16
        %v2716 = vrot.slane %v2714, 3
        %v2717 = vshll.u32 %v2494, 16
        %v2719 = vrot.slane %v2717, 4
        %v2720 = vor.u32 %v2716, %v2719
        %v2721 = vsel %vm869, %v2712, %v2720
        %v2723 = vshrl.u32 %v2495, 16
        %v2725 = vrot.slane %v2723, 3
        %v2726 = vshll.u32 %v2495, 16
        %v2728 = vrot.slane %v2726, 4
        %v2729 = vor.u32 %v2725, %v2728
        %v2731 = vshrl.u32 %v2496, 16
        %v2733 = vrot.slane %v2731, 3
        %v2734 = vshll.u32 %v2496, 16
        %v2736 = vrot.slane %v2734, 4
        %v2737 = vor.u32 %v2733, %v2736
        %v2738 = vsel %vm869, %v2729, %v2737
        %v2740 = vshrl.u32 %v2497, 16
        %v2742 = vrot.slane %v2740, 3
        %v2743 = vshll.u32 %v2497, 16
        %v2745 = vrot.slane %v2743, 4
        %v2746 = vor.u32 %v2742, %v2745
        %v2748 = vshrl.u32 %v2498, 16
        %v2750 = vrot.slane %v2748, 3
        %v2751 = vshll.u32 %v2498, 16
        %v2753 = vrot.slane %v2751, 4
        %v2754 = vor.u32 %v2750, %v2753
        %v2755 = vsel %vm869, %v2746, %v2754
        %v2757 = vshrl.u32 %v2499, 16
        %v2759 = vrot.slane %v2757, 3
        %v2760 = vshll.u32 %v2499, 16
        %v2762 = vrot.slane %v2760, 4
        %v2763 = vor.u32 %v2759, %v2762
        %v2765 = vshrl.u32 %v2500, 16
        %v2767 = vrot.slane %v2765, 3
        %v2768 = vshll.u32 %v2500, 16
        %v2770 = vrot.slane %v2768, 4
        %v2771 = vor.u32 %v2767, %v2770
        %v2772 = vsel %vm869, %v2763, %v2771
        %s2789 = scalar_lea.vmem [#allocation8], 192
        %v2790 = vld [vmem:[%s2789] sm:$0xf]
        %v2791 = vld [vmem:[%s2789 + $0x4] sm:$0xf]
        %v2792 = vld [vmem:[%s2789 + $0x8] sm:$0xf]
        %v2793 = vld [vmem:[%s2789 + $0xc] sm:$0xf]
        %v2794 = vld [vmem:[%s2789 + $0x10] sm:$0xf]
        %v2795 = vld [vmem:[%s2789 + $0x14] sm:$0xf]
        %v2796 = vld [vmem:[%s2789 + $0x18] sm:$0xf]
        %v2797 = vld [vmem:[%s2789 + $0x1c] sm:$0xf]
        %v2798 = vld [vmem:[%s2789 + $0x20] sm:$0xf]
        %v2799 = vld [vmem:[%s2789 + $0x24] sm:$0xf]
        %v2800 = vld [vmem:[%s2789 + $0x28] sm:$0xf]
        %v2801 = vld [vmem:[%s2789 + $0x2c] sm:$0xf]
        %v2802 = vld [vmem:[%s2789 + $0x30] sm:$0xf]
        %v2803 = vld [vmem:[%s2789 + $0x34] sm:$0xf]
        %v2804 = vld [vmem:[%s2789 + $0x38] sm:$0xf]
        %v2805 = vld [vmem:[%s2789 + $0x3c] sm:$0xf]
        %v2822 = vunpack.c.l.b16 %v2790
        %v2823 = vunpack.c.l.b16 %v2791
        %v2824 = vunpack.c.l.b16 %v2792
        %v2825 = vunpack.c.l.b16 %v2793
        %v2826 = vunpack.c.l.b16 %v2794
        %v2827 = vunpack.c.l.b16 %v2795
        %v2828 = vunpack.c.l.b16 %v2796
        %v2829 = vunpack.c.l.b16 %v2797
        %v2830 = vunpack.c.l.b16 %v2798
        %v2831 = vunpack.c.l.b16 %v2799
        %v2832 = vunpack.c.l.b16 %v2800
        %v2833 = vunpack.c.l.b16 %v2801
        %v2834 = vunpack.c.l.b16 %v2802
        %v2835 = vunpack.c.l.b16 %v2803
        %v2836 = vunpack.c.l.b16 %v2804
        %v2837 = vunpack.c.l.b16 %v2805
        %v2838 = vpack.c.b16 %v2823, %v2822
        %v2839 = vpack.c.b16 %v2825, %v2824
        %v2840 = vpack.c.b16 %v2827, %v2826
        %v2841 = vpack.c.b16 %v2829, %v2828
        %v2842 = vpack.c.b16 %v2831, %v2830
        %v2843 = vpack.c.b16 %v2833, %v2832
        %v2844 = vpack.c.b16 %v2835, %v2834
        %v2845 = vpack.c.b16 %v2837, %v2836
        %2854 = vmatprep.subr.bf16.mxu0 0
        %2855 = vmatpush1.bf16.msra.mxu0 %v2838
        %2856 = vmatprep.subr.bf16.mxu0 0
        %2857 = vmatpush1.bf16.msra.mxu0 %v2839
        %2858 = vmatprep.subr.bf16.mxu0 0
        %2859 = vmatpush1.bf16.msra.mxu0 %v2840
        %2860 = vmatprep.subr.bf16.mxu0 0
        %2861 = vmatpush1.bf16.msra.mxu0 %v2841
        %2862 = vmatprep.subr.bf16.mxu0 0
        %2863 = vmatpush1.bf16.msra.mxu0 %v2842
        %2864 = vmatprep.subr.bf16.mxu0 0
        %2865 = vmatpush1.bf16.msra.mxu0 %v2843
        %2866 = vmatprep.subr.bf16.mxu0 0
        %2867 = vmatpush1.bf16.msra.mxu0 %v2844
        %2868 = vmatprep.subr.bf16.mxu0 0
        %2869 = vmatpush1.bf16.msra.mxu0 %v2845
        %2870 = vmatprep.subr.bf16.mxu0 0
        %2871 = vmatpush1.bf16.msra.mxu0 0
        %2872 = vmatprep.subr.bf16.mxu0 0
        %2873 = vmatpush1.bf16.msra.mxu0 0
        %2874 = vmatprep.subr.bf16.mxu0 0
        %2875 = vmatpush1.bf16.msra.mxu0 0
        %2876 = vmatprep.subr.bf16.mxu0 0
        %2877 = vmatpush1.bf16.msra.mxu0 0
        %2878 = vmatprep.subr.bf16.mxu0 0
        %2879 = vmatpush1.bf16.msra.mxu0 0
        %2880 = vmatprep.subr.bf16.mxu0 0
        %2881 = vmatpush1.bf16.msra.mxu0 0
        %2882 = vmatprep.subr.bf16.mxu0 0
        %2883 = vmatpush1.bf16.msra.mxu0 0
        %2884 = vmatprep.subr.bf16.mxu0 0
        %2885 = vmatpush1.bf16.msra.mxu0 0
        %2886 = vmatprep.mubr.bf16.mxu0 0
        %2887 = vmatmul.mubr.bf16.gmra.mrb[0].mxu0 %v2517
        %v2888 = vpop.f32.mrb[0].mxu0
        %v2889 = vadd.f32 0.0, %v2888
        %v2890 = vpop.f32.mrb[0].mxu0
        %v2891 = vpop.f32.mrb[0].mxu0
        %v2892 = vadd.f32 0.0, %v2891
        %v2893 = vpop.f32.mrb[0].mxu0
        %2894 = vmatprep.mubr.bf16.mxu0 0
        %2895 = vmatmul.mubr.bf16.gmra.mrb[0].mxu0 %v2534
        %v2896 = vpop.f32.mrb[0].mxu0
        %v2897 = vadd.f32 0.0, %v2896
        %v2898 = vpop.f32.mrb[0].mxu0
        %v2899 = vpop.f32.mrb[0].mxu0
        %v2900 = vadd.f32 0.0, %v2899
        %v2901 = vpop.f32.mrb[0].mxu0
        %2902 = vmatprep.mubr.bf16.mxu0 0
        %2903 = vmatmul.mubr.bf16.gmra.mrb[0].mxu0 %v2551
        %v2904 = vpop.f32.mrb[0].mxu0
        %v2905 = vadd.f32 0.0, %v2904
        %v2906 = vpop.f32.mrb[0].mxu0
        %v2907 = vpop.f32.mrb[0].mxu0
        %v2908 = vadd.f32 0.0, %v2907
        %v2909 = vpop.f32.mrb[0].mxu0
        %2910 = vmatprep.mubr.bf16.mxu0 0
        %2911 = vmatmul.mubr.bf16.gmra.mrb[0].mxu0 %v2568
        %v2912 = vpop.f32.mrb[0].mxu0
        %v2913 = vadd.f32 0.0, %v2912
        %v2914 = vpop.f32.mrb[0].mxu0
        %v2915 = vpop.f32.mrb[0].mxu0
        %v2916 = vadd.f32 0.0, %v2915
        %v2917 = vpop.f32.mrb[0].mxu0
        %2918 = vmatprep.mubr.bf16.mxu0 0
        %2919 = vmatmul.mubr.bf16.gmra.mrb[0].mxu0 %v2585
        %v2920 = vpop.f32.mrb[0].mxu0
        %v2921 = vadd.f32 0.0, %v2920
        %v2922 = vpop.f32.mrb[0].mxu0
        %v2923 = vpop.f32.mrb[0].mxu0
        %v2924 = vadd.f32 0.0, %v2923
        %v2925 = vpop.f32.mrb[0].mxu0
        %2926 = vmatprep.mubr.bf16.mxu0 0
        %2927 = vmatmul.mubr.bf16.gmra.mrb[0].mxu0 %v2602
        %v2928 = vpop.f32.mrb[0].mxu0
        %v2929 = vadd.f32 0.0, %v2928
        %v2930 = vpop.f32.mrb[0].mxu0
        %v2931 = vpop.f32.mrb[0].mxu0
        %v2932 = vadd.f32 0.0, %v2931
        %v2933 = vpop.f32.mrb[0].mxu0
        %2934 = vmatprep.mubr.bf16.mxu0 0
        %2935 = vmatmul.mubr.bf16.gmra.mrb[0].mxu0 %v2619
        %v2936 = vpop.f32.mrb[0].mxu0
        %v2937 = vadd.f32 0.0, %v2936
        %v2938 = vpop.f32.mrb[0].mxu0
        %v2939 = vpop.f32.mrb[0].mxu0
        %v2940 = vadd.f32 0.0, %v2939
        %v2941 = vpop.f32.mrb[0].mxu0
        %2942 = vmatprep.mubr.bf16.mxu0 0
        %2943 = vmatmul.mubr.bf16.gmra.mrb[0].mxu0 %v2636
        %v2944 = vpop.f32.mrb[0].mxu0
        %v2945 = vadd.f32 0.0, %v2944
        %v2946 = vpop.f32.mrb[0].mxu0
        %v2947 = vpop.f32.mrb[0].mxu0
        %v2948 = vadd.f32 0.0, %v2947
        %v2949 = vpop.f32.mrb[0].mxu0
        %2950 = vmatprep.mubr.bf16.mxu0 0
        %2951 = vmatmul.mubr.bf16.gmra.mrb[0].mxu0 %v2653
        %v2952 = vpop.f32.mrb[0].mxu0
        %v2953 = vadd.f32 0.0, %v2952
        %v2954 = vpop.f32.mrb[0].mxu0
        %v2955 = vpop.f32.mrb[0].mxu0
        %v2956 = vadd.f32 0.0, %v2955
        %v2957 = vpop.f32.mrb[0].mxu0
        %2958 = vmatprep.mubr.bf16.mxu0 0
        %2959 = vmatmul.mubr.bf16.gmra.mrb[0].mxu0 %v2670
        %v2960 = vpop.f32.mrb[0].mxu0
        %v2961 = vadd.f32 0.0, %v2960
        %v2962 = vpop.f32.mrb[0].mxu0
        %v2963 = vpop.f32.mrb[0].mxu0
        %v2964 = vadd.f32 0.0, %v2963
        %v2965 = vpop.f32.mrb[0].mxu0
        %2966 = vmatprep.mubr.bf16.mxu0 0
        %2967 = vmatmul.mubr.bf16.gmra.mrb[0].mxu0 %v2687
        %v2968 = vpop.f32.mrb[0].mxu0
        %v2969 = vadd.f32 0.0, %v2968
        %v2970 = vpop.f32.mrb[0].mxu0
        %v2971 = vpop.f32.mrb[0].mxu0
        %v2972 = vadd.f32 0.0, %v2971
        %v2973 = vpop.f32.mrb[0].mxu0
        %2974 = vmatprep.mubr.bf16.mxu0 0
        %2975 = vmatmul.mubr.bf16.gmra.mrb[0].mxu0 %v2704
        %v2976 = vpop.f32.mrb[0].mxu0
        %v2977 = vadd.f32 0.0, %v2976
        %v2978 = vpop.f32.mrb[0].mxu0
        %v2979 = vpop.f32.mrb[0].mxu0
        %v2980 = vadd.f32 0.0, %v2979
        %v2981 = vpop.f32.mrb[0].mxu0
        %2982 = vmatprep.mubr.bf16.mxu0 0
        %2983 = vmatmul.mubr.bf16.gmra.mrb[0].mxu0 %v2721
        %v2984 = vpop.f32.mrb[0].mxu0
        %v2985 = vadd.f32 0.0, %v2984
        %v2986 = vpop.f32.mrb[0].mxu0
        %v2987 = vpop.f32.mrb[0].mxu0
        %v2988 = vadd.f32 0.0, %v2987
        %v2989 = vpop.f32.mrb[0].mxu0
        %2990 = vmatprep.mubr.bf16.mxu0 0
        %2991 = vmatmul.mubr.bf16.gmra.mrb[0].mxu0 %v2738
        %v2992 = vpop.f32.mrb[0].mxu0
        %v2993 = vadd.f32 0.0, %v2992
        %v2994 = vpop.f32.mrb[0].mxu0
        %v2995 = vpop.f32.mrb[0].mxu0
        %v2996 = vadd.f32 0.0, %v2995
        %v2997 = vpop.f32.mrb[0].mxu0
        %2998 = vmatprep.mubr.bf16.mxu0 0
        %2999 = vmatmul.mubr.bf16.gmra.mrb[0].mxu0 %v2755
        %v3000 = vpop.f32.mrb[0].mxu0
        %v3001 = vadd.f32 0.0, %v3000
        %v3002 = vpop.f32.mrb[0].mxu0
        %v3003 = vpop.f32.mrb[0].mxu0
        %v3004 = vadd.f32 0.0, %v3003
        %v3005 = vpop.f32.mrb[0].mxu0
        %3006 = vmatprep.mubr.bf16.mxu0 0
        %3007 = vmatmul.mubr.bf16.gmra.mrb[0].mxu0 %v2772
        %v3008 = vpop.f32.mrb[0].mxu0
        %v3009 = vadd.f32 0.0, %v3008
        %v3010 = vpop.f32.mrb[0].mxu0
        %v3011 = vpop.f32.mrb[0].mxu0
        %v3012 = vadd.f32 0.0, %v3011
        %v3013 = vpop.f32.mrb[0].mxu0
        %3014 = vdwg.mxu0
        %v3015 = vadd.f32 %v2437, %v2889
        %v3016 = vadd.f32 %v2438, %v2892
        %v3017 = vadd.f32 %v2439, %v2897
        %v3018 = vadd.f32 %v2440, %v2900
        %v3019 = vadd.f32 %v2441, %v2905
        %v3020 = vadd.f32 %v2442, %v2908
        %v3021 = vadd.f32 %v2443, %v2913
        %v3022 = vadd.f32 %v2444, %v2916
        %v3023 = vadd.f32 %v2445, %v2921
        %v3024 = vadd.f32 %v2446, %v2924
        %v3025 = vadd.f32 %v2447, %v2929
        %v3026 = vadd.f32 %v2448, %v2932
        %v3027 = vadd.f32 %v2449, %v2937
        %v3028 = vadd.f32 %v2450, %v2940
        %v3029 = vadd.f32 %v2451, %v2945
        %v3030 = vadd.f32 %v2452, %v2948
        %v3031 = vadd.f32 %v2453, %v2953
        %v3032 = vadd.f32 %v2454, %v2956
        %v3033 = vadd.f32 %v2455, %v2961
        %v3034 = vadd.f32 %v2456, %v2964
        %v3035 = vadd.f32 %v2457, %v2969
        %v3036 = vadd.f32 %v2458, %v2972
        %v3037 = vadd.f32 %v2459, %v2977
        %v3038 = vadd.f32 %v2460, %v2980
        %v3039 = vadd.f32 %v2461, %v2985
        %v3040 = vadd.f32 %v2462, %v2988
        %v3041 = vadd.f32 %v2463, %v2993
        %v3042 = vadd.f32 %v2464, %v2996
        %v3043 = vadd.f32 %v2465, %v3001
        %v3044 = vadd.f32 %v2466, %v3004
        %v3045 = vadd.f32 %v2467, %v3009
        %v3046 = vadd.f32 %v2468, %v3012
        %v3047 = vld [vmem:[%s989] sm:$0xf0]
        %v3048 = vld [vmem:[%s989 + $0x10] sm:$0xf0]
        %v3049 = vld [vmem:[%s989 + $0x20] sm:$0xf0]
        %v3050 = vld [vmem:[%s989 + $0x30] sm:$0xf0]
        %v3051 = vld [vmem:[%s989 + $0x40] sm:$0xf0]
        %v3052 = vld [vmem:[%s989 + $0x50] sm:$0xf0]
        %v3053 = vld [vmem:[%s989 + $0x60] sm:$0xf0]
        %v3054 = vld [vmem:[%s989 + $0x70] sm:$0xf0]
        %v3055 = vld [vmem:[%s989 + $0x80] sm:$0xf0]
        %v3056 = vld [vmem:[%s989 + $0x90] sm:$0xf0]
        %v3057 = vld [vmem:[%s989 + $0xa0] sm:$0xf0]
        %v3058 = vld [vmem:[%s989 + $0xb0] sm:$0xf0]
        %v3059 = vld [vmem:[%s989 + $0xc0] sm:$0xf0]
        %v3060 = vld [vmem:[%s989 + $0xd0] sm:$0xf0]
        %v3061 = vld [vmem:[%s989 + $0xe0] sm:$0xf0]
        %v3062 = vld [vmem:[%s989 + $0xf0] sm:$0xf0]
        %v3095 = vrot.slane %v3047, 4
        %v3096 = vrot.slane %v2470, 4
        %v3097 = vsel %vm1406, %v3095, %v3096
        %v3098 = vrot.slane %v3048, 4
        %v3099 = vrot.slane %v2472, 4
        %v3100 = vsel %vm1406, %v3098, %v3099
        %v3101 = vrot.slane %v3049, 4
        %v3102 = vrot.slane %v2474, 4
        %v3103 = vsel %vm1406, %v3101, %v3102
        %v3104 = vrot.slane %v3050, 4
        %v3105 = vrot.slane %v2476, 4
        %v3106 = vsel %vm1406, %v3104, %v3105
        %v3107 = vrot.slane %v3051, 4
        %v3108 = vrot.slane %v2478, 4
        %v3109 = vsel %vm1406, %v3107, %v3108
        %v3110 = vrot.slane %v3052, 4
        %v3111 = vrot.slane %v2480, 4
        %v3112 = vsel %vm1406, %v3110, %v3111
        %v3113 = vrot.slane %v3053, 4
        %v3114 = vrot.slane %v2482, 4
        %v3115 = vsel %vm1406, %v3113, %v3114
        %v3116 = vrot.slane %v3054, 4
        %v3117 = vrot.slane %v2484, 4
        %v3118 = vsel %vm1406, %v3116, %v3117
        %v3119 = vrot.slane %v3055, 4
        %v3120 = vrot.slane %v2486, 4
        %v3121 = vsel %vm1406, %v3119, %v3120
        %v3122 = vrot.slane %v3056, 4
        %v3123 = vrot.slane %v2488, 4
        %v3124 = vsel %vm1406, %v3122, %v3123
        %v3125 = vrot.slane %v3057, 4
        %v3126 = vrot.slane %v2490, 4
        %v3127 = vsel %vm1406, %v3125, %v3126
        %v3128 = vrot.slane %v3058, 4
        %v3129 = vrot.slane %v2492, 4
        %v3130 = vsel %vm1406, %v3128, %v3129
        %v3131 = vrot.slane %v3059, 4
        %v3132 = vrot.slane %v2494, 4
        %v3133 = vsel %vm1406, %v3131, %v3132
        %v3134 = vrot.slane %v3060, 4
        %v3135 = vrot.slane %v2496, 4
        %v3136 = vsel %vm1406, %v3134, %v3135
        %v3137 = vrot.slane %v3061, 4
        %v3138 = vrot.slane %v2498, 4
        %v3139 = vsel %vm1406, %v3137, %v3138
        %v3140 = vrot.slane %v3062, 4
        %v3141 = vrot.slane %v2500, 4
        %v3142 = vsel %vm1406, %v3140, %v3141
        %s3159 = scalar_lea.vmem [#allocation8], 256
        %v3160 = vld [vmem:[%s3159] sm:$0xf]
        %v3161 = vld [vmem:[%s3159 + $0x4] sm:$0xf]
        %v3162 = vld [vmem:[%s3159 + $0x8] sm:$0xf]
        %v3163 = vld [vmem:[%s3159 + $0xc] sm:$0xf]
        %v3164 = vld [vmem:[%s3159 + $0x10] sm:$0xf]
        %v3165 = vld [vmem:[%s3159 + $0x14] sm:$0xf]
        %v3166 = vld [vmem:[%s3159 + $0x18] sm:$0xf]
        %v3167 = vld [vmem:[%s3159 + $0x1c] sm:$0xf]
        %v3168 = vld [vmem:[%s3159 + $0x20] sm:$0xf]
        %v3169 = vld [vmem:[%s3159 + $0x24] sm:$0xf]
        %v3170 = vld [vmem:[%s3159 + $0x28] sm:$0xf]
        %v3171 = vld [vmem:[%s3159 + $0x2c] sm:$0xf]
        %v3172 = vld [vmem:[%s3159 + $0x30] sm:$0xf]
        %v3173 = vld [vmem:[%s3159 + $0x34] sm:$0xf]
        %v3174 = vld [vmem:[%s3159 + $0x38] sm:$0xf]
        %v3175 = vld [vmem:[%s3159 + $0x3c] sm:$0xf]
        %v3192 = vunpack.c.l.b16 %v3160
        %v3193 = vunpack.c.l.b16 %v3161
        %v3194 = vunpack.c.l.b16 %v3162
        %v3195 = vunpack.c.l.b16 %v3163
        %v3196 = vunpack.c.l.b16 %v3164
        %v3197 = vunpack.c.l.b16 %v3165
        %v3198 = vunpack.c.l.b16 %v3166
        %v3199 = vunpack.c.l.b16 %v3167
        %v3200 = vunpack.c.l.b16 %v3168
        %v3201 = vunpack.c.l.b16 %v3169
        %v3202 = vunpack.c.l.b16 %v3170
        %v3203 = vunpack.c.l.b16 %v3171
        %v3204 = vunpack.c.l.b16 %v3172
        %v3205 = vunpack.c.l.b16 %v3173
        %v3206 = vunpack.c.l.b16 %v3174
        %v3207 = vunpack.c.l.b16 %v3175
        %v3208 = vpack.c.b16 %v3193, %v3192
        %v3209 = vpack.c.b16 %v3195, %v3194
        %v3210 = vpack.c.b16 %v3197, %v3196
        %v3211 = vpack.c.b16 %v3199, %v3198
        %v3212 = vpack.c.b16 %v3201, %v3200
        %v3213 = vpack.c.b16 %v3203, %v3202
        %v3214 = vpack.c.b16 %v3205, %v3204
        %v3215 = vpack.c.b16 %v3207, %v3206
        %3224 = vmatprep.subr.bf16.mxu0 0
        %3225 = vmatpush1.bf16.msra.mxu0 %v3208
        %3226 = vmatprep.subr.bf16.mxu0 0
        %3227 = vmatpush1.bf16.msra.mxu0 %v3209
        %3228 = vmatprep.subr.bf16.mxu0 0
        %3229 = vmatpush1.bf16.msra.mxu0 %v3210
        %3230 = vmatprep.subr.bf16.mxu0 0
        %3231 = vmatpush1.bf16.msra.mxu0 %v3211
        %3232 = vmatprep.subr.bf16.mxu0 0
        %3233 = vmatpush1.bf16.msra.mxu0 %v3212
        %3234 = vmatprep.subr.bf16.mxu0 0
        %3235 = vmatpush1.bf16.msra.mxu0 %v3213
        %3236 = vmatprep.subr.bf16.mxu0 0
        %3237 = vmatpush1.bf16.msra.mxu0 %v3214
        %3238 = vmatprep.subr.bf16.mxu0 0
        %3239 = vmatpush1.bf16.msra.mxu0 %v3215
        %3240 = vmatprep.subr.bf16.mxu0 0
        %3241 = vmatpush1.bf16.msra.mxu0 0
        %3242 = vmatprep.subr.bf16.mxu0 0
        %3243 = vmatpush1.bf16.msra.mxu0 0
        %3244 = vmatprep.subr.bf16.mxu0 0
        %3245 = vmatpush1.bf16.msra.mxu0 0
        %3246 = vmatprep.subr.bf16.mxu0 0
        %3247 = vmatpush1.bf16.msra.mxu0 0
        %3248 = vmatprep.subr.bf16.mxu0 0
        %3249 = vmatpush1.bf16.msra.mxu0 0
        %3250 = vmatprep.subr.bf16.mxu0 0
        %3251 = vmatpush1.bf16.msra.mxu0 0
        %3252 = vmatprep.subr.bf16.mxu0 0
        %3253 = vmatpush1.bf16.msra.mxu0 0
        %3254 = vmatprep.subr.bf16.mxu0 0
        %3255 = vmatpush1.bf16.msra.mxu0 0
        %3256 = vmatprep.mubr.bf16.mxu0 0
        %3257 = vmatmul.mubr.bf16.gmra.mrb[0].mxu0 %v3097
        %v3258 = vpop.f32.mrb[0].mxu0
        %v3259 = vadd.f32 0.0, %v3258
        %v3260 = vpop.f32.mrb[0].mxu0
        %v3261 = vpop.f32.mrb[0].mxu0
        %v3262 = vadd.f32 0.0, %v3261
        %v3263 = vpop.f32.mrb[0].mxu0
        %3264 = vmatprep.mubr.bf16.mxu0 0
        %3265 = vmatmul.mubr.bf16.gmra.mrb[0].mxu0 %v3100
        %v3266 = vpop.f32.mrb[0].mxu0
        %v3267 = vadd.f32 0.0, %v3266
        %v3268 = vpop.f32.mrb[0].mxu0
        %v3269 = vpop.f32.mrb[0].mxu0
        %v3270 = vadd.f32 0.0, %v3269
        %v3271 = vpop.f32.mrb[0].mxu0
        %3272 = vmatprep.mubr.bf16.mxu0 0
        %3273 = vmatmul.mubr.bf16.gmra.mrb[0].mxu0 %v3103
        %v3274 = vpop.f32.mrb[0].mxu0
        %v3275 = vadd.f32 0.0, %v3274
        %v3276 = vpop.f32.mrb[0].mxu0
        %v3277 = vpop.f32.mrb[0].mxu0
        %v3278 = vadd.f32 0.0, %v3277
        %v3279 = vpop.f32.mrb[0].mxu0
        %3280 = vmatprep.mubr.bf16.mxu0 0
        %3281 = vmatmul.mubr.bf16.gmra.mrb[0].mxu0 %v3106
        %v3282 = vpop.f32.mrb[0].mxu0
        %v3283 = vadd.f32 0.0, %v3282
        %v3284 = vpop.f32.mrb[0].mxu0
        %v3285 = vpop.f32.mrb[0].mxu0
        %v3286 = vadd.f32 0.0, %v3285
        %v3287 = vpop.f32.mrb[0].mxu0
        %3288 = vmatprep.mubr.bf16.mxu0 0
        %3289 = vmatmul.mubr.bf16.gmra.mrb[0].mxu0 %v3109
        %v3290 = vpop.f32.mrb[0].mxu0
        %v3291 = vadd.f32 0.0, %v3290
        %v3292 = vpop.f32.mrb[0].mxu0
        %v3293 = vpop.f32.mrb[0].mxu0
        %v3294 = vadd.f32 0.0, %v3293
        %v3295 = vpop.f32.mrb[0].mxu0
        %3296 = vmatprep.mubr.bf16.mxu0 0
        %3297 = vmatmul.mubr.bf16.gmra.mrb[0].mxu0 %v3112
        %v3298 = vpop.f32.mrb[0].mxu0
        %v3299 = vadd.f32 0.0, %v3298
        %v3300 = vpop.f32.mrb[0].mxu0
        %v3301 = vpop.f32.mrb[0].mxu0
        %v3302 = vadd.f32 0.0, %v3301
        %v3303 = vpop.f32.mrb[0].mxu0
        %3304 = vmatprep.mubr.bf16.mxu0 0
        %3305 = vmatmul.mubr.bf16.gmra.mrb[0].mxu0 %v3115
        %v3306 = vpop.f32.mrb[0].mxu0
        %v3307 = vadd.f32 0.0, %v3306
        %v3308 = vpop.f32.mrb[0].mxu0
        %v3309 = vpop.f32.mrb[0].mxu0
        %v3310 = vadd.f32 0.0, %v3309
        %v3311 = vpop.f32.mrb[0].mxu0
        %3312 = vmatprep.mubr.bf16.mxu0 0
        %3313 = vmatmul.mubr.bf16.gmra.mrb[0].mxu0 %v3118
        %v3314 = vpop.f32.mrb[0].mxu0
        %v3315 = vadd.f32 0.0, %v3314
        %v3316 = vpop.f32.mrb[0].mxu0
        %v3317 = vpop.f32.mrb[0].mxu0
        %v3318 = vadd.f32 0.0, %v3317
        %v3319 = vpop.f32.mrb[0].mxu0
        %3320 = vmatprep.mubr.bf16.mxu0 0
        %3321 = vmatmul.mubr.bf16.gmra.mrb[0].mxu0 %v3121
        %v3322 = vpop.f32.mrb[0].mxu0
        %v3323 = vadd.f32 0.0, %v3322
        %v3324 = vpop.f32.mrb[0].mxu0
        %v3325 = vpop.f32.mrb[0].mxu0
        %v3326 = vadd.f32 0.0, %v3325
        %v3327 = vpop.f32.mrb[0].mxu0
        %3328 = vmatprep.mubr.bf16.mxu0 0
        %3329 = vmatmul.mubr.bf16.gmra.mrb[0].mxu0 %v3124
        %v3330 = vpop.f32.mrb[0].mxu0
        %v3331 = vadd.f32 0.0, %v3330
        %v3332 = vpop.f32.mrb[0].mxu0
        %v3333 = vpop.f32.mrb[0].mxu0
        %v3334 = vadd.f32 0.0, %v3333
        %v3335 = vpop.f32.mrb[0].mxu0
        %3336 = vmatprep.mubr.bf16.mxu0 0
        %3337 = vmatmul.mubr.bf16.gmra.mrb[0].mxu0 %v3127
        %v3338 = vpop.f32.mrb[0].mxu0
        %v3339 = vadd.f32 0.0, %v3338
        %v3340 = vpop.f32.mrb[0].mxu0
        %v3341 = vpop.f32.mrb[0].mxu0
        %v3342 = vadd.f32 0.0, %v3341
        %v3343 = vpop.f32.mrb[0].mxu0
        %3344 = vmatprep.mubr.bf16.mxu0 0
        %3345 = vmatmul.mubr.bf16.gmra.mrb[0].mxu0 %v3130
        %v3346 = vpop.f32.mrb[0].mxu0
        %v3347 = vadd.f32 0.0, %v3346
        %v3348 = vpop.f32.mrb[0].mxu0
        %v3349 = vpop.f32.mrb[0].mxu0
        %v3350 = vadd.f32 0.0, %v3349
        %v3351 = vpop.f32.mrb[0].mxu0
        %3352 = vmatprep.mubr.bf16.mxu0 0
        %3353 = vmatmul.mubr.bf16.gmra.mrb[0].mxu0 %v3133
        %v3354 = vpop.f32.mrb[0].mxu0
        %v3355 = vadd.f32 0.0, %v3354
        %v3356 = vpop.f32.mrb[0].mxu0
        %v3357 = vpop.f32.mrb[0].mxu0
        %v3358 = vadd.f32 0.0, %v3357
        %v3359 = vpop.f32.mrb[0].mxu0
        %3360 = vmatprep.mubr.bf16.mxu0 0
        %3361 = vmatmul.mubr.bf16.gmra.mrb[0].mxu0 %v3136
        %v3362 = vpop.f32.mrb[0].mxu0
        %v3363 = vadd.f32 0.0, %v3362
        %v3364 = vpop.f32.mrb[0].mxu0
        %v3365 = vpop.f32.mrb[0].mxu0
        %v3366 = vadd.f32 0.0, %v3365
        %v3367 = vpop.f32.mrb[0].mxu0
        %3368 = vmatprep.mubr.bf16.mxu0 0
        %3369 = vmatmul.mubr.bf16.gmra.mrb[0].mxu0 %v3139
        %v3370 = vpop.f32.mrb[0].mxu0
        %v3371 = vadd.f32 0.0, %v3370
        %v3372 = vpop.f32.mrb[0].mxu0
        %v3373 = vpop.f32.mrb[0].mxu0
        %v3374 = vadd.f32 0.0, %v3373
        %v3375 = vpop.f32.mrb[0].mxu0
        %3376 = vmatprep.mubr.bf16.mxu0 0
        %3377 = vmatmul.mubr.bf16.gmra.mrb[0].mxu0 %v3142
        %v3378 = vpop.f32.mrb[0].mxu0
        %v3379 = vadd.f32 0.0, %v3378
        %v3380 = vpop.f32.mrb[0].mxu0
        %v3381 = vpop.f32.mrb[0].mxu0
        %v3382 = vadd.f32 0.0, %v3381
        %v3383 = vpop.f32.mrb[0].mxu0
        %3384 = vdwg.mxu0
        %v3385 = vadd.f32 %v3015, %v3259
        %v3386 = vadd.f32 %v3016, %v3262
        %v3387 = vadd.f32 %v3017, %v3267
        %v3388 = vadd.f32 %v3018, %v3270
        %v3389 = vadd.f32 %v3019, %v3275
        %v3390 = vadd.f32 %v3020, %v3278
        %v3391 = vadd.f32 %v3021, %v3283
        %v3392 = vadd.f32 %v3022, %v3286
        %v3393 = vadd.f32 %v3023, %v3291
        %v3394 = vadd.f32 %v3024, %v3294
        %v3395 = vadd.f32 %v3025, %v3299
        %v3396 = vadd.f32 %v3026, %v3302
        %v3397 = vadd.f32 %v3027, %v3307
        %v3398 = vadd.f32 %v3028, %v3310
        %v3399 = vadd.f32 %v3029, %v3315
        %v3400 = vadd.f32 %v3030, %v3318
        %v3401 = vadd.f32 %v3031, %v3323
        %v3402 = vadd.f32 %v3032, %v3326
        %v3403 = vadd.f32 %v3033, %v3331
        %v3404 = vadd.f32 %v3034, %v3334
        %v3405 = vadd.f32 %v3035, %v3339
        %v3406 = vadd.f32 %v3036, %v3342
        %v3407 = vadd.f32 %v3037, %v3347
        %v3408 = vadd.f32 %v3038, %v3350
        %v3409 = vadd.f32 %v3039, %v3355
        %v3410 = vadd.f32 %v3040, %v3358
        %v3411 = vadd.f32 %v3041, %v3363
        %v3412 = vadd.f32 %v3042, %v3366
        %v3413 = vadd.f32 %v3043, %v3371
        %v3414 = vadd.f32 %v3044, %v3374
        %v3415 = vadd.f32 %v3045, %v3379
        %v3416 = vadd.f32 %v3046, %v3382
        %v3417 = vld [vmem:[%s989 + $0x8] sm:$0x1f]
        %v3418 = vld [vmem:[%s989 + $0x18] sm:$0x1f]
        %v3419 = vld [vmem:[%s989 + $0x28] sm:$0x1f]
        %v3420 = vld [vmem:[%s989 + $0x38] sm:$0x1f]
        %v3421 = vld [vmem:[%s989 + $0x48] sm:$0x1f]
        %v3422 = vld [vmem:[%s989 + $0x58] sm:$0x1f]
        %v3423 = vld [vmem:[%s989 + $0x68] sm:$0x1f]
        %v3424 = vld [vmem:[%s989 + $0x78] sm:$0x1f]
        %v3425 = vld [vmem:[%s989 + $0x88] sm:$0x1f]
        %v3426 = vld [vmem:[%s989 + $0x98] sm:$0x1f]
        %v3427 = vld [vmem:[%s989 + $0xa8] sm:$0x1f]
        %v3428 = vld [vmem:[%s989 + $0xb8] sm:$0x1f]
        %v3429 = vld [vmem:[%s989 + $0xc8] sm:$0x1f]
        %v3430 = vld [vmem:[%s989 + $0xd8] sm:$0x1f]
        %v3431 = vld [vmem:[%s989 + $0xe8] sm:$0x1f]
        %v3432 = vld [vmem:[%s989 + $0xf8] sm:$0x1f]
        %v3434 = vshrl.u32 %v3047, 16
        %v3436 = vrot.slane %v3434, 4
        %v3437 = vshll.u32 %v3047, 16
        %v3439 = vrot.slane %v3437, 5
        %v3440 = vor.u32 %v3436, %v3439
        %v3442 = vshrl.u32 %v3417, 16
        %v3444 = vrot.slane %v3442, 4
        %v3445 = vshll.u32 %v3417, 16
        %v3447 = vrot.slane %v3445, 5
        %v3448 = vor.u32 %v3444, %v3447
        %v3449 = vsel %vm1922, %v3440, %v3448
        %v3451 = vshrl.u32 %v3048, 16
        %v3453 = vrot.slane %v3451, 4
        %v3454 = vshll.u32 %v3048, 16
        %v3456 = vrot.slane %v3454, 5
        %v3457 = vor.u32 %v3453, %v3456
        %v3459 = vshrl.u32 %v3418, 16
        %v3461 = vrot.slane %v3459, 4
        %v3462 = vshll.u32 %v3418, 16
        %v3464 = vrot.slane %v3462, 5
        %v3465 = vor.u32 %v3461, %v3464
        %v3466 = vsel %vm1922, %v3457, %v3465
        %v3468 = vshrl.u32 %v3049, 16
        %v3470 = vrot.slane %v3468, 4
        %v3471 = vshll.u32 %v3049, 16
        %v3473 = vrot.slane %v3471, 5
        %v3474 = vor.u32 %v3470, %v3473
        %v3476 = vshrl.u32 %v3419, 16
        %v3478 = vrot.slane %v3476, 4
        %v3479 = vshll.u32 %v3419, 16
        %v3481 = vrot.slane %v3479, 5
        %v3482 = vor.u32 %v3478, %v3481
        %v3483 = vsel %vm1922, %v3474, %v3482
        %v3485 = vshrl.u32 %v3050, 16
        %v3487 = vrot.slane %v3485, 4
        %v3488 = vshll.u32 %v3050, 16
        %v3490 = vrot.slane %v3488, 5
        %v3491 = vor.u32 %v3487, %v3490
        %v3493 = vshrl.u32 %v3420, 16
        %v3495 = vrot.slane %v3493, 4
        %v3496 = vshll.u32 %v3420, 16
        %v3498 = vrot.slane %v3496, 5
        %v3499 = vor.u32 %v3495, %v3498
        %v3500 = vsel %vm1922, %v3491, %v3499
        %v3502 = vshrl.u32 %v3051, 16
        %v3504 = vrot.slane %v3502, 4
        %v3505 = vshll.u32 %v3051, 16
        %v3507 = vrot.slane %v3505, 5
        %v3508 = vor.u32 %v3504, %v3507
        %v3510 = vshrl.u32 %v3421, 16
        %v3512 = vrot.slane %v3510, 4
        %v3513 = vshll.u32 %v3421, 16
        %v3515 = vrot.slane %v3513, 5
        %v3516 = vor.u32 %v3512, %v3515
        %v3517 = vsel %vm1922, %v3508, %v3516
        %v3519 = vshrl.u32 %v3052, 16
        %v3521 = vrot.slane %v3519, 4
        %v3522 = vshll.u32 %v3052, 16
        %v3524 = vrot.slane %v3522, 5
        %v3525 = vor.u32 %v3521, %v3524
        %v3527 = vshrl.u32 %v3422, 16
        %v3529 = vrot.slane %v3527, 4
        %v3530 = vshll.u32 %v3422, 16
        %v3532 = vrot.slane %v3530, 5
        %v3533 = vor.u32 %v3529, %v3532
        %v3534 = vsel %vm1922, %v3525, %v3533
        %v3536 = vshrl.u32 %v3053, 16
        %v3538 = vrot.slane %v3536, 4
        %v3539 = vshll.u32 %v3053, 16
        %v3541 = vrot.slane %v3539, 5
        %v3542 = vor.u32 %v3538, %v3541
        %v3544 = vshrl.u32 %v3423, 16
        %v3546 = vrot.slane %v3544, 4
        %v3547 = vshll.u32 %v3423, 16
        %v3549 = vrot.slane %v3547, 5
        %v3550 = vor.u32 %v3546, %v3549
        %v3551 = vsel %vm1922, %v3542, %v3550
        %v3553 = vshrl.u32 %v3054, 16
        %v3555 = vrot.slane %v3553, 4
        %v3556 = vshll.u32 %v3054, 16
        %v3558 = vrot.slane %v3556, 5
        %v3559 = vor.u32 %v3555, %v3558
        %v3561 = vshrl.u32 %v3424, 16
        %v3563 = vrot.slane %v3561, 4
        %v3564 = vshll.u32 %v3424, 16
        %v3566 = vrot.slane %v3564, 5
        %v3567 = vor.u32 %v3563, %v3566
        %v3568 = vsel %vm1922, %v3559, %v3567
        %v3570 = vshrl.u32 %v3055, 16
        %v3572 = vrot.slane %v3570, 4
        %v3573 = vshll.u32 %v3055, 16
        %v3575 = vrot.slane %v3573, 5
        %v3576 = vor.u32 %v3572, %v3575
        %v3578 = vshrl.u32 %v3425, 16
        %v3580 = vrot.slane %v3578, 4
        %v3581 = vshll.u32 %v3425, 16
        %v3583 = vrot.slane %v3581, 5
        %v3584 = vor.u32 %v3580, %v3583
        %v3585 = vsel %vm1922, %v3576, %v3584
        %v3587 = vshrl.u32 %v3056, 16
        %v3589 = vrot.slane %v3587, 4
        %v3590 = vshll.u32 %v3056, 16
        %v3592 = vrot.slane %v3590, 5
        %v3593 = vor.u32 %v3589, %v3592
        %v3595 = vshrl.u32 %v3426, 16
        %v3597 = vrot.slane %v3595, 4
        %v3598 = vshll.u32 %v3426, 16
        %v3600 = vrot.slane %v3598, 5
        %v3601 = vor.u32 %v3597, %v3600
        %v3602 = vsel %vm1922, %v3593, %v3601
        %v3604 = vshrl.u32 %v3057, 16
        %v3606 = vrot.slane %v3604, 4
        %v3607 = vshll.u32 %v3057, 16
        %v3609 = vrot.slane %v3607, 5
        %v3610 = vor.u32 %v3606, %v3609
        %v3612 = vshrl.u32 %v3427, 16
        %v3614 = vrot.slane %v3612, 4
        %v3615 = vshll.u32 %v3427, 16
        %v3617 = vrot.slane %v3615, 5
        %v3618 = vor.u32 %v3614, %v3617
        %v3619 = vsel %vm1922, %v3610, %v3618
        %v3621 = vshrl.u32 %v3058, 16
        %v3623 = vrot.slane %v3621, 4
        %v3624 = vshll.u32 %v3058, 16
        %v3626 = vrot.slane %v3624, 5
        %v3627 = vor.u32 %v3623, %v3626
        %v3629 = vshrl.u32 %v3428, 16
        %v3631 = vrot.slane %v3629, 4
        %v3632 = vshll.u32 %v3428, 16
        %v3634 = vrot.slane %v3632, 5
        %v3635 = vor.u32 %v3631, %v3634
        %v3636 = vsel %vm1922, %v3627, %v3635
        %v3638 = vshrl.u32 %v3059, 16
        %v3640 = vrot.slane %v3638, 4
        %v3641 = vshll.u32 %v3059, 16
        %v3643 = vrot.slane %v3641, 5
        %v3644 = vor.u32 %v3640, %v3643
        %v3646 = vshrl.u32 %v3429, 16
        %v3648 = vrot.slane %v3646, 4
        %v3649 = vshll.u32 %v3429, 16
        %v3651 = vrot.slane %v3649, 5
        %v3652 = vor.u32 %v3648, %v3651
        %v3653 = vsel %vm1922, %v3644, %v3652
        %v3655 = vshrl.u32 %v3060, 16
        %v3657 = vrot.slane %v3655, 4
        %v3658 = vshll.u32 %v3060, 16
        %v3660 = vrot.slane %v3658, 5
        %v3661 = vor.u32 %v3657, %v3660
        %v3663 = vshrl.u32 %v3430, 16
        %v3665 = vrot.slane %v3663, 4
        %v3666 = vshll.u32 %v3430, 16
        %v3668 = vrot.slane %v3666, 5
        %v3669 = vor.u32 %v3665, %v3668
        %v3670 = vsel %vm1922, %v3661, %v3669
        %v3672 = vshrl.u32 %v3061, 16
        %v3674 = vrot.slane %v3672, 4
        %v3675 = vshll.u32 %v3061, 16
        %v3677 = vrot.slane %v3675, 5
        %v3678 = vor.u32 %v3674, %v3677
        %v3680 = vshrl.u32 %v3431, 16
        %v3682 = vrot.slane %v3680, 4
        %v3683 = vshll.u32 %v3431, 16
        %v3685 = vrot.slane %v3683, 5
        %v3686 = vor.u32 %v3682, %v3685
        %v3687 = vsel %vm1922, %v3678, %v3686
        %v3689 = vshrl.u32 %v3062, 16
        %v3691 = vrot.slane %v3689, 4
        %v3692 = vshll.u32 %v3062, 16
        %v3694 = vrot.slane %v3692, 5
        %v3695 = vor.u32 %v3691, %v3694
        %v3697 = vshrl.u32 %v3432, 16
        %v3699 = vrot.slane %v3697, 4
        %v3700 = vshll.u32 %v3432, 16
        %v3702 = vrot.slane %v3700, 5
        %v3703 = vor.u32 %v3699, %v3702
        %v3704 = vsel %vm1922, %v3695, %v3703
        %s3721 = scalar_lea.vmem [#allocation8], 320
        %v3722 = vld [vmem:[%s3721] sm:$0xf]
        %v3723 = vld [vmem:[%s3721 + $0x4] sm:$0xf]
        %v3724 = vld [vmem:[%s3721 + $0x8] sm:$0xf]
        %v3725 = vld [vmem:[%s3721 + $0xc] sm:$0xf]
        %v3726 = vld [vmem:[%s3721 + $0x10] sm:$0xf]
        %v3727 = vld [vmem:[%s3721 + $0x14] sm:$0xf]
        %v3728 = vld [vmem:[%s3721 + $0x18] sm:$0xf]
        %v3729 = vld [vmem:[%s3721 + $0x1c] sm:$0xf]
        %v3730 = vld [vmem:[%s3721 + $0x20] sm:$0xf]
        %v3731 = vld [vmem:[%s3721 + $0x24] sm:$0xf]
        %v3732 = vld [vmem:[%s3721 + $0x28] sm:$0xf]
        %v3733 = vld [vmem:[%s3721 + $0x2c] sm:$0xf]
        %v3734 = vld [vmem:[%s3721 + $0x30] sm:$0xf]
        %v3735 = vld [vmem:[%s3721 + $0x34] sm:$0xf]
        %v3736 = vld [vmem:[%s3721 + $0x38] sm:$0xf]
        %v3737 = vld [vmem:[%s3721 + $0x3c] sm:$0xf]
        %v3754 = vunpack.c.l.b16 %v3722
        %v3755 = vunpack.c.l.b16 %v3723
        %v3756 = vunpack.c.l.b16 %v3724
        %v3757 = vunpack.c.l.b16 %v3725
        %v3758 = vunpack.c.l.b16 %v3726
        %v3759 = vunpack.c.l.b16 %v3727
        %v3760 = vunpack.c.l.b16 %v3728
        %v3761 = vunpack.c.l.b16 %v3729
        %v3762 = vunpack.c.l.b16 %v3730
        %v3763 = vunpack.c.l.b16 %v3731
        %v3764 = vunpack.c.l.b16 %v3732
        %v3765 = vunpack.c.l.b16 %v3733
        %v3766 = vunpack.c.l.b16 %v3734
        %v3767 = vunpack.c.l.b16 %v3735
        %v3768 = vunpack.c.l.b16 %v3736
        %v3769 = vunpack.c.l.b16 %v3737
        %v3770 = vpack.c.b16 %v3755, %v3754
        %v3771 = vpack.c.b16 %v3757, %v3756
        %v3772 = vpack.c.b16 %v3759, %v3758
        %v3773 = vpack.c.b16 %v3761, %v3760
        %v3774 = vpack.c.b16 %v3763, %v3762
        %v3775 = vpack.c.b16 %v3765, %v3764
        %v3776 = vpack.c.b16 %v3767, %v3766
        %v3777 = vpack.c.b16 %v3769, %v3768
        %3786 = vmatprep.subr.bf16.mxu0 0
        %3787 = vmatpush1.bf16.msra.mxu0 %v3770
        %3788 = vmatprep.subr.bf16.mxu0 0
        %3789 = vmatpush1.bf16.msra.mxu0 %v3771
        %3790 = vmatprep.subr.bf16.mxu0 0
        %3791 = vmatpush1.bf16.msra.mxu0 %v3772
        %3792 = vmatprep.subr.bf16.mxu0 0
        %3793 = vmatpush1.bf16.msra.mxu0 %v3773
        %3794 = vmatprep.subr.bf16.mxu0 0
        %3795 = vmatpush1.bf16.msra.mxu0 %v3774
        %3796 = vmatprep.subr.bf16.mxu0 0
        %3797 = vmatpush1.bf16.msra.mxu0 %v3775
        %3798 = vmatprep.subr.bf16.mxu0 0
        %3799 = vmatpush1.bf16.msra.mxu0 %v3776
        %3800 = vmatprep.subr.bf16.mxu0 0
        %3801 = vmatpush1.bf16.msra.mxu0 %v3777
        %3802 = vmatprep.subr.bf16.mxu0 0
        %3803 = vmatpush1.bf16.msra.mxu0 0
        %3804 = vmatprep.subr.bf16.mxu0 0
        %3805 = vmatpush1.bf16.msra.mxu0 0
        %3806 = vmatprep.subr.bf16.mxu0 0
        %3807 = vmatpush1.bf16.msra.mxu0 0
        %3808 = vmatprep.subr.bf16.mxu0 0
        %3809 = vmatpush1.bf16.msra.mxu0 0
        %3810 = vmatprep.subr.bf16.mxu0 0
        %3811 = vmatpush1.bf16.msra.mxu0 0
        %3812 = vmatprep.subr.bf16.mxu0 0
        %3813 = vmatpush1.bf16.msra.mxu0 0
        %3814 = vmatprep.subr.bf16.mxu0 0
        %3815 = vmatpush1.bf16.msra.mxu0 0
        %3816 = vmatprep.subr.bf16.mxu0 0
        %3817 = vmatpush1.bf16.msra.mxu0 0
        %3818 = vmatprep.mubr.bf16.mxu0 0
        %3819 = vmatmul.mubr.bf16.gmra.mrb[0].mxu0 %v3449
        %v3820 = vpop.f32.mrb[0].mxu0
        %v3821 = vadd.f32 0.0, %v3820
        %v3822 = vpop.f32.mrb[0].mxu0
        %v3823 = vpop.f32.mrb[0].mxu0
        %v3824 = vadd.f32 0.0, %v3823
        %v3825 = vpop.f32.mrb[0].mxu0
        %3826 = vmatprep.mubr.bf16.mxu0 0
        %3827 = vmatmul.mubr.bf16.gmra.mrb[0].mxu0 %v3466
        %v3828 = vpop.f32.mrb[0].mxu0
        %v3829 = vadd.f32 0.0, %v3828
        %v3830 = vpop.f32.mrb[0].mxu0
        %v3831 = vpop.f32.mrb[0].mxu0
        %v3832 = vadd.f32 0.0, %v3831
        %v3833 = vpop.f32.mrb[0].mxu0
        %3834 = vmatprep.mubr.bf16.mxu0 0
        %3835 = vmatmul.mubr.bf16.gmra.mrb[0].mxu0 %v3483
        %v3836 = vpop.f32.mrb[0].mxu0
        %v3837 = vadd.f32 0.0, %v3836
        %v3838 = vpop.f32.mrb[0].mxu0
        %v3839 = vpop.f32.mrb[0].mxu0
        %v3840 = vadd.f32 0.0, %v3839
        %v3841 = vpop.f32.mrb[0].mxu0
        %3842 = vmatprep.mubr.bf16.mxu0 0
        %3843 = vmatmul.mubr.bf16.gmra.mrb[0].mxu0 %v3500
        %v3844 = vpop.f32.mrb[0].mxu0
        %v3845 = vadd.f32 0.0, %v3844
        %v3846 = vpop.f32.mrb[0].mxu0
        %v3847 = vpop.f32.mrb[0].mxu0
        %v3848 = vadd.f32 0.0, %v3847
        %v3849 = vpop.f32.mrb[0].mxu0
        %3850 = vmatprep.mubr.bf16.mxu0 0
        %3851 = vmatmul.mubr.bf16.gmra.mrb[0].mxu0 %v3517
        %v3852 = vpop.f32.mrb[0].mxu0
        %v3853 = vadd.f32 0.0, %v3852
        %v3854 = vpop.f32.mrb[0].mxu0
        %v3855 = vpop.f32.mrb[0].mxu0
        %v3856 = vadd.f32 0.0, %v3855
        %v3857 = vpop.f32.mrb[0].mxu0
        %3858 = vmatprep.mubr.bf16.mxu0 0
        %3859 = vmatmul.mubr.bf16.gmra.mrb[0].mxu0 %v3534
        %v3860 = vpop.f32.mrb[0].mxu0
        %v3861 = vadd.f32 0.0, %v3860
        %v3862 = vpop.f32.mrb[0].mxu0
        %v3863 = vpop.f32.mrb[0].mxu0
        %v3864 = vadd.f32 0.0, %v3863
        %v3865 = vpop.f32.mrb[0].mxu0
        %3866 = vmatprep.mubr.bf16.mxu0 0
        %3867 = vmatmul.mubr.bf16.gmra.mrb[0].mxu0 %v3551
        %v3868 = vpop.f32.mrb[0].mxu0
        %v3869 = vadd.f32 0.0, %v3868
        %v3870 = vpop.f32.mrb[0].mxu0
        %v3871 = vpop.f32.mrb[0].mxu0
        %v3872 = vadd.f32 0.0, %v3871
        %v3873 = vpop.f32.mrb[0].mxu0
        %3874 = vmatprep.mubr.bf16.mxu0 0
        %3875 = vmatmul.mubr.bf16.gmra.mrb[0].mxu0 %v3568
        %v3876 = vpop.f32.mrb[0].mxu0
        %v3877 = vadd.f32 0.0, %v3876
        %v3878 = vpop.f32.mrb[0].mxu0
        %v3879 = vpop.f32.mrb[0].mxu0
        %v3880 = vadd.f32 0.0, %v3879
        %v3881 = vpop.f32.mrb[0].mxu0
        %3882 = vmatprep.mubr.bf16.mxu0 0
        %3883 = vmatmul.mubr.bf16.gmra.mrb[0].mxu0 %v3585
        %v3884 = vpop.f32.mrb[0].mxu0
        %v3885 = vadd.f32 0.0, %v3884
        %v3886 = vpop.f32.mrb[0].mxu0
        %v3887 = vpop.f32.mrb[0].mxu0
        %v3888 = vadd.f32 0.0, %v3887
        %v3889 = vpop.f32.mrb[0].mxu0
        %3890 = vmatprep.mubr.bf16.mxu0 0
        %3891 = vmatmul.mubr.bf16.gmra.mrb[0].mxu0 %v3602
        %v3892 = vpop.f32.mrb[0].mxu0
        %v3893 = vadd.f32 0.0, %v3892
        %v3894 = vpop.f32.mrb[0].mxu0
        %v3895 = vpop.f32.mrb[0].mxu0
        %v3896 = vadd.f32 0.0, %v3895
        %v3897 = vpop.f32.mrb[0].mxu0
        %3898 = vmatprep.mubr.bf16.mxu0 0
        %3899 = vmatmul.mubr.bf16.gmra.mrb[0].mxu0 %v3619
        %v3900 = vpop.f32.mrb[0].mxu0
        %v3901 = vadd.f32 0.0, %v3900
        %v3902 = vpop.f32.mrb[0].mxu0
        %v3903 = vpop.f32.mrb[0].mxu0
        %v3904 = vadd.f32 0.0, %v3903
        %v3905 = vpop.f32.mrb[0].mxu0
        %3906 = vmatprep.mubr.bf16.mxu0 0
        %3907 = vmatmul.mubr.bf16.gmra.mrb[0].mxu0 %v3636
        %v3908 = vpop.f32.mrb[0].mxu0
        %v3909 = vadd.f32 0.0, %v3908
        %v3910 = vpop.f32.mrb[0].mxu0
        %v3911 = vpop.f32.mrb[0].mxu0
        %v3912 = vadd.f32 0.0, %v3911
        %v3913 = vpop.f32.mrb[0].mxu0
        %3914 = vmatprep.mubr.bf16.mxu0 0
        %3915 = vmatmul.mubr.bf16.gmra.mrb[0].mxu0 %v3653
        %v3916 = vpop.f32.mrb[0].mxu0
        %v3917 = vadd.f32 0.0, %v3916
        %v3918 = vpop.f32.mrb[0].mxu0
        %v3919 = vpop.f32.mrb[0].mxu0
        %v3920 = vadd.f32 0.0, %v3919
        %v3921 = vpop.f32.mrb[0].mxu0
        %3922 = vmatprep.mubr.bf16.mxu0 0
        %3923 = vmatmul.mubr.bf16.gmra.mrb[0].mxu0 %v3670
        %v3924 = vpop.f32.mrb[0].mxu0
        %v3925 = vadd.f32 0.0, %v3924
        %v3926 = vpop.f32.mrb[0].mxu0
        %v3927 = vpop.f32.mrb[0].mxu0
        %v3928 = vadd.f32 0.0, %v3927
        %v3929 = vpop.f32.mrb[0].mxu0
        %3930 = vmatprep.mubr.bf16.mxu0 0
        %3931 = vmatmul.mubr.bf16.gmra.mrb[0].mxu0 %v3687
        %v3932 = vpop.f32.mrb[0].mxu0
        %v3933 = vadd.f32 0.0, %v3932
        %v3934 = vpop.f32.mrb[0].mxu0
        %v3935 = vpop.f32.mrb[0].mxu0
        %v3936 = vadd.f32 0.0, %v3935
        %v3937 = vpop.f32.mrb[0].mxu0
        %3938 = vmatprep.mubr.bf16.mxu0 0
        %3939 = vmatmul.mubr.bf16.gmra.mrb[0].mxu0 %v3704
        %v3940 = vpop.f32.mrb[0].mxu0
        %v3941 = vadd.f32 0.0, %v3940
        %v3942 = vpop.f32.mrb[0].mxu0
        %v3943 = vpop.f32.mrb[0].mxu0
        %v3944 = vadd.f32 0.0, %v3943
        %v3945 = vpop.f32.mrb[0].mxu0
        %3946 = vdwg.mxu0
        %v3947 = vadd.f32 %v3385, %v3821
        %v3948 = vadd.f32 %v3386, %v3824
        %v3949 = vadd.f32 %v3387, %v3829
        %v3950 = vadd.f32 %v3388, %v3832
        %v3951 = vadd.f32 %v3389, %v3837
        %v3952 = vadd.f32 %v3390, %v3840
        %v3953 = vadd.f32 %v3391, %v3845
        %v3954 = vadd.f32 %v3392, %v3848
        %v3955 = vadd.f32 %v3393, %v3853
        %v3956 = vadd.f32 %v3394, %v3856
        %v3957 = vadd.f32 %v3395, %v3861
        %v3958 = vadd.f32 %v3396, %v3864
        %v3959 = vadd.f32 %v3397, %v3869
        %v3960 = vadd.f32 %v3398, %v3872
        %v3961 = vadd.f32 %v3399, %v3877
        %v3962 = vadd.f32 %v3400, %v3880
        %v3963 = vadd.f32 %v3401, %v3885
        %v3964 = vadd.f32 %v3402, %v3888
        %v3965 = vadd.f32 %v3403, %v3893
        %v3966 = vadd.f32 %v3404, %v3896
        %v3967 = vadd.f32 %v3405, %v3901
        %v3968 = vadd.f32 %v3406, %v3904
        %v3969 = vadd.f32 %v3407, %v3909
        %v3970 = vadd.f32 %v3408, %v3912
        %v3971 = vadd.f32 %v3409, %v3917
        %v3972 = vadd.f32 %v3410, %v3920
        %v3973 = vadd.f32 %v3411, %v3925
        %v3974 = vadd.f32 %v3412, %v3928
        %v3975 = vadd.f32 %v3413, %v3933
        %v3976 = vadd.f32 %v3414, %v3936
        %v3977 = vadd.f32 %v3415, %v3941
        %v3978 = vadd.f32 %v3416, %v3944
        %s3979 = scalar_lea.vmem [#allocation2], 32
        %v3980 = vld [vmem:[%s3979] sm:$0xf8]
        %v3981 = vld [vmem:[%s3979 + $0x8] sm:$0xf]
        %v3982 = vld [vmem:[%s3979 + $0x10] sm:$0xf8]
        %v3983 = vld [vmem:[%s3979 + $0x18] sm:$0xf]
        %v3984 = vld [vmem:[%s3979 + $0x20] sm:$0xf8]
        %v3985 = vld [vmem:[%s3979 + $0x28] sm:$0xf]
        %v3986 = vld [vmem:[%s3979 + $0x30] sm:$0xf8]
        %v3987 = vld [vmem:[%s3979 + $0x38] sm:$0xf]
        %v3988 = vld [vmem:[%s3979 + $0x40] sm:$0xf8]
        %v3989 = vld [vmem:[%s3979 + $0x48] sm:$0xf]
        %v3990 = vld [vmem:[%s3979 + $0x50] sm:$0xf8]
        %v3991 = vld [vmem:[%s3979 + $0x58] sm:$0xf]
        %v3992 = vld [vmem:[%s3979 + $0x60] sm:$0xf8]
        %v3993 = vld [vmem:[%s3979 + $0x68] sm:$0xf]
        %v3994 = vld [vmem:[%s3979 + $0x70] sm:$0xf8]
        %v3995 = vld [vmem:[%s3979 + $0x78] sm:$0xf]
        %v3996 = vld [vmem:[%s3979 + $0x80] sm:$0xf8]
        %v3997 = vld [vmem:[%s3979 + $0x88] sm:$0xf]
        %v3998 = vld [vmem:[%s3979 + $0x90] sm:$0xf8]
        %v3999 = vld [vmem:[%s3979 + $0x98] sm:$0xf]
        %v4000 = vld [vmem:[%s3979 + $0xa0] sm:$0xf8]
        %v4001 = vld [vmem:[%s3979 + $0xa8] sm:$0xf]
        %v4002 = vld [vmem:[%s3979 + $0xb0] sm:$0xf8]
        %v4003 = vld [vmem:[%s3979 + $0xb8] sm:$0xf]
        %v4004 = vld [vmem:[%s3979 + $0xc0] sm:$0xf8]
        %v4005 = vld [vmem:[%s3979 + $0xc8] sm:$0xf]
        %v4006 = vld [vmem:[%s3979 + $0xd0] sm:$0xf8]
        %v4007 = vld [vmem:[%s3979 + $0xd8] sm:$0xf]
        %v4008 = vld [vmem:[%s3979 + $0xe0] sm:$0xf8]
        %v4009 = vld [vmem:[%s3979 + $0xe8] sm:$0xf]
        %v4010 = vld [vmem:[%s3979 + $0xf0] sm:$0xf8]
        %v4011 = vld [vmem:[%s3979 + $0xf8] sm:$0xf]
        %v4013 = vshrl.u32 %v3980, 16
        %v4015 = vrot.slane %v4013, 3
        %v4016 = vshll.u32 %v3980, 16
        %v4018 = vrot.slane %v4016, 4
        %v4019 = vor.u32 %v4015, %v4018
        %v4021 = vshrl.u32 %v3981, 16
        %v4023 = vrot.slane %v4021, 3
        %v4024 = vshll.u32 %v3981, 16
        %v4026 = vrot.slane %v4024, 4
        %v4027 = vor.u32 %v4023, %v4026
        %v4028 = vsel %vm869, %v4019, %v4027
        %v4030 = vshrl.u32 %v3982, 16
        %v4032 = vrot.slane %v4030, 3
        %v4033 = vshll.u32 %v3982, 16
        %v4035 = vrot.slane %v4033, 4
        %v4036 = vor.u32 %v4032, %v4035
        %v4038 = vshrl.u32 %v3983, 16
        %v4040 = vrot.slane %v4038, 3
        %v4041 = vshll.u32 %v3983, 16
        %v4043 = vrot.slane %v4041, 4
        %v4044 = vor.u32 %v4040, %v4043
        %v4045 = vsel %vm869, %v4036, %v4044
        %v4047 = vshrl.u32 %v3984, 16
        %v4049 = vrot.slane %v4047, 3
        %v4050 = vshll.u32 %v3984, 16
        %v4052 = vrot.slane %v4050, 4
        %v4053 = vor.u32 %v4049, %v4052
        %v4055 = vshrl.u32 %v3985, 16
        %v4057 = vrot.slane %v4055, 3
        %v4058 = vshll.u32 %v3985, 16
        %v4060 = vrot.slane %v4058, 4
        %v4061 = vor.u32 %v4057, %v4060
        %v4062 = vsel %vm869, %v4053, %v4061
        %v4064 = vshrl.u32 %v3986, 16
        %v4066 = vrot.slane %v4064, 3
        %v4067 = vshll.u32 %v3986, 16
        %v4069 = vrot.slane %v4067, 4
        %v4070 = vor.u32 %v4066, %v4069
        %v4072 = vshrl.u32 %v3987, 16
        %v4074 = vrot.slane %v4072, 3
        %v4075 = vshll.u32 %v3987, 16
        %v4077 = vrot.slane %v4075, 4
        %v4078 = vor.u32 %v4074, %v4077
        %v4079 = vsel %vm869, %v4070, %v4078
        %v4081 = vshrl.u32 %v3988, 16
        %v4083 = vrot.slane %v4081, 3
        %v4084 = vshll.u32 %v3988, 16
        %v4086 = vrot.slane %v4084, 4
        %v4087 = vor.u32 %v4083, %v4086
        %v4089 = vshrl.u32 %v3989, 16
        %v4091 = vrot.slane %v4089, 3
        %v4092 = vshll.u32 %v3989, 16
        %v4094 = vrot.slane %v4092, 4
        %v4095 = vor.u32 %v4091, %v4094
        %v4096 = vsel %vm869, %v4087, %v4095
        %v4098 = vshrl.u32 %v3990, 16
        %v4100 = vrot.slane %v4098, 3
        %v4101 = vshll.u32 %v3990, 16
        %v4103 = vrot.slane %v4101, 4
        %v4104 = vor.u32 %v4100, %v4103
        %v4106 = vshrl.u32 %v3991, 16
        %v4108 = vrot.slane %v4106, 3
        %v4109 = vshll.u32 %v3991, 16
        %v4111 = vrot.slane %v4109, 4
        %v4112 = vor.u32 %v4108, %v4111
        %v4113 = vsel %vm869, %v4104, %v4112
        %v4115 = vshrl.u32 %v3992, 16
        %v4117 = vrot.slane %v4115, 3
        %v4118 = vshll.u32 %v3992, 16
        %v4120 = vrot.slane %v4118, 4
        %v4121 = vor.u32 %v4117, %v4120
        %v4123 = vshrl.u32 %v3993, 16
        %v4125 = vrot.slane %v4123, 3
        %v4126 = vshll.u32 %v3993, 16
        %v4128 = vrot.slane %v4126, 4
        %v4129 = vor.u32 %v4125, %v4128
        %v4130 = vsel %vm869, %v4121, %v4129
        %v4132 = vshrl.u32 %v3994, 16
        %v4134 = vrot.slane %v4132, 3
        %v4135 = vshll.u32 %v3994, 16
        %v4137 = vrot.slane %v4135, 4
        %v4138 = vor.u32 %v4134, %v4137
        %v4140 = vshrl.u32 %v3995, 16
        %v4142 = vrot.slane %v4140, 3
        %v4143 = vshll.u32 %v3995, 16
        %v4145 = vrot.slane %v4143, 4
        %v4146 = vor.u32 %v4142, %v4145
        %v4147 = vsel %vm869, %v4138, %v4146
        %v4149 = vshrl.u32 %v3996, 16
        %v4151 = vrot.slane %v4149, 3
        %v4152 = vshll.u32 %v3996, 16
        %v4154 = vrot.slane %v4152, 4
        %v4155 = vor.u32 %v4151, %v4154
        %v4157 = vshrl.u32 %v3997, 16
        %v4159 = vrot.slane %v4157, 3
        %v4160 = vshll.u32 %v3997, 16
        %v4162 = vrot.slane %v4160, 4
        %v4163 = vor.u32 %v4159, %v4162
        %v4164 = vsel %vm869, %v4155, %v4163
        %v4166 = vshrl.u32 %v3998, 16
        %v4168 = vrot.slane %v4166, 3
        %v4169 = vshll.u32 %v3998, 16
        %v4171 = vrot.slane %v4169, 4
        %v4172 = vor.u32 %v4168, %v4171
        %v4174 = vshrl.u32 %v3999, 16
        %v4176 = vrot.slane %v4174, 3
        %v4177 = vshll.u32 %v3999, 16
        %v4179 = vrot.slane %v4177, 4
        %v4180 = vor.u32 %v4176, %v4179
        %v4181 = vsel %vm869, %v4172, %v4180
        %v4183 = vshrl.u32 %v4000, 16
        %v4185 = vrot.slane %v4183, 3
        %v4186 = vshll.u32 %v4000, 16
        %v4188 = vrot.slane %v4186, 4
        %v4189 = vor.u32 %v4185, %v4188
        %v4191 = vshrl.u32 %v4001, 16
        %v4193 = vrot.slane %v4191, 3
        %v4194 = vshll.u32 %v4001, 16
        %v4196 = vrot.slane %v4194, 4
        %v4197 = vor.u32 %v4193, %v4196
        %v4198 = vsel %vm869, %v4189, %v4197
        %v4200 = vshrl.u32 %v4002, 16
        %v4202 = vrot.slane %v4200, 3
        %v4203 = vshll.u32 %v4002, 16
        %v4205 = vrot.slane %v4203, 4
        %v4206 = vor.u32 %v4202, %v4205
        %v4208 = vshrl.u32 %v4003, 16
        %v4210 = vrot.slane %v4208, 3
        %v4211 = vshll.u32 %v4003, 16
        %v4213 = vrot.slane %v4211, 4
        %v4214 = vor.u32 %v4210, %v4213
        %v4215 = vsel %vm869, %v4206, %v4214
        %v4217 = vshrl.u32 %v4004, 16
        %v4219 = vrot.slane %v4217, 3
        %v4220 = vshll.u32 %v4004, 16
        %v4222 = vrot.slane %v4220, 4
        %v4223 = vor.u32 %v4219, %v4222
        %v4225 = vshrl.u32 %v4005, 16
        %v4227 = vrot.slane %v4225, 3
        %v4228 = vshll.u32 %v4005, 16
        %v4230 = vrot.slane %v4228, 4
        %v4231 = vor.u32 %v4227, %v4230
        %v4232 = vsel %vm869, %v4223, %v4231
        %v4234 = vshrl.u32 %v4006, 16
        %v4236 = vrot.slane %v4234, 3
        %v4237 = vshll.u32 %v4006, 16
        %v4239 = vrot.slane %v4237, 4
        %v4240 = vor.u32 %v4236, %v4239
        %v4242 = vshrl.u32 %v4007, 16
        %v4244 = vrot.slane %v4242, 3
        %v4245 = vshll.u32 %v4007, 16
        %v4247 = vrot.slane %v4245, 4
        %v4248 = vor.u32 %v4244, %v4247
        %v4249 = vsel %vm869, %v4240, %v4248
        %v4251 = vshrl.u32 %v4008, 16
        %v4253 = vrot.slane %v4251, 3
        %v4254 = vshll.u32 %v4008, 16
        %v4256 = vrot.slane %v4254, 4
        %v4257 = vor.u32 %v4253, %v4256
        %v4259 = vshrl.u32 %v4009, 16
        %v4261 = vrot.slane %v4259, 3
        %v4262 = vshll.u32 %v4009, 16
        %v4264 = vrot.slane %v4262, 4
        %v4265 = vor.u32 %v4261, %v4264
        %v4266 = vsel %vm869, %v4257, %v4265
        %v4268 = vshrl.u32 %v4010, 16
        %v4270 = vrot.slane %v4268, 3
        %v4271 = vshll.u32 %v4010, 16
        %v4273 = vrot.slane %v4271, 4
        %v4274 = vor.u32 %v4270, %v4273
        %v4276 = vshrl.u32 %v4011, 16
        %v4278 = vrot.slane %v4276, 3
        %v4279 = vshll.u32 %v4011, 16
        %v4281 = vrot.slane %v4279, 4
        %v4282 = vor.u32 %v4278, %v4281
        %v4283 = vsel %vm869, %v4274, %v4282
        %s4300 = scalar_lea.vmem [#allocation8], 384
        %v4301 = vld [vmem:[%s4300] sm:$0xf]
        %v4302 = vld [vmem:[%s4300 + $0x4] sm:$0xf]
        %v4303 = vld [vmem:[%s4300 + $0x8] sm:$0xf]
        %v4304 = vld [vmem:[%s4300 + $0xc] sm:$0xf]
        %v4305 = vld [vmem:[%s4300 + $0x10] sm:$0xf]
        %v4306 = vld [vmem:[%s4300 + $0x14] sm:$0xf]
        %v4307 = vld [vmem:[%s4300 + $0x18] sm:$0xf]
        %v4308 = vld [vmem:[%s4300 + $0x1c] sm:$0xf]
        %v4309 = vld [vmem:[%s4300 + $0x20] sm:$0xf]
        %v4310 = vld [vmem:[%s4300 + $0x24] sm:$0xf]
        %v4311 = vld [vmem:[%s4300 + $0x28] sm:$0xf]
        %v4312 = vld [vmem:[%s4300 + $0x2c] sm:$0xf]
        %v4313 = vld [vmem:[%s4300 + $0x30] sm:$0xf]
        %v4314 = vld [vmem:[%s4300 + $0x34] sm:$0xf]
        %v4315 = vld [vmem:[%s4300 + $0x38] sm:$0xf]
        %v4316 = vld [vmem:[%s4300 + $0x3c] sm:$0xf]
        %v4333 = vunpack.c.l.b16 %v4301
        %v4334 = vunpack.c.l.b16 %v4302
        %v4335 = vunpack.c.l.b16 %v4303
        %v4336 = vunpack.c.l.b16 %v4304
        %v4337 = vunpack.c.l.b16 %v4305
        %v4338 = vunpack.c.l.b16 %v4306
        %v4339 = vunpack.c.l.b16 %v4307
        %v4340 = vunpack.c.l.b16 %v4308
        %v4341 = vunpack.c.l.b16 %v4309
        %v4342 = vunpack.c.l.b16 %v4310
        %v4343 = vunpack.c.l.b16 %v4311
        %v4344 = vunpack.c.l.b16 %v4312
        %v4345 = vunpack.c.l.b16 %v4313
        %v4346 = vunpack.c.l.b16 %v4314
        %v4347 = vunpack.c.l.b16 %v4315
        %v4348 = vunpack.c.l.b16 %v4316
        %v4349 = vpack.c.b16 %v4334, %v4333
        %v4350 = vpack.c.b16 %v4336, %v4335
        %v4351 = vpack.c.b16 %v4338, %v4337
        %v4352 = vpack.c.b16 %v4340, %v4339
        %v4353 = vpack.c.b16 %v4342, %v4341
        %v4354 = vpack.c.b16 %v4344, %v4343
        %v4355 = vpack.c.b16 %v4346, %v4345
        %v4356 = vpack.c.b16 %v4348, %v4347
        %4365 = vmatprep.subr.bf16.mxu0 0
        %4366 = vmatpush1.bf16.msra.mxu0 %v4349
        %4367 = vmatprep.subr.bf16.mxu0 0
        %4368 = vmatpush1.bf16.msra.mxu0 %v4350
        %4369 = vmatprep.subr.bf16.mxu0 0
        %4370 = vmatpush1.bf16.msra.mxu0 %v4351
        %4371 = vmatprep.subr.bf16.mxu0 0
        %4372 = vmatpush1.bf16.msra.mxu0 %v4352
        %4373 = vmatprep.subr.bf16.mxu0 0
        %4374 = vmatpush1.bf16.msra.mxu0 %v4353
        %4375 = vmatprep.subr.bf16.mxu0 0
        %4376 = vmatpush1.bf16.msra.mxu0 %v4354
        %4377 = vmatprep.subr.bf16.mxu0 0
        %4378 = vmatpush1.bf16.msra.mxu0 %v4355
        %4379 = vmatprep.subr.bf16.mxu0 0
        %4380 = vmatpush1.bf16.msra.mxu0 %v4356
        %4381 = vmatprep.subr.bf16.mxu0 0
        %4382 = vmatpush1.bf16.msra.mxu0 0
        %4383 = vmatprep.subr.bf16.mxu0 0
        %4384 = vmatpush1.bf16.msra.mxu0 0
        %4385 = vmatprep.subr.bf16.mxu0 0
        %4386 = vmatpush1.bf16.msra.mxu0 0
        %4387 = vmatprep.subr.bf16.mxu0 0
        %4388 = vmatpush1.bf16.msra.mxu0 0
        %4389 = vmatprep.subr.bf16.mxu0 0
        %4390 = vmatpush1.bf16.msra.mxu0 0
        %4391 = vmatprep.subr.bf16.mxu0 0
        %4392 = vmatpush1.bf16.msra.mxu0 0
        %4393 = vmatprep.subr.bf16.mxu0 0
        %4394 = vmatpush1.bf16.msra.mxu0 0
        %4395 = vmatprep.subr.bf16.mxu0 0
        %4396 = vmatpush1.bf16.msra.mxu0 0
        %4397 = vmatprep.mubr.bf16.mxu0 0
        %4398 = vmatmul.mubr.bf16.gmra.mrb[0].mxu0 %v4028
        %v4399 = vpop.f32.mrb[0].mxu0
        %v4400 = vadd.f32 0.0, %v4399
        %v4401 = vpop.f32.mrb[0].mxu0
        %v4402 = vpop.f32.mrb[0].mxu0
        %v4403 = vadd.f32 0.0, %v4402
        %v4404 = vpop.f32.mrb[0].mxu0
        %4405 = vmatprep.mubr.bf16.mxu0 0
        %4406 = vmatmul.mubr.bf16.gmra.mrb[0].mxu0 %v4045
        %v4407 = vpop.f32.mrb[0].mxu0
        %v4408 = vadd.f32 0.0, %v4407
        %v4409 = vpop.f32.mrb[0].mxu0
        %v4410 = vpop.f32.mrb[0].mxu0
        %v4411 = vadd.f32 0.0, %v4410
        %v4412 = vpop.f32.mrb[0].mxu0
        %4413 = vmatprep.mubr.bf16.mxu0 0
        %4414 = vmatmul.mubr.bf16.gmra.mrb[0].mxu0 %v4062
        %v4415 = vpop.f32.mrb[0].mxu0
        %v4416 = vadd.f32 0.0, %v4415
        %v4417 = vpop.f32.mrb[0].mxu0
        %v4418 = vpop.f32.mrb[0].mxu0
        %v4419 = vadd.f32 0.0, %v4418
        %v4420 = vpop.f32.mrb[0].mxu0
        %4421 = vmatprep.mubr.bf16.mxu0 0
        %4422 = vmatmul.mubr.bf16.gmra.mrb[0].mxu0 %v4079
        %v4423 = vpop.f32.mrb[0].mxu0
        %v4424 = vadd.f32 0.0, %v4423
        %v4425 = vpop.f32.mrb[0].mxu0
        %v4426 = vpop.f32.mrb[0].mxu0
        %v4427 = vadd.f32 0.0, %v4426
        %v4428 = vpop.f32.mrb[0].mxu0
        %4429 = vmatprep.mubr.bf16.mxu0 0
        %4430 = vmatmul.mubr.bf16.gmra.mrb[0].mxu0 %v4096
        %v4431 = vpop.f32.mrb[0].mxu0
        %v4432 = vadd.f32 0.0, %v4431
        %v4433 = vpop.f32.mrb[0].mxu0
        %v4434 = vpop.f32.mrb[0].mxu0
        %v4435 = vadd.f32 0.0, %v4434
        %v4436 = vpop.f32.mrb[0].mxu0
        %4437 = vmatprep.mubr.bf16.mxu0 0
        %4438 = vmatmul.mubr.bf16.gmra.mrb[0].mxu0 %v4113
        %v4439 = vpop.f32.mrb[0].mxu0
        %v4440 = vadd.f32 0.0, %v4439
        %v4441 = vpop.f32.mrb[0].mxu0
        %v4442 = vpop.f32.mrb[0].mxu0
        %v4443 = vadd.f32 0.0, %v4442
        %v4444 = vpop.f32.mrb[0].mxu0
        %4445 = vmatprep.mubr.bf16.mxu0 0
        %4446 = vmatmul.mubr.bf16.gmra.mrb[0].mxu0 %v4130
        %v4447 = vpop.f32.mrb[0].mxu0
        %v4448 = vadd.f32 0.0, %v4447
        %v4449 = vpop.f32.mrb[0].mxu0
        %v4450 = vpop.f32.mrb[0].mxu0
        %v4451 = vadd.f32 0.0, %v4450
        %v4452 = vpop.f32.mrb[0].mxu0
        %4453 = vmatprep.mubr.bf16.mxu0 0
        %4454 = vmatmul.mubr.bf16.gmra.mrb[0].mxu0 %v4147
        %v4455 = vpop.f32.mrb[0].mxu0
        %v4456 = vadd.f32 0.0, %v4455
        %v4457 = vpop.f32.mrb[0].mxu0
        %v4458 = vpop.f32.mrb[0].mxu0
        %v4459 = vadd.f32 0.0, %v4458
        %v4460 = vpop.f32.mrb[0].mxu0
        %4461 = vmatprep.mubr.bf16.mxu0 0
        %4462 = vmatmul.mubr.bf16.gmra.mrb[0].mxu0 %v4164
        %v4463 = vpop.f32.mrb[0].mxu0
        %v4464 = vadd.f32 0.0, %v4463
        %v4465 = vpop.f32.mrb[0].mxu0
        %v4466 = vpop.f32.mrb[0].mxu0
        %v4467 = vadd.f32 0.0, %v4466
        %v4468 = vpop.f32.mrb[0].mxu0
        %4469 = vmatprep.mubr.bf16.mxu0 0
        %4470 = vmatmul.mubr.bf16.gmra.mrb[0].mxu0 %v4181
        %v4471 = vpop.f32.mrb[0].mxu0
        %v4472 = vadd.f32 0.0, %v4471
        %v4473 = vpop.f32.mrb[0].mxu0
        %v4474 = vpop.f32.mrb[0].mxu0
        %v4475 = vadd.f32 0.0, %v4474
        %v4476 = vpop.f32.mrb[0].mxu0
        %4477 = vmatprep.mubr.bf16.mxu0 0
        %4478 = vmatmul.mubr.bf16.gmra.mrb[0].mxu0 %v4198
        %v4479 = vpop.f32.mrb[0].mxu0
        %v4480 = vadd.f32 0.0, %v4479
        %v4481 = vpop.f32.mrb[0].mxu0
        %v4482 = vpop.f32.mrb[0].mxu0
        %v4483 = vadd.f32 0.0, %v4482
        %v4484 = vpop.f32.mrb[0].mxu0
        %4485 = vmatprep.mubr.bf16.mxu0 0
        %4486 = vmatmul.mubr.bf16.gmra.mrb[0].mxu0 %v4215
        %v4487 = vpop.f32.mrb[0].mxu0
        %v4488 = vadd.f32 0.0, %v4487
        %v4489 = vpop.f32.mrb[0].mxu0
        %v4490 = vpop.f32.mrb[0].mxu0
        %v4491 = vadd.f32 0.0, %v4490
        %v4492 = vpop.f32.mrb[0].mxu0
        %4493 = vmatprep.mubr.bf16.mxu0 0
        %4494 = vmatmul.mubr.bf16.gmra.mrb[0].mxu0 %v4232
        %v4495 = vpop.f32.mrb[0].mxu0
        %v4496 = vadd.f32 0.0, %v4495
        %v4497 = vpop.f32.mrb[0].mxu0
        %v4498 = vpop.f32.mrb[0].mxu0
        %v4499 = vadd.f32 0.0, %v4498
        %v4500 = vpop.f32.mrb[0].mxu0
        %4501 = vmatprep.mubr.bf16.mxu0 0
        %4502 = vmatmul.mubr.bf16.gmra.mrb[0].mxu0 %v4249
        %v4503 = vpop.f32.mrb[0].mxu0
        %v4504 = vadd.f32 0.0, %v4503
        %v4505 = vpop.f32.mrb[0].mxu0
        %v4506 = vpop.f32.mrb[0].mxu0
        %v4507 = vadd.f32 0.0, %v4506
        %v4508 = vpop.f32.mrb[0].mxu0
        %4509 = vmatprep.mubr.bf16.mxu0 0
        %4510 = vmatmul.mubr.bf16.gmra.mrb[0].mxu0 %v4266
        %v4511 = vpop.f32.mrb[0].mxu0
        %v4512 = vadd.f32 0.0, %v4511
        %v4513 = vpop.f32.mrb[0].mxu0
        %v4514 = vpop.f32.mrb[0].mxu0
        %v4515 = vadd.f32 0.0, %v4514
        %v4516 = vpop.f32.mrb[0].mxu0
        %4517 = vmatprep.mubr.bf16.mxu0 0
        %4518 = vmatmul.mubr.bf16.gmra.mrb[0].mxu0 %v4283
        %v4519 = vpop.f32.mrb[0].mxu0
        %v4520 = vadd.f32 0.0, %v4519
        %v4521 = vpop.f32.mrb[0].mxu0
        %v4522 = vpop.f32.mrb[0].mxu0
        %v4523 = vadd.f32 0.0, %v4522
        %v4524 = vpop.f32.mrb[0].mxu0
        %4525 = vdwg.mxu0
        %v4526 = vadd.f32 %v3947, %v4400
        %v4527 = vadd.f32 %v3948, %v4403
        %v4528 = vadd.f32 %v3949, %v4408
        %v4529 = vadd.f32 %v3950, %v4411
        %v4530 = vadd.f32 %v3951, %v4416
        %v4531 = vadd.f32 %v3952, %v4419
        %v4532 = vadd.f32 %v3953, %v4424
        %v4533 = vadd.f32 %v3954, %v4427
        %v4534 = vadd.f32 %v3955, %v4432
        %v4535 = vadd.f32 %v3956, %v4435
        %v4536 = vadd.f32 %v3957, %v4440
        %v4537 = vadd.f32 %v3958, %v4443
        %v4538 = vadd.f32 %v3959, %v4448
        %v4539 = vadd.f32 %v3960, %v4451
        %v4540 = vadd.f32 %v3961, %v4456
        %v4541 = vadd.f32 %v3962, %v4459
        %v4542 = vadd.f32 %v3963, %v4464
        %v4543 = vadd.f32 %v3964, %v4467
        %v4544 = vadd.f32 %v3965, %v4472
        %v4545 = vadd.f32 %v3966, %v4475
        %v4546 = vadd.f32 %v3967, %v4480
        %v4547 = vadd.f32 %v3968, %v4483
        %v4548 = vadd.f32 %v3969, %v4488
        %v4549 = vadd.f32 %v3970, %v4491
        %v4550 = vadd.f32 %v3971, %v4496
        %v4551 = vadd.f32 %v3972, %v4499
        %v4552 = vadd.f32 %v3973, %v4504
        %v4553 = vadd.f32 %v3974, %v4507
        %v4554 = vadd.f32 %v3975, %v4512
        %v4555 = vadd.f32 %v3976, %v4515
        %v4556 = vadd.f32 %v3977, %v4520
        %v4557 = vadd.f32 %v3978, %v4523
        %v4558 = vld [vmem:[%s3979] sm:$0xf0]
        %v4559 = vld [vmem:[%s3979 + $0x10] sm:$0xf0]
        %v4560 = vld [vmem:[%s3979 + $0x20] sm:$0xf0]
        %v4561 = vld [vmem:[%s3979 + $0x30] sm:$0xf0]
        %v4562 = vld [vmem:[%s3979 + $0x40] sm:$0xf0]
        %v4563 = vld [vmem:[%s3979 + $0x50] sm:$0xf0]
        %v4564 = vld [vmem:[%s3979 + $0x60] sm:$0xf0]
        %v4565 = vld [vmem:[%s3979 + $0x70] sm:$0xf0]
        %v4566 = vld [vmem:[%s3979 + $0x80] sm:$0xf0]
        %v4567 = vld [vmem:[%s3979 + $0x90] sm:$0xf0]
        %v4568 = vld [vmem:[%s3979 + $0xa0] sm:$0xf0]
        %v4569 = vld [vmem:[%s3979 + $0xb0] sm:$0xf0]
        %v4570 = vld [vmem:[%s3979 + $0xc0] sm:$0xf0]
        %v4571 = vld [vmem:[%s3979 + $0xd0] sm:$0xf0]
        %v4572 = vld [vmem:[%s3979 + $0xe0] sm:$0xf0]
        %v4573 = vld [vmem:[%s3979 + $0xf0] sm:$0xf0]
        %v4606 = vrot.slane %v4558, 4
        %v4607 = vrot.slane %v3981, 4
        %v4608 = vsel %vm1406, %v4606, %v4607
        %v4609 = vrot.slane %v4559, 4
        %v4610 = vrot.slane %v3983, 4
        %v4611 = vsel %vm1406, %v4609, %v4610
        %v4612 = vrot.slane %v4560, 4
        %v4613 = vrot.slane %v3985, 4
        %v4614 = vsel %vm1406, %v4612, %v4613
        %v4615 = vrot.slane %v4561, 4
        %v4616 = vrot.slane %v3987, 4
        %v4617 = vsel %vm1406, %v4615, %v4616
        %v4618 = vrot.slane %v4562, 4
        %v4619 = vrot.slane %v3989, 4
        %v4620 = vsel %vm1406, %v4618, %v4619
        %v4621 = vrot.slane %v4563, 4
        %v4622 = vrot.slane %v3991, 4
        %v4623 = vsel %vm1406, %v4621, %v4622
        %v4624 = vrot.slane %v4564, 4
        %v4625 = vrot.slane %v3993, 4
        %v4626 = vsel %vm1406, %v4624, %v4625
        %v4627 = vrot.slane %v4565, 4
        %v4628 = vrot.slane %v3995, 4
        %v4629 = vsel %vm1406, %v4627, %v4628
        %v4630 = vrot.slane %v4566, 4
        %v4631 = vrot.slane %v3997, 4
        %v4632 = vsel %vm1406, %v4630, %v4631
        %v4633 = vrot.slane %v4567, 4
        %v4634 = vrot.slane %v3999, 4
        %v4635 = vsel %vm1406, %v4633, %v4634
        %v4636 = vrot.slane %v4568, 4
        %v4637 = vrot.slane %v4001, 4
        %v4638 = vsel %vm1406, %v4636, %v4637
        %v4639 = vrot.slane %v4569, 4
        %v4640 = vrot.slane %v4003, 4
        %v4641 = vsel %vm1406, %v4639, %v4640
        %v4642 = vrot.slane %v4570, 4
        %v4643 = vrot.slane %v4005, 4
        %v4644 = vsel %vm1406, %v4642, %v4643
        %v4645 = vrot.slane %v4571, 4
        %v4646 = vrot.slane %v4007, 4
        %v4647 = vsel %vm1406, %v4645, %v4646
        %v4648 = vrot.slane %v4572, 4
        %v4649 = vrot.slane %v4009, 4
        %v4650 = vsel %vm1406, %v4648, %v4649
        %v4651 = vrot.slane %v4573, 4
        %v4652 = vrot.slane %v4011, 4
        %v4653 = vsel %vm1406, %v4651, %v4652
        %s4670 = scalar_lea.vmem [#allocation8], 448
        %v4671 = vld [vmem:[%s4670] sm:$0xf]
        %v4672 = vld [vmem:[%s4670 + $0x4] sm:$0xf]
        %v4673 = vld [vmem:[%s4670 + $0x8] sm:$0xf]
        %v4674 = vld [vmem:[%s4670 + $0xc] sm:$0xf]
        %v4675 = vld [vmem:[%s4670 + $0x10] sm:$0xf]
        %v4676 = vld [vmem:[%s4670 + $0x14] sm:$0xf]
        %v4677 = vld [vmem:[%s4670 + $0x18] sm:$0xf]
        %v4678 = vld [vmem:[%s4670 + $0x1c] sm:$0xf]
        %v4679 = vld [vmem:[%s4670 + $0x20] sm:$0xf]
        %v4680 = vld [vmem:[%s4670 + $0x24] sm:$0xf]
        %v4681 = vld [vmem:[%s4670 + $0x28] sm:$0xf]
        %v4682 = vld [vmem:[%s4670 + $0x2c] sm:$0xf]
        %v4683 = vld [vmem:[%s4670 + $0x30] sm:$0xf]
        %v4684 = vld [vmem:[%s4670 + $0x34] sm:$0xf]
        %v4685 = vld [vmem:[%s4670 + $0x38] sm:$0xf]
        %v4686 = vld [vmem:[%s4670 + $0x3c] sm:$0xf]
        %v4703 = vunpack.c.l.b16 %v4671
        %v4704 = vunpack.c.l.b16 %v4672
        %v4705 = vunpack.c.l.b16 %v4673
        %v4706 = vunpack.c.l.b16 %v4674
        %v4707 = vunpack.c.l.b16 %v4675
        %v4708 = vunpack.c.l.b16 %v4676
        %v4709 = vunpack.c.l.b16 %v4677
        %v4710 = vunpack.c.l.b16 %v4678
        %v4711 = vunpack.c.l.b16 %v4679
        %v4712 = vunpack.c.l.b16 %v4680
        %v4713 = vunpack.c.l.b16 %v4681
        %v4714 = vunpack.c.l.b16 %v4682
        %v4715 = vunpack.c.l.b16 %v4683
        %v4716 = vunpack.c.l.b16 %v4684
        %v4717 = vunpack.c.l.b16 %v4685
        %v4718 = vunpack.c.l.b16 %v4686
        %v4719 = vpack.c.b16 %v4704, %v4703
        %v4720 = vpack.c.b16 %v4706, %v4705
        %v4721 = vpack.c.b16 %v4708, %v4707
        %v4722 = vpack.c.b16 %v4710, %v4709
        %v4723 = vpack.c.b16 %v4712, %v4711
        %v4724 = vpack.c.b16 %v4714, %v4713
        %v4725 = vpack.c.b16 %v4716, %v4715
        %v4726 = vpack.c.b16 %v4718, %v4717
        %4735 = vmatprep.subr.bf16.mxu0 0
        %4736 = vmatpush1.bf16.msra.mxu0 %v4719
        %4737 = vmatprep.subr.bf16.mxu0 0
        %4738 = vmatpush1.bf16.msra.mxu0 %v4720
        %4739 = vmatprep.subr.bf16.mxu0 0
        %4740 = vmatpush1.bf16.msra.mxu0 %v4721
        %4741 = vmatprep.subr.bf16.mxu0 0
        %4742 = vmatpush1.bf16.msra.mxu0 %v4722
        %4743 = vmatprep.subr.bf16.mxu0 0
        %4744 = vmatpush1.bf16.msra.mxu0 %v4723
        %4745 = vmatprep.subr.bf16.mxu0 0
        %4746 = vmatpush1.bf16.msra.mxu0 %v4724
        %4747 = vmatprep.subr.bf16.mxu0 0
        %4748 = vmatpush1.bf16.msra.mxu0 %v4725
        %4749 = vmatprep.subr.bf16.mxu0 0
        %4750 = vmatpush1.bf16.msra.mxu0 %v4726
        %4751 = vmatprep.subr.bf16.mxu0 0
        %4752 = vmatpush1.bf16.msra.mxu0 0
        %4753 = vmatprep.subr.bf16.mxu0 0
        %4754 = vmatpush1.bf16.msra.mxu0 0
        %4755 = vmatprep.subr.bf16.mxu0 0
        %4756 = vmatpush1.bf16.msra.mxu0 0
        %4757 = vmatprep.subr.bf16.mxu0 0
        %4758 = vmatpush1.bf16.msra.mxu0 0
        %4759 = vmatprep.subr.bf16.mxu0 0
        %4760 = vmatpush1.bf16.msra.mxu0 0
        %4761 = vmatprep.subr.bf16.mxu0 0
        %4762 = vmatpush1.bf16.msra.mxu0 0
        %4763 = vmatprep.subr.bf16.mxu0 0
        %4764 = vmatpush1.bf16.msra.mxu0 0
        %4765 = vmatprep.subr.bf16.mxu0 0
        %4766 = vmatpush1.bf16.msra.mxu0 0
        %4767 = vmatprep.mubr.bf16.mxu0 0
        %4768 = vmatmul.mubr.bf16.gmra.mrb[0].mxu0 %v4608
        %v4769 = vpop.f32.mrb[0].mxu0
        %v4770 = vadd.f32 0.0, %v4769
        %v4771 = vpop.f32.mrb[0].mxu0
        %v4772 = vpop.f32.mrb[0].mxu0
        %v4773 = vadd.f32 0.0, %v4772
        %v4774 = vpop.f32.mrb[0].mxu0
        %4775 = vmatprep.mubr.bf16.mxu0 0
        %4776 = vmatmul.mubr.bf16.gmra.mrb[0].mxu0 %v4611
        %v4777 = vpop.f32.mrb[0].mxu0
        %v4778 = vadd.f32 0.0, %v4777
        %v4779 = vpop.f32.mrb[0].mxu0
        %v4780 = vpop.f32.mrb[0].mxu0
        %v4781 = vadd.f32 0.0, %v4780
        %v4782 = vpop.f32.mrb[0].mxu0
        %4783 = vmatprep.mubr.bf16.mxu0 0
        %4784 = vmatmul.mubr.bf16.gmra.mrb[0].mxu0 %v4614
        %v4785 = vpop.f32.mrb[0].mxu0
        %v4786 = vadd.f32 0.0, %v4785
        %v4787 = vpop.f32.mrb[0].mxu0
        %v4788 = vpop.f32.mrb[0].mxu0
        %v4789 = vadd.f32 0.0, %v4788
        %v4790 = vpop.f32.mrb[0].mxu0
        %4791 = vmatprep.mubr.bf16.mxu0 0
        %4792 = vmatmul.mubr.bf16.gmra.mrb[0].mxu0 %v4617
        %v4793 = vpop.f32.mrb[0].mxu0
        %v4794 = vadd.f32 0.0, %v4793
        %v4795 = vpop.f32.mrb[0].mxu0
        %v4796 = vpop.f32.mrb[0].mxu0
        %v4797 = vadd.f32 0.0, %v4796
        %v4798 = vpop.f32.mrb[0].mxu0
        %4799 = vmatprep.mubr.bf16.mxu0 0
        %4800 = vmatmul.mubr.bf16.gmra.mrb[0].mxu0 %v4620
        %v4801 = vpop.f32.mrb[0].mxu0
        %v4802 = vadd.f32 0.0, %v4801
        %v4803 = vpop.f32.mrb[0].mxu0
        %v4804 = vpop.f32.mrb[0].mxu0
        %v4805 = vadd.f32 0.0, %v4804
        %v4806 = vpop.f32.mrb[0].mxu0
        %4807 = vmatprep.mubr.bf16.mxu0 0
        %4808 = vmatmul.mubr.bf16.gmra.mrb[0].mxu0 %v4623
        %v4809 = vpop.f32.mrb[0].mxu0
        %v4810 = vadd.f32 0.0, %v4809
        %v4811 = vpop.f32.mrb[0].mxu0
        %v4812 = vpop.f32.mrb[0].mxu0
        %v4813 = vadd.f32 0.0, %v4812
        %v4814 = vpop.f32.mrb[0].mxu0
        %4815 = vmatprep.mubr.bf16.mxu0 0
        %4816 = vmatmul.mubr.bf16.gmra.mrb[0].mxu0 %v4626
        %v4817 = vpop.f32.mrb[0].mxu0
        %v4818 = vadd.f32 0.0, %v4817
        %v4819 = vpop.f32.mrb[0].mxu0
        %v4820 = vpop.f32.mrb[0].mxu0
        %v4821 = vadd.f32 0.0, %v4820
        %v4822 = vpop.f32.mrb[0].mxu0
        %4823 = vmatprep.mubr.bf16.mxu0 0
        %4824 = vmatmul.mubr.bf16.gmra.mrb[0].mxu0 %v4629
        %v4825 = vpop.f32.mrb[0].mxu0
        %v4826 = vadd.f32 0.0, %v4825
        %v4827 = vpop.f32.mrb[0].mxu0
        %v4828 = vpop.f32.mrb[0].mxu0
        %v4829 = vadd.f32 0.0, %v4828
        %v4830 = vpop.f32.mrb[0].mxu0
        %4831 = vmatprep.mubr.bf16.mxu0 0
        %4832 = vmatmul.mubr.bf16.gmra.mrb[0].mxu0 %v4632
        %v4833 = vpop.f32.mrb[0].mxu0
        %v4834 = vadd.f32 0.0, %v4833
        %v4835 = vpop.f32.mrb[0].mxu0
        %v4836 = vpop.f32.mrb[0].mxu0
        %v4837 = vadd.f32 0.0, %v4836
        %v4838 = vpop.f32.mrb[0].mxu0
        %4839 = vmatprep.mubr.bf16.mxu0 0
        %4840 = vmatmul.mubr.bf16.gmra.mrb[0].mxu0 %v4635
        %v4841 = vpop.f32.mrb[0].mxu0
        %v4842 = vadd.f32 0.0, %v4841
        %v4843 = vpop.f32.mrb[0].mxu0
        %v4844 = vpop.f32.mrb[0].mxu0
        %v4845 = vadd.f32 0.0, %v4844
        %v4846 = vpop.f32.mrb[0].mxu0
        %4847 = vmatprep.mubr.bf16.mxu0 0
        %4848 = vmatmul.mubr.bf16.gmra.mrb[0].mxu0 %v4638
        %v4849 = vpop.f32.mrb[0].mxu0
        %v4850 = vadd.f32 0.0, %v4849
        %v4851 = vpop.f32.mrb[0].mxu0
        %v4852 = vpop.f32.mrb[0].mxu0
        %v4853 = vadd.f32 0.0, %v4852
        %v4854 = vpop.f32.mrb[0].mxu0
        %4855 = vmatprep.mubr.bf16.mxu0 0
        %4856 = vmatmul.mubr.bf16.gmra.mrb[0].mxu0 %v4641
        %v4857 = vpop.f32.mrb[0].mxu0
        %v4858 = vadd.f32 0.0, %v4857
        %v4859 = vpop.f32.mrb[0].mxu0
        %v4860 = vpop.f32.mrb[0].mxu0
        %v4861 = vadd.f32 0.0, %v4860
        %v4862 = vpop.f32.mrb[0].mxu0
        %4863 = vmatprep.mubr.bf16.mxu0 0
        %4864 = vmatmul.mubr.bf16.gmra.mrb[0].mxu0 %v4644
        %v4865 = vpop.f32.mrb[0].mxu0
        %v4866 = vadd.f32 0.0, %v4865
        %v4867 = vpop.f32.mrb[0].mxu0
        %v4868 = vpop.f32.mrb[0].mxu0
        %v4869 = vadd.f32 0.0, %v4868
        %v4870 = vpop.f32.mrb[0].mxu0
        %4871 = vmatprep.mubr.bf16.mxu0 0
        %4872 = vmatmul.mubr.bf16.gmra.mrb[0].mxu0 %v4647
        %v4873 = vpop.f32.mrb[0].mxu0
        %v4874 = vadd.f32 0.0, %v4873
        %v4875 = vpop.f32.mrb[0].mxu0
        %v4876 = vpop.f32.mrb[0].mxu0
        %v4877 = vadd.f32 0.0, %v4876
        %v4878 = vpop.f32.mrb[0].mxu0
        %4879 = vmatprep.mubr.bf16.mxu0 0
        %4880 = vmatmul.mubr.bf16.gmra.mrb[0].mxu0 %v4650
        %v4881 = vpop.f32.mrb[0].mxu0
        %v4882 = vadd.f32 0.0, %v4881
        %v4883 = vpop.f32.mrb[0].mxu0
        %v4884 = vpop.f32.mrb[0].mxu0
        %v4885 = vadd.f32 0.0, %v4884
        %v4886 = vpop.f32.mrb[0].mxu0
        %4887 = vmatprep.mubr.bf16.mxu0 0
        %4888 = vmatmul.mubr.bf16.gmra.mrb[0].mxu0 %v4653
        %v4889 = vpop.f32.mrb[0].mxu0
        %v4890 = vadd.f32 0.0, %v4889
        %v4891 = vpop.f32.mrb[0].mxu0
        %v4892 = vpop.f32.mrb[0].mxu0
        %v4893 = vadd.f32 0.0, %v4892
        %v4894 = vpop.f32.mrb[0].mxu0
        %4895 = vdwg.mxu0
        %v4896 = vadd.f32 %v4526, %v4770
        %v4897 = vadd.f32 %v4527, %v4773
        %v4898 = vadd.f32 %v4528, %v4778
        %v4899 = vadd.f32 %v4529, %v4781
        %v4900 = vadd.f32 %v4530, %v4786
        %v4901 = vadd.f32 %v4531, %v4789
        %v4902 = vadd.f32 %v4532, %v4794
        %v4903 = vadd.f32 %v4533, %v4797
        %v4904 = vadd.f32 %v4534, %v4802
        %v4905 = vadd.f32 %v4535, %v4805
        %v4906 = vadd.f32 %v4536, %v4810
        %v4907 = vadd.f32 %v4537, %v4813
        %v4908 = vadd.f32 %v4538, %v4818
        %v4909 = vadd.f32 %v4539, %v4821
        %v4910 = vadd.f32 %v4540, %v4826
        %v4911 = vadd.f32 %v4541, %v4829
        %v4912 = vadd.f32 %v4542, %v4834
        %v4913 = vadd.f32 %v4543, %v4837
        %v4914 = vadd.f32 %v4544, %v4842
        %v4915 = vadd.f32 %v4545, %v4845
        %v4916 = vadd.f32 %v4546, %v4850
        %v4917 = vadd.f32 %v4547, %v4853
        %v4918 = vadd.f32 %v4548, %v4858
        %v4919 = vadd.f32 %v4549, %v4861
        %v4920 = vadd.f32 %v4550, %v4866
        %v4921 = vadd.f32 %v4551, %v4869
        %v4922 = vadd.f32 %v4552, %v4874
        %v4923 = vadd.f32 %v4553, %v4877
        %v4924 = vadd.f32 %v4554, %v4882
        %v4925 = vadd.f32 %v4555, %v4885
        %v4926 = vadd.f32 %v4556, %v4890
        %v4927 = vadd.f32 %v4557, %v4893
        %v4928 = vld [vmem:[%s3979 + $0x8] sm:$0x1f]
        %v4929 = vld [vmem:[%s3979 + $0x18] sm:$0x1f]
        %v4930 = vld [vmem:[%s3979 + $0x28] sm:$0x1f]
        %v4931 = vld [vmem:[%s3979 + $0x38] sm:$0x1f]
        %v4932 = vld [vmem:[%s3979 + $0x48] sm:$0x1f]
        %v4933 = vld [vmem:[%s3979 + $0x58] sm:$0x1f]
        %v4934 = vld [vmem:[%s3979 + $0x68] sm:$0x1f]
        %v4935 = vld [vmem:[%s3979 + $0x78] sm:$0x1f]
        %v4936 = vld [vmem:[%s3979 + $0x88] sm:$0x1f]
        %v4937 = vld [vmem:[%s3979 + $0x98] sm:$0x1f]
        %v4938 = vld [vmem:[%s3979 + $0xa8] sm:$0x1f]
        %v4939 = vld [vmem:[%s3979 + $0xb8] sm:$0x1f]
        %v4940 = vld [vmem:[%s3979 + $0xc8] sm:$0x1f]
        %v4941 = vld [vmem:[%s3979 + $0xd8] sm:$0x1f]
        %v4942 = vld [vmem:[%s3979 + $0xe8] sm:$0x1f]
        %v4943 = vld [vmem:[%s3979 + $0xf8] sm:$0x1f]
        %v4945 = vshrl.u32 %v4558, 16
        %v4947 = vrot.slane %v4945, 4
        %v4948 = vshll.u32 %v4558, 16
        %v4950 = vrot.slane %v4948, 5
        %v4951 = vor.u32 %v4947, %v4950
        %v4953 = vshrl.u32 %v4928, 16
        %v4955 = vrot.slane %v4953, 4
        %v4956 = vshll.u32 %v4928, 16
        %v4958 = vrot.slane %v4956, 5
        %v4959 = vor.u32 %v4955, %v4958
        %v4960 = vsel %vm1922, %v4951, %v4959
        %v4962 = vshrl.u32 %v4559, 16
        %v4964 = vrot.slane %v4962, 4
        %v4965 = vshll.u32 %v4559, 16
        %v4967 = vrot.slane %v4965, 5
        %v4968 = vor.u32 %v4964, %v4967
        %v4970 = vshrl.u32 %v4929, 16
        %v4972 = vrot.slane %v4970, 4
        %v4973 = vshll.u32 %v4929, 16
        %v4975 = vrot.slane %v4973, 5
        %v4976 = vor.u32 %v4972, %v4975
        %v4977 = vsel %vm1922, %v4968, %v4976
        %v4979 = vshrl.u32 %v4560, 16
        %v4981 = vrot.slane %v4979, 4
        %v4982 = vshll.u32 %v4560, 16
        %v4984 = vrot.slane %v4982, 5
        %v4985 = vor.u32 %v4981, %v4984
        %v4987 = vshrl.u32 %v4930, 16
        %v4989 = vrot.slane %v4987, 4
        %v4990 = vshll.u32 %v4930, 16
        %v4992 = vrot.slane %v4990, 5
        %v4993 = vor.u32 %v4989, %v4992
        %v4994 = vsel %vm1922, %v4985, %v4993
        %v4996 = vshrl.u32 %v4561, 16
        %v4998 = vrot.slane %v4996, 4
        %v4999 = vshll.u32 %v4561, 16
        %v5001 = vrot.slane %v4999, 5
        %v5002 = vor.u32 %v4998, %v5001
        %v5004 = vshrl.u32 %v4931, 16
        %v5006 = vrot.slane %v5004, 4
        %v5007 = vshll.u32 %v4931, 16
        %v5009 = vrot.slane %v5007, 5
        %v5010 = vor.u32 %v5006, %v5009
        %v5011 = vsel %vm1922, %v5002, %v5010
        %v5013 = vshrl.u32 %v4562, 16
        %v5015 = vrot.slane %v5013, 4
        %v5016 = vshll.u32 %v4562, 16
        %v5018 = vrot.slane %v5016, 5
        %v5019 = vor.u32 %v5015, %v5018
        %v5021 = vshrl.u32 %v4932, 16
        %v5023 = vrot.slane %v5021, 4
        %v5024 = vshll.u32 %v4932, 16
        %v5026 = vrot.slane %v5024, 5
        %v5027 = vor.u32 %v5023, %v5026
        %v5028 = vsel %vm1922, %v5019, %v5027
        %v5030 = vshrl.u32 %v4563, 16
        %v5032 = vrot.slane %v5030, 4
        %v5033 = vshll.u32 %v4563, 16
        %v5035 = vrot.slane %v5033, 5
        %v5036 = vor.u32 %v5032, %v5035
        %v5038 = vshrl.u32 %v4933, 16
        %v5040 = vrot.slane %v5038, 4
        %v5041 = vshll.u32 %v4933, 16
        %v5043 = vrot.slane %v5041, 5
        %v5044 = vor.u32 %v5040, %v5043
        %v5045 = vsel %vm1922, %v5036, %v5044
        %v5047 = vshrl.u32 %v4564, 16
        %v5049 = vrot.slane %v5047, 4
        %v5050 = vshll.u32 %v4564, 16
        %v5052 = vrot.slane %v5050, 5
        %v5053 = vor.u32 %v5049, %v5052
        %v5055 = vshrl.u32 %v4934, 16
        %v5057 = vrot.slane %v5055, 4
        %v5058 = vshll.u32 %v4934, 16
        %v5060 = vrot.slane %v5058, 5
        %v5061 = vor.u32 %v5057, %v5060
        %v5062 = vsel %vm1922, %v5053, %v5061
        %v5064 = vshrl.u32 %v4565, 16
        %v5066 = vrot.slane %v5064, 4
        %v5067 = vshll.u32 %v4565, 16
        %v5069 = vrot.slane %v5067, 5
        %v5070 = vor.u32 %v5066, %v5069
        %v5072 = vshrl.u32 %v4935, 16
        %v5074 = vrot.slane %v5072, 4
        %v5075 = vshll.u32 %v4935, 16
        %v5077 = vrot.slane %v5075, 5
        %v5078 = vor.u32 %v5074, %v5077
        %v5079 = vsel %vm1922, %v5070, %v5078
        %v5081 = vshrl.u32 %v4566, 16
        %v5083 = vrot.slane %v5081, 4
        %v5084 = vshll.u32 %v4566, 16
        %v5086 = vrot.slane %v5084, 5
        %v5087 = vor.u32 %v5083, %v5086
        %v5089 = vshrl.u32 %v4936, 16
        %v5091 = vrot.slane %v5089, 4
        %v5092 = vshll.u32 %v4936, 16
        %v5094 = vrot.slane %v5092, 5
        %v5095 = vor.u32 %v5091, %v5094
        %v5096 = vsel %vm1922, %v5087, %v5095
        %v5098 = vshrl.u32 %v4567, 16
        %v5100 = vrot.slane %v5098, 4
        %v5101 = vshll.u32 %v4567, 16
        %v5103 = vrot.slane %v5101, 5
        %v5104 = vor.u32 %v5100, %v5103
        %v5106 = vshrl.u32 %v4937, 16
        %v5108 = vrot.slane %v5106, 4
        %v5109 = vshll.u32 %v4937, 16
        %v5111 = vrot.slane %v5109, 5
        %v5112 = vor.u32 %v5108, %v5111
        %v5113 = vsel %vm1922, %v5104, %v5112
        %v5115 = vshrl.u32 %v4568, 16
        %v5117 = vrot.slane %v5115, 4
        %v5118 = vshll.u32 %v4568, 16
        %v5120 = vrot.slane %v5118, 5
        %v5121 = vor.u32 %v5117, %v5120
        %v5123 = vshrl.u32 %v4938, 16
        %v5125 = vrot.slane %v5123, 4
        %v5126 = vshll.u32 %v4938, 16
        %v5128 = vrot.slane %v5126, 5
        %v5129 = vor.u32 %v5125, %v5128
        %v5130 = vsel %vm1922, %v5121, %v5129
        %v5132 = vshrl.u32 %v4569, 16
        %v5134 = vrot.slane %v5132, 4
        %v5135 = vshll.u32 %v4569, 16
        %v5137 = vrot.slane %v5135, 5
        %v5138 = vor.u32 %v5134, %v5137
        %v5140 = vshrl.u32 %v4939, 16
        %v5142 = vrot.slane %v5140, 4
        %v5143 = vshll.u32 %v4939, 16
        %v5145 = vrot.slane %v5143, 5
        %v5146 = vor.u32 %v5142, %v5145
        %v5147 = vsel %vm1922, %v5138, %v5146
        %v5149 = vshrl.u32 %v4570, 16
        %v5151 = vrot.slane %v5149, 4
        %v5152 = vshll.u32 %v4570, 16
        %v5154 = vrot.slane %v5152, 5
        %v5155 = vor.u32 %v5151, %v5154
        %v5157 = vshrl.u32 %v4940, 16
        %v5159 = vrot.slane %v5157, 4
        %v5160 = vshll.u32 %v4940, 16
        %v5162 = vrot.slane %v5160, 5
        %v5163 = vor.u32 %v5159, %v5162
        %v5164 = vsel %vm1922, %v5155, %v5163
        %v5166 = vshrl.u32 %v4571, 16
        %v5168 = vrot.slane %v5166, 4
        %v5169 = vshll.u32 %v4571, 16
        %v5171 = vrot.slane %v5169, 5
        %v5172 = vor.u32 %v5168, %v5171
        %v5174 = vshrl.u32 %v4941, 16
        %v5176 = vrot.slane %v5174, 4
        %v5177 = vshll.u32 %v4941, 16
        %v5179 = vrot.slane %v5177, 5
        %v5180 = vor.u32 %v5176, %v5179
        %v5181 = vsel %vm1922, %v5172, %v5180
        %v5183 = vshrl.u32 %v4572, 16
        %v5185 = vrot.slane %v5183, 4
        %v5186 = vshll.u32 %v4572, 16
        %v5188 = vrot.slane %v5186, 5
        %v5189 = vor.u32 %v5185, %v5188
        %v5191 = vshrl.u32 %v4942, 16
        %v5193 = vrot.slane %v5191, 4
        %v5194 = vshll.u32 %v4942, 16
        %v5196 = vrot.slane %v5194, 5
        %v5197 = vor.u32 %v5193, %v5196
        %v5198 = vsel %vm1922, %v5189, %v5197
        %v5200 = vshrl.u32 %v4573, 16
        %v5202 = vrot.slane %v5200, 4
        %v5203 = vshll.u32 %v4573, 16
        %v5205 = vrot.slane %v5203, 5
        %v5206 = vor.u32 %v5202, %v5205
        %v5208 = vshrl.u32 %v4943, 16
        %v5210 = vrot.slane %v5208, 4
        %v5211 = vshll.u32 %v4943, 16
        %v5213 = vrot.slane %v5211, 5
        %v5214 = vor.u32 %v5210, %v5213
        %v5215 = vsel %vm1922, %v5206, %v5214
        %s5232 = scalar_lea.vmem [#allocation8], 512
        %v5233 = vld [vmem:[%s5232] sm:$0xf]
        %v5234 = vld [vmem:[%s5232 + $0x4] sm:$0xf]
        %v5235 = vld [vmem:[%s5232 + $0x8] sm:$0xf]
        %v5236 = vld [vmem:[%s5232 + $0xc] sm:$0xf]
        %v5237 = vld [vmem:[%s5232 + $0x10] sm:$0xf]
        %v5238 = vld [vmem:[%s5232 + $0x14] sm:$0xf]
        %v5239 = vld [vmem:[%s5232 + $0x18] sm:$0xf]
        %v5240 = vld [vmem:[%s5232 + $0x1c] sm:$0xf]
        %v5241 = vld [vmem:[%s5232 + $0x20] sm:$0xf]
        %v5242 = vld [vmem:[%s5232 + $0x24] sm:$0xf]
        %v5243 = vld [vmem:[%s5232 + $0x28] sm:$0xf]
        %v5244 = vld [vmem:[%s5232 + $0x2c] sm:$0xf]
        %v5245 = vld [vmem:[%s5232 + $0x30] sm:$0xf]
        %v5246 = vld [vmem:[%s5232 + $0x34] sm:$0xf]
        %v5247 = vld [vmem:[%s5232 + $0x38] sm:$0xf]
        %v5248 = vld [vmem:[%s5232 + $0x3c] sm:$0xf]
        %v5265 = vunpack.c.l.b16 %v5233
        %v5266 = vunpack.c.l.b16 %v5234
        %v5267 = vunpack.c.l.b16 %v5235
        %v5268 = vunpack.c.l.b16 %v5236
        %v5269 = vunpack.c.l.b16 %v5237
        %v5270 = vunpack.c.l.b16 %v5238
        %v5271 = vunpack.c.l.b16 %v5239
        %v5272 = vunpack.c.l.b16 %v5240
        %v5273 = vunpack.c.l.b16 %v5241
        %v5274 = vunpack.c.l.b16 %v5242
        %v5275 = vunpack.c.l.b16 %v5243
        %v5276 = vunpack.c.l.b16 %v5244
        %v5277 = vunpack.c.l.b16 %v5245
        %v5278 = vunpack.c.l.b16 %v5246
        %v5279 = vunpack.c.l.b16 %v5247
        %v5280 = vunpack.c.l.b16 %v5248
        %v5281 = vpack.c.b16 %v5266, %v5265
        %v5282 = vpack.c.b16 %v5268, %v5267
        %v5283 = vpack.c.b16 %v5270, %v5269
        %v5284 = vpack.c.b16 %v5272, %v5271
        %v5285 = vpack.c.b16 %v5274, %v5273
        %v5286 = vpack.c.b16 %v5276, %v5275
        %v5287 = vpack.c.b16 %v5278, %v5277
        %v5288 = vpack.c.b16 %v5280, %v5279
        %5297 = vmatprep.subr.bf16.mxu0 0
        %5298 = vmatpush1.bf16.msra.mxu0 %v5281
        %5299 = vmatprep.subr.bf16.mxu0 0
        %5300 = vmatpush1.bf16.msra.mxu0 %v5282
        %5301 = vmatprep.subr.bf16.mxu0 0
        %5302 = vmatpush1.bf16.msra.mxu0 %v5283
        %5303 = vmatprep.subr.bf16.mxu0 0
        %5304 = vmatpush1.bf16.msra.mxu0 %v5284
        %5305 = vmatprep.subr.bf16.mxu0 0
        %5306 = vmatpush1.bf16.msra.mxu0 %v5285
        %5307 = vmatprep.subr.bf16.mxu0 0
        %5308 = vmatpush1.bf16.msra.mxu0 %v5286
        %5309 = vmatprep.subr.bf16.mxu0 0
        %5310 = vmatpush1.bf16.msra.mxu0 %v5287
        %5311 = vmatprep.subr.bf16.mxu0 0
        %5312 = vmatpush1.bf16.msra.mxu0 %v5288
        %5313 = vmatprep.subr.bf16.mxu0 0
        %5314 = vmatpush1.bf16.msra.mxu0 0
        %5315 = vmatprep.subr.bf16.mxu0 0
        %5316 = vmatpush1.bf16.msra.mxu0 0
        %5317 = vmatprep.subr.bf16.mxu0 0
        %5318 = vmatpush1.bf16.msra.mxu0 0
        %5319 = vmatprep.subr.bf16.mxu0 0
        %5320 = vmatpush1.bf16.msra.mxu0 0
        %5321 = vmatprep.subr.bf16.mxu0 0
        %5322 = vmatpush1.bf16.msra.mxu0 0
        %5323 = vmatprep.subr.bf16.mxu0 0
        %5324 = vmatpush1.bf16.msra.mxu0 0
        %5325 = vmatprep.subr.bf16.mxu0 0
        %5326 = vmatpush1.bf16.msra.mxu0 0
        %5327 = vmatprep.subr.bf16.mxu0 0
        %5328 = vmatpush1.bf16.msra.mxu0 0
        %5329 = vmatprep.mubr.bf16.mxu0 0
        %5330 = vmatmul.mubr.bf16.gmra.mrb[0].mxu0 %v4960
        %v5331 = vpop.f32.mrb[0].mxu0
        %v5332 = vadd.f32 0.0, %v5331
        %v5333 = vpop.f32.mrb[0].mxu0
        %v5334 = vpop.f32.mrb[0].mxu0
        %v5335 = vadd.f32 0.0, %v5334
        %v5336 = vpop.f32.mrb[0].mxu0
        %5337 = vmatprep.mubr.bf16.mxu0 0
        %5338 = vmatmul.mubr.bf16.gmra.mrb[0].mxu0 %v4977
        %v5339 = vpop.f32.mrb[0].mxu0
        %v5340 = vadd.f32 0.0, %v5339
        %v5341 = vpop.f32.mrb[0].mxu0
        %v5342 = vpop.f32.mrb[0].mxu0
        %v5343 = vadd.f32 0.0, %v5342
        %v5344 = vpop.f32.mrb[0].mxu0
        %5345 = vmatprep.mubr.bf16.mxu0 0
        %5346 = vmatmul.mubr.bf16.gmra.mrb[0].mxu0 %v4994
        %v5347 = vpop.f32.mrb[0].mxu0
        %v5348 = vadd.f32 0.0, %v5347
        %v5349 = vpop.f32.mrb[0].mxu0
        %v5350 = vpop.f32.mrb[0].mxu0
        %v5351 = vadd.f32 0.0, %v5350
        %v5352 = vpop.f32.mrb[0].mxu0
        %5353 = vmatprep.mubr.bf16.mxu0 0
        %5354 = vmatmul.mubr.bf16.gmra.mrb[0].mxu0 %v5011
        %v5355 = vpop.f32.mrb[0].mxu0
        %v5356 = vadd.f32 0.0, %v5355
        %v5357 = vpop.f32.mrb[0].mxu0
        %v5358 = vpop.f32.mrb[0].mxu0
        %v5359 = vadd.f32 0.0, %v5358
        %v5360 = vpop.f32.mrb[0].mxu0
        %5361 = vmatprep.mubr.bf16.mxu0 0
        %5362 = vmatmul.mubr.bf16.gmra.mrb[0].mxu0 %v5028
        %v5363 = vpop.f32.mrb[0].mxu0
        %v5364 = vadd.f32 0.0, %v5363
        %v5365 = vpop.f32.mrb[0].mxu0
        %v5366 = vpop.f32.mrb[0].mxu0
        %v5367 = vadd.f32 0.0, %v5366
        %v5368 = vpop.f32.mrb[0].mxu0
        %5369 = vmatprep.mubr.bf16.mxu0 0
        %5370 = vmatmul.mubr.bf16.gmra.mrb[0].mxu0 %v5045
        %v5371 = vpop.f32.mrb[0].mxu0
        %v5372 = vadd.f32 0.0, %v5371
        %v5373 = vpop.f32.mrb[0].mxu0
        %v5374 = vpop.f32.mrb[0].mxu0
        %v5375 = vadd.f32 0.0, %v5374
        %v5376 = vpop.f32.mrb[0].mxu0
        %5377 = vmatprep.mubr.bf16.mxu0 0
        %5378 = vmatmul.mubr.bf16.gmra.mrb[0].mxu0 %v5062
        %v5379 = vpop.f32.mrb[0].mxu0
        %v5380 = vadd.f32 0.0, %v5379
        %v5381 = vpop.f32.mrb[0].mxu0
        %v5382 = vpop.f32.mrb[0].mxu0
        %v5383 = vadd.f32 0.0, %v5382
        %v5384 = vpop.f32.mrb[0].mxu0
        %5385 = vmatprep.mubr.bf16.mxu0 0
        %5386 = vmatmul.mubr.bf16.gmra.mrb[0].mxu0 %v5079
        %v5387 = vpop.f32.mrb[0].mxu0
        %v5388 = vadd.f32 0.0, %v5387
        %v5389 = vpop.f32.mrb[0].mxu0
        %v5390 = vpop.f32.mrb[0].mxu0
        %v5391 = vadd.f32 0.0, %v5390
        %v5392 = vpop.f32.mrb[0].mxu0
        %5393 = vmatprep.mubr.bf16.mxu0 0
        %5394 = vmatmul.mubr.bf16.gmra.mrb[0].mxu0 %v5096
        %v5395 = vpop.f32.mrb[0].mxu0
        %v5396 = vadd.f32 0.0, %v5395
        %v5397 = vpop.f32.mrb[0].mxu0
        %v5398 = vpop.f32.mrb[0].mxu0
        %v5399 = vadd.f32 0.0, %v5398
        %v5400 = vpop.f32.mrb[0].mxu0
        %5401 = vmatprep.mubr.bf16.mxu0 0
        %5402 = vmatmul.mubr.bf16.gmra.mrb[0].mxu0 %v5113
        %v5403 = vpop.f32.mrb[0].mxu0
        %v5404 = vadd.f32 0.0, %v5403
        %v5405 = vpop.f32.mrb[0].mxu0
        %v5406 = vpop.f32.mrb[0].mxu0
        %v5407 = vadd.f32 0.0, %v5406
        %v5408 = vpop.f32.mrb[0].mxu0
        %5409 = vmatprep.mubr.bf16.mxu0 0
        %5410 = vmatmul.mubr.bf16.gmra.mrb[0].mxu0 %v5130
        %v5411 = vpop.f32.mrb[0].mxu0
        %v5412 = vadd.f32 0.0, %v5411
        %v5413 = vpop.f32.mrb[0].mxu0
        %v5414 = vpop.f32.mrb[0].mxu0
        %v5415 = vadd.f32 0.0, %v5414
        %v5416 = vpop.f32.mrb[0].mxu0
        %5417 = vmatprep.mubr.bf16.mxu0 0
        %5418 = vmatmul.mubr.bf16.gmra.mrb[0].mxu0 %v5147
        %v5419 = vpop.f32.mrb[0].mxu0
        %v5420 = vadd.f32 0.0, %v5419
        %v5421 = vpop.f32.mrb[0].mxu0
        %v5422 = vpop.f32.mrb[0].mxu0
        %v5423 = vadd.f32 0.0, %v5422
        %v5424 = vpop.f32.mrb[0].mxu0
        %5425 = vmatprep.mubr.bf16.mxu0 0
        %5426 = vmatmul.mubr.bf16.gmra.mrb[0].mxu0 %v5164
        %v5427 = vpop.f32.mrb[0].mxu0
        %v5428 = vadd.f32 0.0, %v5427
        %v5429 = vpop.f32.mrb[0].mxu0
        %v5430 = vpop.f32.mrb[0].mxu0
        %v5431 = vadd.f32 0.0, %v5430
        %v5432 = vpop.f32.mrb[0].mxu0
        %5433 = vmatprep.mubr.bf16.mxu0 0
        %5434 = vmatmul.mubr.bf16.gmra.mrb[0].mxu0 %v5181
        %v5435 = vpop.f32.mrb[0].mxu0
        %v5436 = vadd.f32 0.0, %v5435
        %v5437 = vpop.f32.mrb[0].mxu0
        %v5438 = vpop.f32.mrb[0].mxu0
        %v5439 = vadd.f32 0.0, %v5438
        %v5440 = vpop.f32.mrb[0].mxu0
        %5441 = vmatprep.mubr.bf16.mxu0 0
        %5442 = vmatmul.mubr.bf16.gmra.mrb[0].mxu0 %v5198
        %v5443 = vpop.f32.mrb[0].mxu0
        %v5444 = vadd.f32 0.0, %v5443
        %v5445 = vpop.f32.mrb[0].mxu0
        %v5446 = vpop.f32.mrb[0].mxu0
        %v5447 = vadd.f32 0.0, %v5446
        %v5448 = vpop.f32.mrb[0].mxu0
        %5449 = vmatprep.mubr.bf16.mxu0 0
        %5450 = vmatmul.mubr.bf16.gmra.mrb[0].mxu0 %v5215
        %v5451 = vpop.f32.mrb[0].mxu0
        %v5452 = vadd.f32 0.0, %v5451
        %v5453 = vpop.f32.mrb[0].mxu0
        %v5454 = vpop.f32.mrb[0].mxu0
        %v5455 = vadd.f32 0.0, %v5454
        %v5456 = vpop.f32.mrb[0].mxu0
        %5457 = vdwg.mxu0
        %v5458 = vadd.f32 %v4896, %v5332
        %v5459 = vadd.f32 %v4897, %v5335
        %v5460 = vadd.f32 %v4898, %v5340
        %v5461 = vadd.f32 %v4899, %v5343
        %v5462 = vadd.f32 %v4900, %v5348
        %v5463 = vadd.f32 %v4901, %v5351
        %v5464 = vadd.f32 %v4902, %v5356
        %v5465 = vadd.f32 %v4903, %v5359
        %v5466 = vadd.f32 %v4904, %v5364
        %v5467 = vadd.f32 %v4905, %v5367
        %v5468 = vadd.f32 %v4906, %v5372
        %v5469 = vadd.f32 %v4907, %v5375
        %v5470 = vadd.f32 %v4908, %v5380
        %v5471 = vadd.f32 %v4909, %v5383
        %v5472 = vadd.f32 %v4910, %v5388
        %v5473 = vadd.f32 %v4911, %v5391
        %v5474 = vadd.f32 %v4912, %v5396
        %v5475 = vadd.f32 %v4913, %v5399
        %v5476 = vadd.f32 %v4914, %v5404
        %v5477 = vadd.f32 %v4915, %v5407
        %v5478 = vadd.f32 %v4916, %v5412
        %v5479 = vadd.f32 %v4917, %v5415
        %v5480 = vadd.f32 %v4918, %v5420
        %v5481 = vadd.f32 %v4919, %v5423
        %v5482 = vadd.f32 %v4920, %v5428
        %v5483 = vadd.f32 %v4921, %v5431
        %v5484 = vadd.f32 %v4922, %v5436
        %v5485 = vadd.f32 %v4923, %v5439
        %v5486 = vadd.f32 %v4924, %v5444
        %v5487 = vadd.f32 %v4925, %v5447
        %v5488 = vadd.f32 %v4926, %v5452
        %v5489 = vadd.f32 %v4927, %v5455
        %v5490 = vld [vmem:[%s5] sm:$0x1]
        %v5492 = vlaneseq
        %v5493 = vshrl.u32 %v5492, 7
        %v5494 = vsub.s32 0, %v5493
        %v5495 = vrot.slane %v5490, %v5494
        %v5497 = vmul.f32 %v5458, %v5495
        %v5498 = vmul.f32 %v5459, %v5495
        %v5499 = vmul.f32 %v5460, %v5495
        %v5500 = vmul.f32 %v5461, %v5495
        %v5501 = vmul.f32 %v5462, %v5495
        %v5502 = vmul.f32 %v5463, %v5495
        %v5503 = vmul.f32 %v5464, %v5495
        %v5504 = vmul.f32 %v5465, %v5495
        %v5505 = vmul.f32 %v5466, %v5495
        %v5506 = vmul.f32 %v5467, %v5495
        %v5507 = vmul.f32 %v5468, %v5495
        %v5508 = vmul.f32 %v5469, %v5495
        %v5509 = vmul.f32 %v5470, %v5495
        %v5510 = vmul.f32 %v5471, %v5495
        %v5511 = vmul.f32 %v5472, %v5495
        %v5512 = vmul.f32 %v5473, %v5495
        %v5513 = vmul.f32 %v5474, %v5495
        %v5514 = vmul.f32 %v5475, %v5495
        %v5515 = vmul.f32 %v5476, %v5495
        %v5516 = vmul.f32 %v5477, %v5495
        %v5517 = vmul.f32 %v5478, %v5495
        %v5518 = vmul.f32 %v5479, %v5495
        %v5519 = vmul.f32 %v5480, %v5495
        %v5520 = vmul.f32 %v5481, %v5495
        %v5521 = vmul.f32 %v5482, %v5495
        %v5522 = vmul.f32 %v5483, %v5495
        %v5523 = vmul.f32 %v5484, %v5495
        %v5524 = vmul.f32 %v5485, %v5495
        %v5525 = vmul.f32 %v5486, %v5495
        %v5526 = vmul.f32 %v5487, %v5495
        %v5527 = vmul.f32 %v5488, %v5495
        %v5528 = vmul.f32 %v5489, %v5495
        %v5529 = vld [vmem:[%s6] sm:$0x1]
        %v5531 = vlaneseq
        %v5532 = vshrl.u32 %v5531, 7
        %v5533 = vsub.s32 0, %v5532
        %v5534 = vrot.slane %v5529, %v5533
        %v5536 = vadd.f32 %v5497, %v5534
        %v5537 = vadd.f32 %v5498, %v5534
        %v5538 = vadd.f32 %v5499, %v5534
        %v5539 = vadd.f32 %v5500, %v5534
        %v5540 = vadd.f32 %v5501, %v5534
        %v5541 = vadd.f32 %v5502, %v5534
        %v5542 = vadd.f32 %v5503, %v5534
        %v5543 = vadd.f32 %v5504, %v5534
        %v5544 = vadd.f32 %v5505, %v5534
        %v5545 = vadd.f32 %v5506, %v5534
        %v5546 = vadd.f32 %v5507, %v5534
        %v5547 = vadd.f32 %v5508, %v5534
        %v5548 = vadd.f32 %v5509, %v5534
        %v5549 = vadd.f32 %v5510, %v5534
        %v5550 = vadd.f32 %v5511, %v5534
        %v5551 = vadd.f32 %v5512, %v5534
        %v5552 = vadd.f32 %v5513, %v5534
        %v5553 = vadd.f32 %v5514, %v5534
        %v5554 = vadd.f32 %v5515, %v5534
        %v5555 = vadd.f32 %v5516, %v5534
        %v5556 = vadd.f32 %v5517, %v5534
        %v5557 = vadd.f32 %v5518, %v5534
        %v5558 = vadd.f32 %v5519, %v5534
        %v5559 = vadd.f32 %v5520, %v5534
        %v5560 = vadd.f32 %v5521, %v5534
        %v5561 = vadd.f32 %v5522, %v5534
        %v5562 = vadd.f32 %v5523, %v5534
        %v5563 = vadd.f32 %v5524, %v5534
        %v5564 = vadd.f32 %v5525, %v5534
        %v5565 = vadd.f32 %v5526, %v5534
        %v5566 = vadd.f32 %v5527, %v5534
        %v5567 = vadd.f32 %v5528, %v5534
        %v5568 = vmax.f32 %v5536, 0.0
        %v5569 = vmax.f32 %v5537, 0.0
        %v5570 = vmax.f32 %v5538, 0.0
        %v5571 = vmax.f32 %v5539, 0.0
        %v5572 = vmax.f32 %v5540, 0.0
        %v5573 = vmax.f32 %v5541, 0.0
        %v5574 = vmax.f32 %v5542, 0.0
        %v5575 = vmax.f32 %v5543, 0.0
        %v5576 = vmax.f32 %v5544, 0.0
        %v5577 = vmax.f32 %v5545, 0.0
        %v5578 = vmax.f32 %v5546, 0.0
        %v5579 = vmax.f32 %v5547, 0.0
        %v5580 = vmax.f32 %v5548, 0.0
        %v5581 = vmax.f32 %v5549, 0.0
        %v5582 = vmax.f32 %v5550, 0.0
        %v5583 = vmax.f32 %v5551, 0.0
        %v5584 = vmax.f32 %v5552, 0.0
        %v5585 = vmax.f32 %v5553, 0.0
        %v5586 = vmax.f32 %v5554, 0.0
        %v5587 = vmax.f32 %v5555, 0.0
        %v5588 = vmax.f32 %v5556, 0.0
        %v5589 = vmax.f32 %v5557, 0.0
        %v5590 = vmax.f32 %v5558, 0.0
        %v5591 = vmax.f32 %v5559, 0.0
        %v5592 = vmax.f32 %v5560, 0.0
        %v5593 = vmax.f32 %v5561, 0.0
        %v5594 = vmax.f32 %v5562, 0.0
        %v5595 = vmax.f32 %v5563, 0.0
        %v5596 = vmax.f32 %v5564, 0.0
        %v5597 = vmax.f32 %v5565, 0.0
        %v5598 = vmax.f32 %v5566, 0.0
        %v5599 = vmax.f32 %v5567, 0.0
        %v5600 = vpack.c.bf16 %v5569, %v5568
        %v5601 = vpack.c.bf16 %v5571, %v5570
        %v5602 = vpack.c.bf16 %v5573, %v5572
        %v5603 = vpack.c.bf16 %v5575, %v5574
        %v5604 = vpack.c.bf16 %v5577, %v5576
        %v5605 = vpack.c.bf16 %v5579, %v5578
        %v5606 = vpack.c.bf16 %v5581, %v5580
        %v5607 = vpack.c.bf16 %v5583, %v5582
        %v5608 = vpack.c.bf16 %v5585, %v5584
        %v5609 = vpack.c.bf16 %v5587, %v5586
        %v5610 = vpack.c.bf16 %v5589, %v5588
        %v5611 = vpack.c.bf16 %v5591, %v5590
        %v5612 = vpack.c.bf16 %v5593, %v5592
        %v5613 = vpack.c.bf16 %v5595, %v5594
        %v5614 = vpack.c.bf16 %v5597, %v5596
        %v5615 = vpack.c.bf16 %v5599, %v5598
        %v5616 = vld [vmem:[#allocation9] sm:$0xf]
        %v5617 = vld [vmem:[#allocation9 + $0x4] sm:$0xf]
        %v5618 = vld [vmem:[#allocation9 + $0x8] sm:$0xf]
        %v5619 = vld [vmem:[#allocation9 + $0xc] sm:$0xf]
        %v5620 = vld [vmem:[#allocation9 + $0x10] sm:$0xf]
        %v5621 = vld [vmem:[#allocation9 + $0x14] sm:$0xf]
        %v5622 = vld [vmem:[#allocation9 + $0x18] sm:$0xf]
        %v5623 = vld [vmem:[#allocation9 + $0x1c] sm:$0xf]
        %v5624 = vld [vmem:[#allocation9 + $0x20] sm:$0xf]
        %v5625 = vld [vmem:[#allocation9 + $0x24] sm:$0xf]
        %v5626 = vld [vmem:[#allocation9 + $0x28] sm:$0xf]
        %v5627 = vld [vmem:[#allocation9 + $0x2c] sm:$0xf]
        %v5628 = vld [vmem:[#allocation9 + $0x30] sm:$0xf]
        %v5629 = vld [vmem:[#allocation9 + $0x34] sm:$0xf]
        %v5630 = vld [vmem:[#allocation9 + $0x38] sm:$0xf]
        %v5631 = vld [vmem:[#allocation9 + $0x3c] sm:$0xf]
        %v5648 = vunpack.c.l.b16 %v5616
        %v5649 = vunpack.c.l.b16 %v5617
        %v5650 = vunpack.c.l.b16 %v5618
        %v5651 = vunpack.c.l.b16 %v5619
        %v5652 = vunpack.c.l.b16 %v5620
        %v5653 = vunpack.c.l.b16 %v5621
        %v5654 = vunpack.c.l.b16 %v5622
        %v5655 = vunpack.c.l.b16 %v5623
        %v5656 = vunpack.c.l.b16 %v5624
        %v5657 = vunpack.c.l.b16 %v5625
        %v5658 = vunpack.c.l.b16 %v5626
        %v5659 = vunpack.c.l.b16 %v5627
        %v5660 = vunpack.c.l.b16 %v5628
        %v5661 = vunpack.c.l.b16 %v5629
        %v5662 = vunpack.c.l.b16 %v5630
        %v5663 = vunpack.c.l.b16 %v5631
        %v5664 = vpack.c.b16 %v5649, %v5648
        %v5665 = vpack.c.b16 %v5651, %v5650
        %v5666 = vpack.c.b16 %v5653, %v5652
        %v5667 = vpack.c.b16 %v5655, %v5654
        %v5668 = vpack.c.b16 %v5657, %v5656
        %v5669 = vpack.c.b16 %v5659, %v5658
        %v5670 = vpack.c.b16 %v5661, %v5660
        %v5671 = vpack.c.b16 %v5663, %v5662
        %5680 = vmatprep.subr.bf16.mxu0 0
        %5681 = vmatpush1.bf16.msra.mxu0 %v5664
        %5682 = vmatprep.subr.bf16.mxu0 0
        %5683 = vmatpush1.bf16.msra.mxu0 %v5665
        %5684 = vmatprep.subr.bf16.mxu0 0
        %5685 = vmatpush1.bf16.msra.mxu0 %v5666
        %5686 = vmatprep.subr.bf16.mxu0 0
        %5687 = vmatpush1.bf16.msra.mxu0 %v5667
        %5688 = vmatprep.subr.bf16.mxu0 0
        %5689 = vmatpush1.bf16.msra.mxu0 %v5668
        %5690 = vmatprep.subr.bf16.mxu0 0
        %5691 = vmatpush1.bf16.msra.mxu0 %v5669
        %5692 = vmatprep.subr.bf16.mxu0 0
        %5693 = vmatpush1.bf16.msra.mxu0 %v5670
        %5694 = vmatprep.subr.bf16.mxu0 0
        %5695 = vmatpush1.bf16.msra.mxu0 %v5671
        %5696 = vmatprep.subr.bf16.mxu0 0
        %5697 = vmatpush1.bf16.msra.mxu0 0
        %5698 = vmatprep.subr.bf16.mxu0 0
        %5699 = vmatpush1.bf16.msra.mxu0 0
        %5700 = vmatprep.subr.bf16.mxu0 0
        %5701 = vmatpush1.bf16.msra.mxu0 0
        %5702 = vmatprep.subr.bf16.mxu0 0
        %5703 = vmatpush1.bf16.msra.mxu0 0
        %5704 = vmatprep.subr.bf16.mxu0 0
        %5705 = vmatpush1.bf16.msra.mxu0 0
        %5706 = vmatprep.subr.bf16.mxu0 0
        %5707 = vmatpush1.bf16.msra.mxu0 0
        %5708 = vmatprep.subr.bf16.mxu0 0
        %5709 = vmatpush1.bf16.msra.mxu0 0
        %5710 = vmatprep.subr.bf16.mxu0 0
        %5711 = vmatpush1.bf16.msra.mxu0 0
        %5712 = vmatprep.mubr.bf16.mxu0 0
        %5713 = vmatmul.mubr.bf16.gmra.mrb[0].mxu0 %v5600
        %v5714 = vpop.f32.mrb[0].mxu0
        %v5715 = vadd.f32 0.0, %v5714
        %v5716 = vpop.f32.mrb[0].mxu0
        %v5717 = vpop.f32.mrb[0].mxu0
        %v5718 = vadd.f32 0.0, %v5717
        %v5719 = vpop.f32.mrb[0].mxu0
        %5720 = vmatprep.mubr.bf16.mxu0 0
        %5721 = vmatmul.mubr.bf16.gmra.mrb[0].mxu0 %v5601
        %v5722 = vpop.f32.mrb[0].mxu0
        %v5723 = vadd.f32 0.0, %v5722
        %v5724 = vpop.f32.mrb[0].mxu0
        %v5725 = vpop.f32.mrb[0].mxu0
        %v5726 = vadd.f32 0.0, %v5725
        %v5727 = vpop.f32.mrb[0].mxu0
        %5728 = vmatprep.mubr.bf16.mxu0 0
        %5729 = vmatmul.mubr.bf16.gmra.mrb[0].mxu0 %v5602
        %v5730 = vpop.f32.mrb[0].mxu0
        %v5731 = vadd.f32 0.0, %v5730
        %v5732 = vpop.f32.mrb[0].mxu0
        %v5733 = vpop.f32.mrb[0].mxu0
        %v5734 = vadd.f32 0.0, %v5733
        %v5735 = vpop.f32.mrb[0].mxu0
        %5736 = vmatprep.mubr.bf16.mxu0 0
        %5737 = vmatmul.mubr.bf16.gmra.mrb[0].mxu0 %v5603
        %v5738 = vpop.f32.mrb[0].mxu0
        %v5739 = vadd.f32 0.0, %v5738
        %v5740 = vpop.f32.mrb[0].mxu0
        %v5741 = vpop.f32.mrb[0].mxu0
        %v5742 = vadd.f32 0.0, %v5741
        %v5743 = vpop.f32.mrb[0].mxu0
        %5744 = vmatprep.mubr.bf16.mxu0 0
        %5745 = vmatmul.mubr.bf16.gmra.mrb[0].mxu0 %v5604
        %v5746 = vpop.f32.mrb[0].mxu0
        %v5747 = vadd.f32 0.0, %v5746
        %v5748 = vpop.f32.mrb[0].mxu0
        %v5749 = vpop.f32.mrb[0].mxu0
        %v5750 = vadd.f32 0.0, %v5749
        %v5751 = vpop.f32.mrb[0].mxu0
        %5752 = vmatprep.mubr.bf16.mxu0 0
        %5753 = vmatmul.mubr.bf16.gmra.mrb[0].mxu0 %v5605
        %v5754 = vpop.f32.mrb[0].mxu0
        %v5755 = vadd.f32 0.0, %v5754
        %v5756 = vpop.f32.mrb[0].mxu0
        %v5757 = vpop.f32.mrb[0].mxu0
        %v5758 = vadd.f32 0.0, %v5757
        %v5759 = vpop.f32.mrb[0].mxu0
        %5760 = vmatprep.mubr.bf16.mxu0 0
        %5761 = vmatmul.mubr.bf16.gmra.mrb[0].mxu0 %v5606
        %v5762 = vpop.f32.mrb[0].mxu0
        %v5763 = vadd.f32 0.0, %v5762
        %v5764 = vpop.f32.mrb[0].mxu0
        %v5765 = vpop.f32.mrb[0].mxu0
        %v5766 = vadd.f32 0.0, %v5765
        %v5767 = vpop.f32.mrb[0].mxu0
        %5768 = vmatprep.mubr.bf16.mxu0 0
        %5769 = vmatmul.mubr.bf16.gmra.mrb[0].mxu0 %v5607
        %v5770 = vpop.f32.mrb[0].mxu0
        %v5771 = vadd.f32 0.0, %v5770
        %v5772 = vpop.f32.mrb[0].mxu0
        %v5773 = vpop.f32.mrb[0].mxu0
        %v5774 = vadd.f32 0.0, %v5773
        %v5775 = vpop.f32.mrb[0].mxu0
        %5776 = vmatprep.mubr.bf16.mxu0 0
        %5777 = vmatmul.mubr.bf16.gmra.mrb[0].mxu0 %v5608
        %v5778 = vpop.f32.mrb[0].mxu0
        %v5779 = vadd.f32 0.0, %v5778
        %v5780 = vpop.f32.mrb[0].mxu0
        %v5781 = vpop.f32.mrb[0].mxu0
        %v5782 = vadd.f32 0.0, %v5781
        %v5783 = vpop.f32.mrb[0].mxu0
        %5784 = vmatprep.mubr.bf16.mxu0 0
        %5785 = vmatmul.mubr.bf16.gmra.mrb[0].mxu0 %v5609
        %v5786 = vpop.f32.mrb[0].mxu0
        %v5787 = vadd.f32 0.0, %v5786
        %v5788 = vpop.f32.mrb[0].mxu0
        %v5789 = vpop.f32.mrb[0].mxu0
        %v5790 = vadd.f32 0.0, %v5789
        %v5791 = vpop.f32.mrb[0].mxu0
        %5792 = vmatprep.mubr.bf16.mxu0 0
        %5793 = vmatmul.mubr.bf16.gmra.mrb[0].mxu0 %v5610
        %v5794 = vpop.f32.mrb[0].mxu0
        %v5795 = vadd.f32 0.0, %v5794
        %v5796 = vpop.f32.mrb[0].mxu0
        %v5797 = vpop.f32.mrb[0].mxu0
        %v5798 = vadd.f32 0.0, %v5797
        %v5799 = vpop.f32.mrb[0].mxu0
        %5800 = vmatprep.mubr.bf16.mxu0 0
        %5801 = vmatmul.mubr.bf16.gmra.mrb[0].mxu0 %v5611
        %v5802 = vpop.f32.mrb[0].mxu0
        %v5803 = vadd.f32 0.0, %v5802
        %v5804 = vpop.f32.mrb[0].mxu0
        %v5805 = vpop.f32.mrb[0].mxu0
        %v5806 = vadd.f32 0.0, %v5805
        %v5807 = vpop.f32.mrb[0].mxu0
        %5808 = vmatprep.mubr.bf16.mxu0 0
        %5809 = vmatmul.mubr.bf16.gmra.mrb[0].mxu0 %v5612
        %v5810 = vpop.f32.mrb[0].mxu0
        %v5811 = vadd.f32 0.0, %v5810
        %v5812 = vpop.f32.mrb[0].mxu0
        %v5813 = vpop.f32.mrb[0].mxu0
        %v5814 = vadd.f32 0.0, %v5813
        %v5815 = vpop.f32.mrb[0].mxu0
        %5816 = vmatprep.mubr.bf16.mxu0 0
        %5817 = vmatmul.mubr.bf16.gmra.mrb[0].mxu0 %v5613
        %v5818 = vpop.f32.mrb[0].mxu0
        %v5819 = vadd.f32 0.0, %v5818
        %v5820 = vpop.f32.mrb[0].mxu0
        %v5821 = vpop.f32.mrb[0].mxu0
        %v5822 = vadd.f32 0.0, %v5821
        %v5823 = vpop.f32.mrb[0].mxu0
        %5824 = vmatprep.mubr.bf16.mxu0 0
        %5825 = vmatmul.mubr.bf16.gmra.mrb[0].mxu0 %v5614
        %v5826 = vpop.f32.mrb[0].mxu0
        %v5827 = vadd.f32 0.0, %v5826
        %v5828 = vpop.f32.mrb[0].mxu0
        %v5829 = vpop.f32.mrb[0].mxu0
        %v5830 = vadd.f32 0.0, %v5829
        %v5831 = vpop.f32.mrb[0].mxu0
        %5832 = vmatprep.mubr.bf16.mxu0 0
        %5833 = vmatmul.mubr.bf16.gmra.mrb[0].mxu0 %v5615
        %v5834 = vpop.f32.mrb[0].mxu0
        %v5835 = vadd.f32 0.0, %v5834
        %v5836 = vpop.f32.mrb[0].mxu0
        %v5837 = vpop.f32.mrb[0].mxu0
        %v5838 = vadd.f32 0.0, %v5837
        %v5839 = vpop.f32.mrb[0].mxu0
        %5840 = vdwg.mxu0
        %v5841 = vld [vmem:[%s8] sm:$0x1]
        %v5843 = vlaneseq
        %v5844 = vshrl.u32 %v5843, 7
        %v5845 = vsub.s32 0, %v5844
        %v5846 = vrot.slane %v5841, %v5845
        %v5848 = vmul.f32 %v5715, %v5846
        %v5849 = vmul.f32 %v5718, %v5846
        %v5850 = vmul.f32 %v5723, %v5846
        %v5851 = vmul.f32 %v5726, %v5846
        %v5852 = vmul.f32 %v5731, %v5846
        %v5853 = vmul.f32 %v5734, %v5846
        %v5854 = vmul.f32 %v5739, %v5846
        %v5855 = vmul.f32 %v5742, %v5846
        %v5856 = vmul.f32 %v5747, %v5846
        %v5857 = vmul.f32 %v5750, %v5846
        %v5858 = vmul.f32 %v5755, %v5846
        %v5859 = vmul.f32 %v5758, %v5846
        %v5860 = vmul.f32 %v5763, %v5846
        %v5861 = vmul.f32 %v5766, %v5846
        %v5862 = vmul.f32 %v5771, %v5846
        %v5863 = vmul.f32 %v5774, %v5846
        %v5864 = vmul.f32 %v5779, %v5846
        %v5865 = vmul.f32 %v5782, %v5846
        %v5866 = vmul.f32 %v5787, %v5846
        %v5867 = vmul.f32 %v5790, %v5846
        %v5868 = vmul.f32 %v5795, %v5846
        %v5869 = vmul.f32 %v5798, %v5846
        %v5870 = vmul.f32 %v5803, %v5846
        %v5871 = vmul.f32 %v5806, %v5846
        %v5872 = vmul.f32 %v5811, %v5846
        %v5873 = vmul.f32 %v5814, %v5846
        %v5874 = vmul.f32 %v5819, %v5846
        %v5875 = vmul.f32 %v5822, %v5846
        %v5876 = vmul.f32 %v5827, %v5846
        %v5877 = vmul.f32 %v5830, %v5846
        %v5878 = vmul.f32 %v5835, %v5846
        %v5879 = vmul.f32 %v5838, %v5846
        %v5880 = vld [vmem:[%s9] sm:$0x1]
        %v5882 = vlaneseq
        %v5883 = vshrl.u32 %v5882, 7
        %v5884 = vsub.s32 0, %v5883
        %v5885 = vrot.slane %v5880, %v5884
        %v5887 = vadd.f32 %v5848, %v5885
        %v5888 = vadd.f32 %v5849, %v5885
        %v5889 = vadd.f32 %v5850, %v5885
        %v5890 = vadd.f32 %v5851, %v5885
        %v5891 = vadd.f32 %v5852, %v5885
        %v5892 = vadd.f32 %v5853, %v5885
        %v5893 = vadd.f32 %v5854, %v5885
        %v5894 = vadd.f32 %v5855, %v5885
        %v5895 = vadd.f32 %v5856, %v5885
        %v5896 = vadd.f32 %v5857, %v5885
        %v5897 = vadd.f32 %v5858, %v5885
        %v5898 = vadd.f32 %v5859, %v5885
        %v5899 = vadd.f32 %v5860, %v5885
        %v5900 = vadd.f32 %v5861, %v5885
        %v5901 = vadd.f32 %v5862, %v5885
        %v5902 = vadd.f32 %v5863, %v5885
        %v5903 = vadd.f32 %v5864, %v5885
        %v5904 = vadd.f32 %v5865, %v5885
        %v5905 = vadd.f32 %v5866, %v5885
        %v5906 = vadd.f32 %v5867, %v5885
        %v5907 = vadd.f32 %v5868, %v5885
        %v5908 = vadd.f32 %v5869, %v5885
        %v5909 = vadd.f32 %v5870, %v5885
        %v5910 = vadd.f32 %v5871, %v5885
        %v5911 = vadd.f32 %v5872, %v5885
        %v5912 = vadd.f32 %v5873, %v5885
        %v5913 = vadd.f32 %v5874, %v5885
        %v5914 = vadd.f32 %v5875, %v5885
        %v5915 = vadd.f32 %v5876, %v5885
        %v5916 = vadd.f32 %v5877, %v5885
        %v5917 = vadd.f32 %v5878, %v5885
        %v5918 = vadd.f32 %v5879, %v5885
        %v5919 = vld [vmem:[%s373] sm:$0xff]
        %v5920 = vld [vmem:[%s373 + $0x8] sm:$0xff]
        %v5921 = vld [vmem:[%s373 + $0x10] sm:$0xff]
        %v5922 = vld [vmem:[%s373 + $0x18] sm:$0xff]
        %v5923 = vld [vmem:[%s373 + $0x20] sm:$0xff]
        %v5924 = vld [vmem:[%s373 + $0x28] sm:$0xff]
        %v5925 = vld [vmem:[%s373 + $0x30] sm:$0xff]
        %v5926 = vld [vmem:[%s373 + $0x38] sm:$0xff]
        %v5927 = vld [vmem:[%s373 + $0x40] sm:$0xff]
        %v5928 = vld [vmem:[%s373 + $0x48] sm:$0xff]
        %v5929 = vld [vmem:[%s373 + $0x50] sm:$0xff]
        %v5930 = vld [vmem:[%s373 + $0x58] sm:$0xff]
        %v5931 = vld [vmem:[%s373 + $0x60] sm:$0xff]
        %v5932 = vld [vmem:[%s373 + $0x68] sm:$0xff]
        %v5933 = vld [vmem:[%s373 + $0x70] sm:$0xff]
        %v5934 = vld [vmem:[%s373 + $0x78] sm:$0xff]
        %v5935 = vld [vmem:[%s373 + $0x80] sm:$0xff]
        %v5936 = vld [vmem:[%s373 + $0x88] sm:$0xff]
        %v5937 = vld [vmem:[%s373 + $0x90] sm:$0xff]
        %v5938 = vld [vmem:[%s373 + $0x98] sm:$0xff]
        %v5939 = vld [vmem:[%s373 + $0xa0] sm:$0xff]
        %v5940 = vld [vmem:[%s373 + $0xa8] sm:$0xff]
        %v5941 = vld [vmem:[%s373 + $0xb0] sm:$0xff]
        %v5942 = vld [vmem:[%s373 + $0xb8] sm:$0xff]
        %v5943 = vld [vmem:[%s373 + $0xc0] sm:$0xff]
        %v5944 = vld [vmem:[%s373 + $0xc8] sm:$0xff]
        %v5945 = vld [vmem:[%s373 + $0xd0] sm:$0xff]
        %v5946 = vld [vmem:[%s373 + $0xd8] sm:$0xff]
        %v5947 = vld [vmem:[%s373 + $0xe0] sm:$0xff]
        %v5948 = vld [vmem:[%s373 + $0xe8] sm:$0xff]
        %v5949 = vld [vmem:[%s373 + $0xf0] sm:$0xff]
        %v5950 = vld [vmem:[%s373 + $0xf8] sm:$0xff]
        %v5951 = vadd.f32 %v5887, %v5919
        %v5952 = vadd.f32 %v5888, %v5920
        %v5953 = vadd.f32 %v5889, %v5921
        %v5954 = vadd.f32 %v5890, %v5922
        %v5955 = vadd.f32 %v5891, %v5923
        %v5956 = vadd.f32 %v5892, %v5924
        %v5957 = vadd.f32 %v5893, %v5925
        %v5958 = vadd.f32 %v5894, %v5926
        %v5959 = vadd.f32 %v5895, %v5927
        %v5960 = vadd.f32 %v5896, %v5928
        %v5961 = vadd.f32 %v5897, %v5929
        %v5962 = vadd.f32 %v5898, %v5930
        %v5963 = vadd.f32 %v5899, %v5931
        %v5964 = vadd.f32 %v5900, %v5932
        %v5965 = vadd.f32 %v5901, %v5933
        %v5966 = vadd.f32 %v5902, %v5934
        %v5967 = vadd.f32 %v5903, %v5935
        %v5968 = vadd.f32 %v5904, %v5936
        %v5969 = vadd.f32 %v5905, %v5937
        %v5970 = vadd.f32 %v5906, %v5938
        %v5971 = vadd.f32 %v5907, %v5939
        %v5972 = vadd.f32 %v5908, %v5940
        %v5973 = vadd.f32 %v5909, %v5941
        %v5974 = vadd.f32 %v5910, %v5942
        %v5975 = vadd.f32 %v5911, %v5943
        %v5976 = vadd.f32 %v5912, %v5944
        %v5977 = vadd.f32 %v5913, %v5945
        %v5978 = vadd.f32 %v5914, %v5946
        %v5979 = vadd.f32 %v5915, %v5947
        %v5980 = vadd.f32 %v5916, %v5948
        %v5981 = vadd.f32 %v5917, %v5949
        %v5982 = vadd.f32 %v5918, %v5950
        %v5983 = vmax.f32 %v5951, 0.0
        %v5984 = vmax.f32 %v5952, 0.0
        %v5985 = vmax.f32 %v5953, 0.0
        %v5986 = vmax.f32 %v5954, 0.0
        %v5987 = vmax.f32 %v5955, 0.0
        %v5988 = vmax.f32 %v5956, 0.0
        %v5989 = vmax.f32 %v5957, 0.0
        %v5990 = vmax.f32 %v5958, 0.0
        %v5991 = vmax.f32 %v5959, 0.0
        %v5992 = vmax.f32 %v5960, 0.0
        %v5993 = vmax.f32 %v5961, 0.0
        %v5994 = vmax.f32 %v5962, 0.0
        %v5995 = vmax.f32 %v5963, 0.0
        %v5996 = vmax.f32 %v5964, 0.0
        %v5997 = vmax.f32 %v5965, 0.0
        %v5998 = vmax.f32 %v5966, 0.0
        %v5999 = vmax.f32 %v5967, 0.0
        %v6000 = vmax.f32 %v5968, 0.0
        %v6001 = vmax.f32 %v5969, 0.0
        %v6002 = vmax.f32 %v5970, 0.0
        %v6003 = vmax.f32 %v5971, 0.0
        %v6004 = vmax.f32 %v5972, 0.0
        %v6005 = vmax.f32 %v5973, 0.0
        %v6006 = vmax.f32 %v5974, 0.0
        %v6007 = vmax.f32 %v5975, 0.0
        %v6008 = vmax.f32 %v5976, 0.0
        %v6009 = vmax.f32 %v5977, 0.0
        %v6010 = vmax.f32 %v5978, 0.0
        %v6011 = vmax.f32 %v5979, 0.0
        %v6012 = vmax.f32 %v5980, 0.0
        %v6013 = vmax.f32 %v5981, 0.0
        %v6014 = vmax.f32 %v5982, 0.0
        %6015 = vst [vmem:[%s421] sm:$0xff] %v5983
        %6016 = vst [vmem:[%s421 + $0x8] sm:$0xff] %v5984
        %6017 = vst [vmem:[%s421 + $0x10] sm:$0xff] %v5985
        %6018 = vst [vmem:[%s421 + $0x18] sm:$0xff] %v5986
        %6019 = vst [vmem:[%s421 + $0x20] sm:$0xff] %v5987
        %6020 = vst [vmem:[%s421 + $0x28] sm:$0xff] %v5988
        %6021 = vst [vmem:[%s421 + $0x30] sm:$0xff] %v5989
        %6022 = vst [vmem:[%s421 + $0x38] sm:$0xff] %v5990
        %6023 = vst [vmem:[%s421 + $0x40] sm:$0xff] %v5991
        %6024 = vst [vmem:[%s421 + $0x48] sm:$0xff] %v5992
        %6025 = vst [vmem:[%s421 + $0x50] sm:$0xff] %v5993
        %6026 = vst [vmem:[%s421 + $0x58] sm:$0xff] %v5994
        %6027 = vst [vmem:[%s421 + $0x60] sm:$0xff] %v5995
        %6028 = vst [vmem:[%s421 + $0x68] sm:$0xff] %v5996
        %6029 = vst [vmem:[%s421 + $0x70] sm:$0xff] %v5997
        %6030 = vst [vmem:[%s421 + $0x78] sm:$0xff] %v5998
        %6031 = vst [vmem:[%s421 + $0x80] sm:$0xff] %v5999
        %6032 = vst [vmem:[%s421 + $0x88] sm:$0xff] %v6000
        %6033 = vst [vmem:[%s421 + $0x90] sm:$0xff] %v6001
        %6034 = vst [vmem:[%s421 + $0x98] sm:$0xff] %v6002
        %6035 = vst [vmem:[%s421 + $0xa0] sm:$0xff] %v6003
        %6036 = vst [vmem:[%s421 + $0xa8] sm:$0xff] %v6004
        %6037 = vst [vmem:[%s421 + $0xb0] sm:$0xff] %v6005
        %6038 = vst [vmem:[%s421 + $0xb8] sm:$0xff] %v6006
        %6039 = vst [vmem:[%s421 + $0xc0] sm:$0xff] %v6007
        %6040 = vst [vmem:[%s421 + $0xc8] sm:$0xff] %v6008
        %6041 = vst [vmem:[%s421 + $0xd0] sm:$0xff] %v6009
        %6042 = vst [vmem:[%s421 + $0xd8] sm:$0xff] %v6010
        %6043 = vst [vmem:[%s421 + $0xe0] sm:$0xff] %v6011
        %6044 = vst [vmem:[%s421 + $0xe8] sm:$0xff] %v6012
        %6045 = vst [vmem:[%s421 + $0xf0] sm:$0xff] %v6013
        %6046 = vst [vmem:[%s421 + $0xf8] sm:$0xff] %v6014
        %s6047 = sand.u32 %s252, 1
        %s6048 = scalar_lea.sflag [#allocation5], %s6047
        %s6049 = sand.u32 %s252, 1
        %s6050 = smul.addr %s6049, 256
        %s6051 = scalar_lea.vmem [#allocation11], %s6050
        // Predicated region
        $region77: #{tpu_custom_call.1} parent=59 // pred_check
          %p6052 = pneg %p262
        $region78: #{tpu_custom_call.1} parent=59 // pred_check_branch
          %6054 = sbr.rel (%p6052) target = $region80
        $region79: #{tpu_custom_call.1} parent=59 // pred_region
          %s6056 = ssub.s32 4096, 4096
          %6057 = vsyncadd %s6048, %s6056
          %s6058 = smul.addr %s29, 32
          %s6059 = smul.addr %s6058, 128
          %s6060 = scalar_lea.hbm %s10, %s6059
          %s6061 = sshll.u32 %s6051, 4
          %s6062 = int_to_ptr.vmem [resolvable:$true] %s6061
          %6067 = dma.vmem_to_hbm [thread:$0]  %s6062, 4096, %s6060, %s6048, 128, 128, 8
        $region80: #{tpu_custom_call.1} parent=59 // pred_fallthru
          _
      $region60: #{tpu_custom_call.1} parent=5 // pred_fallthru
        _
      %p6068 = scmp.le.s32.totalorder 2, %s24
      // Predicated region
      $region81: #{tpu_custom_call.1} parent=5 // pred_check
        %p6069 = pneg %p6068
      $region82: #{tpu_custom_call.1} parent=5 // pred_check_branch
        %6071 = sbr.rel (%p6069) target = $region84
      $region83: #{tpu_custom_call.1} parent=5 // pred_region
        %s6072 = ssub.s32 %s24, 2
        // Predicated region
        $region85: #{tpu_custom_call.1} parent=83 // pred_check
          %p6073 = pneg %p268
        $region86: #{tpu_custom_call.1} parent=83 // pred_check_branch
          %6075 = sbr.rel (%p6073) target = $region88
        $region87: #{tpu_custom_call.1} parent=83 // pred_region
          %s6076 = sand.u32 %s253, 1
          %s6077 = scalar_lea.sflag [#allocation5], %s6076
          %s6078 = sand.u32 %s253, 1
          %s6079 = smul.addr %s6078, 256
          %s6080 = scalar_lea.vmem [#allocation11], %s6079
          %6081 = dma.done %s6077, 4096
        $region88: #{tpu_custom_call.1} parent=83 // pred_fallthru
          _
      $region84: #{tpu_custom_call.1} parent=5 // pred_fallthru
        _
    $region6: #{tpu_custom_call.1} parent=1 // loop_footer
      %s28 = sadd.s32 1, %s24
    $region7: #{tpu_custom_call.1} parent=1 // loop_footer_branch
      %23 = sbr.rel target = $region3
    $region8: #{tpu_custom_call.1} parent=1 // loop_exit
      _
    %6082 = vsyncpa [#allocation4], 1
    %s6083 = scalar_lea.sflag [#allocation4], 1
    %6084 = vsyncpa %s6083, 1
    %6085 = vsyncpa [#allocation7], 1
    %6086 = vsyncpa [#allocation10], 1
    %6087 = vsyncpa [#allocation5], 1
    %s6088 = scalar_lea.sflag [#allocation5], 1
    %6089 = vsyncpa %s6088, 1

</llo_original>
